<compile_context>
chip_gen: v5e
topology: v5e:2x2
jax: 0.10.0
libtpu: 0.0.40
codegen_flags: <defaults>
</compile_context>

<pallas_src>
import functools
import math

import jax
import jax.numpy as jnp
from jax.experimental import pallas as pl
from jax.experimental.pallas import tpu as pltpu


# ----------------------------------------------------------------------------
# Kernel
# ----------------------------------------------------------------------------
def cross_attention_kernel(x0_ref, x1_ref, lam_ref,            # SMEM interp tables
                           q_ref, k_ref, v_ref,                # bf16 activations
                           wq_ref, bq_ref, wk_ref, bk_ref,
                           wv_ref, bv_ref, wo_ref, bo_ref,     # weights / biases
                           out_ref,                            # (k_len, out_dim) f32
                           proj_ref,                           # VMEM scratch (q_len, out_dim) f32
                           *, num_heads, head_dim, k_len):
    f32 = jnp.float32
    bf16 = jnp.bfloat16

    # --- QKV projections: bf16 inputs, f32 accumulation -----------------------
    Qp = jnp.dot(q_ref[...], wq_ref[...], preferred_element_type=f32) + bq_ref[...]
    Kp = jnp.dot(k_ref[...], wk_ref[...], preferred_element_type=f32) + bk_ref[...]
    Vp = jnp.dot(v_ref[...], wv_ref[...], preferred_element_type=f32) + bv_ref[...]

    # --- split heads: static lane slices stacked on a new leading axis --------
    def split_heads(x):                      # (seq, H*hd) -> (H, seq, hd)
        return jnp.stack(
            [x[:, h * head_dim:(h + 1) * head_dim] for h in range(num_heads)],
            axis=0)

    Qh = split_heads(Qp.astype(bf16))        # (H, q, hd)
    Kh = split_heads(Kp.astype(bf16))        # (H, k, hd)
    Vh = split_heads(Vp.astype(bf16))        # (H, k, hd)

    # --- head-batched scaled-dot-product attention (no explicit K transpose) --
    scale = 1.0 / math.sqrt(head_dim)
    s = jnp.einsum("hqd,hkd->hqk", Qh, Kh, preferred_element_type=f32) * scale
    s = s - jnp.max(s, axis=-1, keepdims=True)           # stable softmax (f32)
    p = jnp.exp(s)
    p = p * pl.reciprocal(jnp.sum(p, axis=-1, keepdims=True), approx=True)
    o = jnp.einsum("hqk,hkd->hqd", p.astype(bf16), Vh,
                   preferred_element_type=f32)            # (H, q, hd) f32

    # --- output projection folded over heads: proj = sum_h o_h @ Wo_h + bo ----
    proj_h = jnp.einsum("hqd,hdo->hqo", o.astype(bf16), wo_ref[...],
                        preferred_element_type=f32)       # (H, q, out)
    proj = proj_h[0]
    for h in range(1, num_heads):
        proj = proj + proj_h[h]
    proj_ref[...] = proj + bo_ref[...]                    # (q, out) f32

    # --- linear interp q_len -> k_len: gather 2 neighbour rows + lerp ---------
    def interp_row(i, carry):
        w1 = lam_ref[i]
        r0 = proj_ref[pl.ds(x0_ref[i], 1), :]
        r1 = proj_ref[pl.ds(x1_ref[i], 1), :]
        out_ref[pl.ds(i, 1), :] = (1.0 - w1) * r0 + w1 * r1
        return carry

    jax.lax.fori_loop(0, k_len, interp_row, None, unroll=k_len <= 64)


# ----------------------------------------------------------------------------
# Glue
# ----------------------------------------------------------------------------
def linear_interp_indices(in_len, out_len):
    """PyTorch F.interpolate(mode='linear', align_corners=False) sampling grid."""
    scale = in_len / out_len
    i = jnp.arange(out_len, dtype=jnp.float32)
    src = jnp.maximum((i + 0.5) * scale - 0.5, 0.0)       # negative src clamps to 0
    x0 = jnp.minimum(jnp.floor(src).astype(jnp.int32), in_len - 1)
    x1 = jnp.minimum(x0 + 1, in_len - 1)
    lam = src - x0.astype(jnp.float32)
    return x0, x1, lam


def cross_attention(Q, K, V, params, *, num_heads):
    B, q_len, input_dim = Q.shape
    _, k_len, _ = K.shape
    output_dim = params["wq"].shape[0]
    head_dim = output_dim // num_heads
    assert head_dim * num_heads == output_dim

    bf16, f32 = jnp.bfloat16, jnp.float32

    # nn.Linear stores weight as (out, in); the kernel consumes (in, out) bf16.
    wq = params["wq"].T.astype(bf16)
    wk = params["wk"].T.astype(bf16)
    wv = params["wv"].T.astype(bf16)
    # out_proj weight pre-arranged per head: (H*hd, out) -> (H, hd, out).
    wo = params["wo"].T.reshape(num_heads, head_dim, output_dim).astype(bf16)
    bq = params["bq"].reshape(1, output_dim).astype(f32)
    bk = params["bk"].reshape(1, output_dim).astype(f32)
    bv = params["bv"].reshape(1, output_dim).astype(f32)
    bo = params["bo"].reshape(1, output_dim).astype(f32)

    x0, x1, lam = linear_interp_indices(q_len, k_len)

    kernel = functools.partial(cross_attention_kernel,
                               num_heads=num_heads, head_dim=head_dim,
                               k_len=k_len)

    smem = pl.BlockSpec(memory_space=pltpu.MemorySpace.SMEM)
    # Constant operands: block index never changes across the batch grid, so
    # Pallas only fetches them once.
    const = lambda shape: pl.BlockSpec(shape, lambda b: (0,) * len(shape))

    return pl.pallas_call(
        kernel,
        out_shape=jax.ShapeDtypeStruct((B, k_len, output_dim), f32),
        grid=(B,),
        in_specs=[
            smem, smem, smem,                                            # x0, x1, lam
            pl.BlockSpec((pl.Squeezed(), q_len, input_dim), lambda b: (b, 0, 0)),
            pl.BlockSpec((pl.Squeezed(), k_len, input_dim), lambda b: (b, 0, 0)),
            pl.BlockSpec((pl.Squeezed(), k_len, input_dim), lambda b: (b, 0, 0)),
            const((input_dim, output_dim)), const((1, output_dim)),      # wq, bq
            const((input_dim, output_dim)), const((1, output_dim)),      # wk, bk
            const((input_dim, output_dim)), const((1, output_dim)),      # wv, bv
            const((num_heads, head_dim, output_dim)), const((1, output_dim)),  # wo, bo
        ],
        out_specs=pl.BlockSpec((pl.Squeezed(), k_len, output_dim),
                               lambda b: (b, 0, 0)),
        scratch_shapes=[pltpu.VMEM((q_len, output_dim), f32)],
        compiler_params=pltpu.CompilerParams(
            dimension_semantics=("parallel",),
            vmem_limit_bytes=32 * 1024 * 1024),
    )(x0, x1, lam,
      Q.astype(bf16), K.astype(bf16), V.astype(bf16),
      wq, bq, wk, bk, wv, bv, wo, bo)


# ----------------------------------------------------------------------------
# Reference (mirrors the kernel's bf16 operand rounding; accumulation in f32)
# ----------------------------------------------------------------------------
def cross_attention_ref(Q, K, V, params, *, num_heads):
    bf16, f32 = jnp.bfloat16, jnp.float32
    B, q_len, _ = Q.shape
    _, k_len, _ = K.shape
    output_dim = params["wq"].shape[0]
    head_dim = output_dim // num_heads

    def lin(x, w, b):
        return (jnp.einsum("bsi,oi->bso", x.astype(bf16), w.astype(bf16),
                           preferred_element_type=f32) + b.astype(f32))

    Qp = lin(Q, params["wq"], params["bq"])
    Kp = lin(K, params["wk"], params["bk"])
    Vp = lin(V, params["wv"], params["bv"])
    Qh = Qp.reshape(B, q_len, num_heads, head_dim).transpose(0, 2, 1, 3).astype(bf16)
    Kh = Kp.reshape(B, k_len, num_heads, head_dim).transpose(0, 2, 1, 3).astype(bf16)
    Vh = Vp.reshape(B, k_len, num_heads, head_dim).transpose(0, 2, 1, 3).astype(bf16)
    s = jnp.einsum("bhqd,bhkd->bhqk", Qh, Kh, preferred_element_type=f32)
    s = s / jnp.sqrt(jnp.float32(head_dim))
    p = jax.nn.softmax(s, axis=-1)
    o = jnp.einsum("bhqk,bhkd->bhqd", p.astype(bf16), Vh, preferred_element_type=f32)
    o = o.transpose(0, 2, 1, 3).reshape(B, q_len, output_dim)
    proj = (jnp.einsum("bqd,od->bqo", o.astype(bf16), params["wo"].astype(bf16),
                       preferred_element_type=f32) + params["bo"].astype(f32))
    x0, x1, lam = linear_interp_indices(q_len, k_len)
    r0, r1 = proj[:, x0, :], proj[:, x1, :]
    return (1.0 - lam)[None, :, None] * r0 + lam[None, :, None] * r1


# ----------------------------------------------------------------------------
if __name__ == "__main__":
    B, q_len, k_len = 2, 16, 32
    input_dim, output_dim, num_heads = 128, 128, 4

    key = jax.random.PRNGKey(0)
    ks = jax.random.split(key, 11)
    Q = jax.random.normal(ks[0], (B, q_len, input_dim), dtype=jnp.float32)
    K = jax.random.normal(ks[1], (B, k_len, input_dim), dtype=jnp.float32)
    V = jax.random.normal(ks[2], (B, k_len, input_dim), dtype=jnp.float32)

    w = 0.05
    params = {
        "wq": w * jax.random.normal(ks[3], (output_dim, input_dim), jnp.float32),
        "bq": w * jax.random.normal(ks[4], (output_dim,), jnp.float32),
        "wk": w * jax.random.normal(ks[5], (output_dim, input_dim), jnp.float32),
        "bk": w * jax.random.normal(ks[6], (output_dim,), jnp.float32),
        "wv": w * jax.random.normal(ks[7], (output_dim, input_dim), jnp.float32),
        "bv": w * jax.random.normal(ks[8], (output_dim,), jnp.float32),
        "wo": w * jax.random.normal(ks[9], (output_dim, output_dim), jnp.float32),
        "bo": w * jax.random.normal(ks[10], (output_dim,), jnp.float32),
    }

    out = jax.block_until_ready(cross_attention(Q, K, V, params, num_heads=num_heads))
    ref = cross_attention_ref(Q, K, V, params, num_heads=num_heads)

    assert out.shape == (B, k_len, output_dim)
    max_err = float(jnp.max(jnp.abs(out - ref)))
    assert jnp.allclose(out, ref, atol=2e-2, rtol=2e-2), f"mismatch, max err {max_err}"

    print("KERNEL_OK")
</pallas_src>

<mosaic_0001>
module attributes {stable_mosaic.version = 11 : i64} {
  func.func @cross_attention_kernel(%arg0: i32, %arg1: memref<32xi32, #tpu.memory_space<smem>>, %arg2: memref<32xi32, #tpu.memory_space<smem>>, %arg3: memref<32xf32, #tpu.memory_space<smem>>, %arg4: memref<1x16x128xbf16, #tpu.memory_space<vmem>>, %arg5: memref<1x32x128xbf16, #tpu.memory_space<vmem>>, %arg6: memref<1x32x128xbf16, #tpu.memory_space<vmem>>, %arg7: memref<128x128xbf16, #tpu.memory_space<vmem>>, %arg8: memref<1x128xf32, #tpu.memory_space<vmem>>, %arg9: memref<128x128xbf16, #tpu.memory_space<vmem>>, %arg10: memref<1x128xf32, #tpu.memory_space<vmem>>, %arg11: memref<128x128xbf16, #tpu.memory_space<vmem>>, %arg12: memref<1x128xf32, #tpu.memory_space<vmem>>, %arg13: memref<4x32x128xbf16, #tpu.memory_space<vmem>>, %arg14: memref<1x128xf32, #tpu.memory_space<vmem>>, %arg15: memref<1x32x128xf32, #tpu.memory_space<vmem>>, %arg16: memref<16x128xf32, #tpu.memory_space<vmem>>) attributes {dimension_semantics = [#tpu.dimension_semantics<parallel>], iteration_bounds = array<i64: 2>, scalar_prefetch = 0 : i64, scratch_operands = 1 : i64, tpu.core_type = #tpu.core_type<tc>, window_params = [{transform_indices = @transform_0, window_bounds = array<i64: 32>}, {transform_indices = @transform_1, window_bounds = array<i64: 32>}, {transform_indices = @transform_2, window_bounds = array<i64: 32>}, {transform_indices = @transform_3, window_bounds = array<i64: 1, 16, 128>}, {transform_indices = @transform_4, window_bounds = array<i64: 1, 32, 128>}, {transform_indices = @transform_5, window_bounds = array<i64: 1, 32, 128>}, {pipeline_mode = #tpu.pipeline_mode<synchronous>, transform_indices = @transform_6, window_bounds = array<i64: 128, 128>}, {pipeline_mode = #tpu.pipeline_mode<synchronous>, transform_indices = @transform_7, window_bounds = array<i64: 1, 128>}, {pipeline_mode = #tpu.pipeline_mode<synchronous>, transform_indices = @transform_8, window_bounds = array<i64: 128, 128>}, {pipeline_mode = #tpu.pipeline_mode<synchronous>, transform_indices = @transform_9, window_bounds = array<i64: 1, 128>}, {pipeline_mode = #tpu.pipeline_mode<synchronous>, transform_indices = @transform_10, window_bounds = array<i64: 128, 128>}, {pipeline_mode = #tpu.pipeline_mode<synchronous>, transform_indices = @transform_11, window_bounds = array<i64: 1, 128>}, {pipeline_mode = #tpu.pipeline_mode<synchronous>, transform_indices = @transform_12, window_bounds = array<i64: 4, 32, 128>}, {pipeline_mode = #tpu.pipeline_mode<synchronous>, transform_indices = @transform_13, window_bounds = array<i64: 1, 128>}, {transform_indices = @transform_14, window_bounds = array<i64: 1, 32, 128>}]} {
    %c0 = arith.constant 0 : index
    %c0_0 = arith.constant 0 : index
    %c0_1 = arith.constant 0 : index
    %0 = vector.load %arg4[%c0, %c0_0, %c0_1] : memref<1x16x128xbf16, #tpu.memory_space<vmem>>, vector<1x16x128xbf16>
    %1 = vector.shape_cast %0 : vector<1x16x128xbf16> to vector<16x128xbf16>
    %c0_2 = arith.constant 0 : index
    %c0_3 = arith.constant 0 : index
    %2 = vector.load %arg7[%c0_2, %c0_3] : memref<128x128xbf16, #tpu.memory_space<vmem>>, vector<128x128xbf16>
    %cst = arith.constant dense<0.000000e+00> : vector<16x128xf32>
    %3 = tpu.matmul %1, %2, %cst {dimension_numbers = #tpu.dot_dimension_numbers<[1], [0], [0], [1], [0, 0, 1, 1], [], []>} : vector<16x128xbf16>, vector<128x128xbf16>, vector<16x128xf32> -> vector<16x128xf32>
    %c0_4 = arith.constant 0 : index
    %c0_5 = arith.constant 0 : index
    %4 = vector.load %arg8[%c0_4, %c0_5] : memref<1x128xf32, #tpu.memory_space<vmem>>, vector<1x128xf32>
    %5 = vector.broadcast %4 : vector<1x128xf32> to vector<16x128xf32>
    %6 = arith.addf %3, %5 : vector<16x128xf32>
    %c0_6 = arith.constant 0 : index
    %c0_7 = arith.constant 0 : index
    %c0_8 = arith.constant 0 : index
    %7 = vector.load %arg5[%c0_6, %c0_7, %c0_8] : memref<1x32x128xbf16, #tpu.memory_space<vmem>>, vector<1x32x128xbf16>
    %8 = vector.shape_cast %7 : vector<1x32x128xbf16> to vector<32x128xbf16>
    %c0_9 = arith.constant 0 : index
    %c0_10 = arith.constant 0 : index
    %9 = vector.load %arg9[%c0_9, %c0_10] : memref<128x128xbf16, #tpu.memory_space<vmem>>, vector<128x128xbf16>
    %cst_11 = arith.constant dense<0.000000e+00> : vector<32x128xf32>
    %10 = tpu.matmul %8, %9, %cst_11 {dimension_numbers = #tpu.dot_dimension_numbers<[1], [0], [0], [1], [0, 0, 1, 1], [], []>} : vector<32x128xbf16>, vector<128x128xbf16>, vector<32x128xf32> -> vector<32x128xf32>
    %c0_12 = arith.constant 0 : index
    %c0_13 = arith.constant 0 : index
    %11 = vector.load %arg10[%c0_12, %c0_13] : memref<1x128xf32, #tpu.memory_space<vmem>>, vector<1x128xf32>
    %12 = vector.broadcast %11 : vector<1x128xf32> to vector<32x128xf32>
    %13 = arith.addf %10, %12 : vector<32x128xf32>
    %c0_14 = arith.constant 0 : index
    %c0_15 = arith.constant 0 : index
    %c0_16 = arith.constant 0 : index
    %14 = vector.load %arg6[%c0_14, %c0_15, %c0_16] : memref<1x32x128xbf16, #tpu.memory_space<vmem>>, vector<1x32x128xbf16>
    %15 = vector.shape_cast %14 : vector<1x32x128xbf16> to vector<32x128xbf16>
    %c0_17 = arith.constant 0 : index
    %c0_18 = arith.constant 0 : index
    %16 = vector.load %arg11[%c0_17, %c0_18] : memref<128x128xbf16, #tpu.memory_space<vmem>>, vector<128x128xbf16>
    %cst_19 = arith.constant dense<0.000000e+00> : vector<32x128xf32>
    %17 = tpu.matmul %15, %16, %cst_19 {dimension_numbers = #tpu.dot_dimension_numbers<[1], [0], [0], [1], [0, 0, 1, 1], [], []>} : vector<32x128xbf16>, vector<128x128xbf16>, vector<32x128xf32> -> vector<32x128xf32>
    %c0_20 = arith.constant 0 : index
    %c0_21 = arith.constant 0 : index
    %18 = vector.load %arg12[%c0_20, %c0_21] : memref<1x128xf32, #tpu.memory_space<vmem>>, vector<1x128xf32>
    %19 = vector.broadcast %18 : vector<1x128xf32> to vector<32x128xf32>
    %20 = arith.addf %17, %19 : vector<32x128xf32>
    %21 = arith.truncf %6 : vector<16x128xf32> to vector<16x128xbf16>
    %22 = vector.extract_strided_slice %21 {offsets = [0, 0], sizes = [16, 32], strides = [1, 1]} : vector<16x128xbf16> to vector<16x32xbf16>
    %23 = vector.extract_strided_slice %21 {offsets = [0, 32], sizes = [16, 32], strides = [1, 1]} : vector<16x128xbf16> to vector<16x32xbf16>
    %24 = vector.extract_strided_slice %21 {offsets = [0, 64], sizes = [16, 32], strides = [1, 1]} : vector<16x128xbf16> to vector<16x32xbf16>
    %25 = vector.extract_strided_slice %21 {offsets = [0, 96], sizes = [16, 32], strides = [1, 1]} : vector<16x128xbf16> to vector<16x32xbf16>
    %26 = vector.shape_cast %22 : vector<16x32xbf16> to vector<1x16x32xbf16>
    %27 = vector.shape_cast %23 : vector<16x32xbf16> to vector<1x16x32xbf16>
    %28 = vector.shape_cast %24 : vector<16x32xbf16> to vector<1x16x32xbf16>
    %29 = vector.shape_cast %25 : vector<16x32xbf16> to vector<1x16x32xbf16>
    %30 = tpu.concatenate %26, %27, %28, %29 in 0 : vector<1x16x32xbf16>, vector<1x16x32xbf16>, vector<1x16x32xbf16>, vector<1x16x32xbf16> -> vector<4x16x32xbf16>
    %31 = arith.truncf %13 : vector<32x128xf32> to vector<32x128xbf16>
    %32 = vector.extract_strided_slice %31 {offsets = [0, 0], sizes = [32, 32], strides = [1, 1]} : vector<32x128xbf16> to vector<32x32xbf16>
    %33 = vector.extract_strided_slice %31 {offsets = [0, 32], sizes = [32, 32], strides = [1, 1]} : vector<32x128xbf16> to vector<32x32xbf16>
    %34 = vector.extract_strided_slice %31 {offsets = [0, 64], sizes = [32, 32], strides = [1, 1]} : vector<32x128xbf16> to vector<32x32xbf16>
    %35 = vector.extract_strided_slice %31 {offsets = [0, 96], sizes = [32, 32], strides = [1, 1]} : vector<32x128xbf16> to vector<32x32xbf16>
    %36 = vector.shape_cast %32 : vector<32x32xbf16> to vector<1x32x32xbf16>
    %37 = vector.shape_cast %33 : vector<32x32xbf16> to vector<1x32x32xbf16>
    %38 = vector.shape_cast %34 : vector<32x32xbf16> to vector<1x32x32xbf16>
    %39 = vector.shape_cast %35 : vector<32x32xbf16> to vector<1x32x32xbf16>
    %40 = tpu.concatenate %36, %37, %38, %39 in 0 : vector<1x32x32xbf16>, vector<1x32x32xbf16>, vector<1x32x32xbf16>, vector<1x32x32xbf16> -> vector<4x32x32xbf16>
    %41 = arith.truncf %20 : vector<32x128xf32> to vector<32x128xbf16>
    %42 = vector.extract_strided_slice %41 {offsets = [0, 0], sizes = [32, 32], strides = [1, 1]} : vector<32x128xbf16> to vector<32x32xbf16>
    %43 = vector.extract_strided_slice %41 {offsets = [0, 32], sizes = [32, 32], strides = [1, 1]} : vector<32x128xbf16> to vector<32x32xbf16>
    %44 = vector.extract_strided_slice %41 {offsets = [0, 64], sizes = [32, 32], strides = [1, 1]} : vector<32x128xbf16> to vector<32x32xbf16>
    %45 = vector.extract_strided_slice %41 {offsets = [0, 96], sizes = [32, 32], strides = [1, 1]} : vector<32x128xbf16> to vector<32x32xbf16>
    %46 = vector.shape_cast %42 : vector<32x32xbf16> to vector<1x32x32xbf16>
    %47 = vector.shape_cast %43 : vector<32x32xbf16> to vector<1x32x32xbf16>
    %48 = vector.shape_cast %44 : vector<32x32xbf16> to vector<1x32x32xbf16>
    %49 = vector.shape_cast %45 : vector<32x32xbf16> to vector<1x32x32xbf16>
    %50 = tpu.concatenate %46, %47, %48, %49 in 0 : vector<1x32x32xbf16>, vector<1x32x32xbf16>, vector<1x32x32xbf16>, vector<1x32x32xbf16> -> vector<4x32x32xbf16>
    "tpu.trace_start"() <{level = 10 : i32, message = "hqd,hkd->hqk"}> : () -> ()
    %cst_22 = arith.constant dense<0.000000e+00> : vector<4x16x32xf32>
    %51 = tpu.matmul %30, %40, %cst_22 {dimension_numbers = #tpu.dot_dimension_numbers<[2], [2], [1], [1], [0, 0, 0, 1, 1, 1], [0], [0]>} : vector<4x16x32xbf16>, vector<4x32x32xbf16>, vector<4x16x32xf32> -> vector<4x16x32xf32>
    "tpu.trace_stop"() : () -> ()
    %cst_23 = arith.constant 0.176776692 : f32
    %52 = vector.broadcast %cst_23 : f32 to vector<4x16x32xf32>
    %53 = arith.mulf %51, %52 : vector<4x16x32xf32>
    %cst_24 = arith.constant dense<0xFF800000> : vector<4x16xf32>
    %54 = vector.multi_reduction <maximumf>, %53, %cst_24 [2] : vector<4x16x32xf32> to vector<4x16xf32>
    %55 = vector.shape_cast %54 : vector<4x16xf32> to vector<4x16x1xf32>
    %56 = vector.broadcast %55 : vector<4x16x1xf32> to vector<4x16x32xf32>
    %57 = arith.subf %53, %56 : vector<4x16x32xf32>
    %58 = math.exp %57 : vector<4x16x32xf32>
    %cst_25 = arith.constant dense<0.000000e+00> : vector<4x16xf32>
    %59 = vector.multi_reduction <add>, %58, %cst_25 [2] : vector<4x16x32xf32> to vector<4x16xf32>
    %60 = vector.shape_cast %59 : vector<4x16xf32> to vector<4x16x1xf32>
    %61 = tpu.reciprocal %60 {approx = true} : vector<4x16x1xf32> -> vector<4x16x1xf32>
    %62 = vector.broadcast %61 : vector<4x16x1xf32> to vector<4x16x32xf32>
    %63 = arith.mulf %58, %62 : vector<4x16x32xf32>
    %64 = arith.truncf %63 : vector<4x16x32xf32> to vector<4x16x32xbf16>
    "tpu.trace_start"() <{level = 10 : i32, message = "hqk,hkd->hqd"}> : () -> ()
    %cst_26 = arith.constant dense<0.000000e+00> : vector<4x16x32xf32>
    %65 = tpu.matmul %64, %50, %cst_26 {dimension_numbers = #tpu.dot_dimension_numbers<[2], [1], [1], [2], [0, 0, 0, 1, 1, 2], [0], [0]>} : vector<4x16x32xbf16>, vector<4x32x32xbf16>, vector<4x16x32xf32> -> vector<4x16x32xf32>
    "tpu.trace_stop"() : () -> ()
    %66 = arith.truncf %65 : vector<4x16x32xf32> to vector<4x16x32xbf16>
    %c0_27 = arith.constant 0 : index
    %c0_28 = arith.constant 0 : index
    %c0_29 = arith.constant 0 : index
    %67 = vector.load %arg13[%c0_27, %c0_28, %c0_29] : memref<4x32x128xbf16, #tpu.memory_space<vmem>>, vector<4x32x128xbf16>
    "tpu.trace_start"() <{level = 10 : i32, message = "hqd,hdo->hqo"}> : () -> ()
    %cst_30 = arith.constant dense<0.000000e+00> : vector<4x16x128xf32>
    %68 = tpu.matmul %66, %67, %cst_30 {dimension_numbers = #tpu.dot_dimension_numbers<[2], [1], [1], [2], [0, 0, 0, 1, 1, 2], [0], [0]>} : vector<4x16x32xbf16>, vector<4x32x128xbf16>, vector<4x16x128xf32> -> vector<4x16x128xf32>
    "tpu.trace_stop"() : () -> ()
    %69 = vector.extract_strided_slice %68 {offsets = [0, 0, 0], sizes = [1, 16, 128], strides = [1, 1, 1]} : vector<4x16x128xf32> to vector<1x16x128xf32>
    %70 = vector.shape_cast %69 : vector<1x16x128xf32> to vector<16x128xf32>
    %71 = vector.extract_strided_slice %68 {offsets = [1, 0, 0], sizes = [1, 16, 128], strides = [1, 1, 1]} : vector<4x16x128xf32> to vector<1x16x128xf32>
    %72 = vector.shape_cast %71 : vector<1x16x128xf32> to vector<16x128xf32>
    %73 = arith.addf %70, %72 : vector<16x128xf32>
    %74 = vector.extract_strided_slice %68 {offsets = [2, 0, 0], sizes = [1, 16, 128], strides = [1, 1, 1]} : vector<4x16x128xf32> to vector<1x16x128xf32>
    %75 = vector.shape_cast %74 : vector<1x16x128xf32> to vector<16x128xf32>
    %76 = arith.addf %73, %75 : vector<16x128xf32>
    %77 = vector.extract_strided_slice %68 {offsets = [3, 0, 0], sizes = [1, 16, 128], strides = [1, 1, 1]} : vector<4x16x128xf32> to vector<1x16x128xf32>
    %78 = vector.shape_cast %77 : vector<1x16x128xf32> to vector<16x128xf32>
    %79 = arith.addf %76, %78 : vector<16x128xf32>
    %c0_31 = arith.constant 0 : index
    %c0_32 = arith.constant 0 : index
    %80 = vector.load %arg14[%c0_31, %c0_32] : memref<1x128xf32, #tpu.memory_space<vmem>>, vector<1x128xf32>
    %81 = vector.broadcast %80 : vector<1x128xf32> to vector<16x128xf32>
    %82 = arith.addf %79, %81 : vector<16x128xf32>
    %c0_33 = arith.constant 0 : index
    %c0_34 = arith.constant 0 : index
    %83 = vector.load %arg16[%c0_33, %c0_34] : memref<16x128xf32, #tpu.memory_space<vmem>>, vector<16x128xf32>
    tpu.vector_store %arg16[%c0_33, %c0_34], %82 {strides = array<i32>} : memref<16x128xf32, #tpu.memory_space<vmem>>, vector<16x128xf32>,
    %c0_i32 = arith.constant 0 : i32
    %84 = arith.index_cast %c0_i32 : i32 to index
    %85 = memref.load %arg3[%84] : memref<32xf32, #tpu.memory_space<smem>>
    %86 = arith.index_cast %c0_i32 : i32 to index
    %87 = memref.load %arg1[%86] : memref<32xi32, #tpu.memory_space<smem>>
    %88 = arith.index_cast %87 : i32 to index
    %c0_35 = arith.constant 0 : index
    %89 = vector.load %arg16[%88, %c0_35] : memref<16x128xf32, #tpu.memory_space<vmem>>, vector<1x128xf32>
    %90 = arith.index_cast %c0_i32 : i32 to index
    %91 = memref.load %arg2[%90] : memref<32xi32, #tpu.memory_space<smem>>
    %92 = arith.index_cast %91 : i32 to index
    %c0_36 = arith.constant 0 : index
    %93 = vector.load %arg16[%92, %c0_36] : memref<16x128xf32, #tpu.memory_space<vmem>>, vector<1x128xf32>
    %cst_37 = arith.constant 1.000000e+00 : f32
    %94 = arith.subf %cst_37, %85 : f32
    %95 = vector.broadcast %94 : f32 to vector<1x128xf32>
    %96 = arith.mulf %95, %89 : vector<1x128xf32>
    %97 = vector.broadcast %85 : f32 to vector<1x128xf32>
    %98 = arith.mulf %97, %93 : vector<1x128xf32>
    %99 = arith.addf %96, %98 : vector<1x128xf32>
    %c0_38 = arith.constant 0 : index
    %100 = arith.index_cast %c0_i32 : i32 to index
    %c0_39 = arith.constant 0 : index
    %101 = vector.load %arg15[%c0_38, %100, %c0_39] : memref<1x32x128xf32, #tpu.memory_space<vmem>>, vector<1x1x128xf32>
    %102 = vector.shape_cast %101 : vector<1x1x128xf32> to vector<1x128xf32>
    %103 = vector.shape_cast %99 : vector<1x128xf32> to vector<1x1x128xf32>
    tpu.vector_store %arg15[%c0_38, %100, %c0_39], %103 {strides = array<i32>} : memref<1x32x128xf32, #tpu.memory_space<vmem>>, vector<1x1x128xf32>,
    %c1_i32 = arith.constant 1 : i32
    %104 = arith.index_cast %c1_i32 : i32 to index
    %105 = memref.load %arg3[%104] : memref<32xf32, #tpu.memory_space<smem>>
    %106 = arith.index_cast %c1_i32 : i32 to index
    %107 = memref.load %arg1[%106] : memref<32xi32, #tpu.memory_space<smem>>
    %108 = arith.index_cast %107 : i32 to index
    %c0_40 = arith.constant 0 : index
    %109 = vector.load %arg16[%108, %c0_40] : memref<16x128xf32, #tpu.memory_space<vmem>>, vector<1x128xf32>
    %110 = arith.index_cast %c1_i32 : i32 to index
    %111 = memref.load %arg2[%110] : memref<32xi32, #tpu.memory_space<smem>>
    %112 = arith.index_cast %111 : i32 to index
    %c0_41 = arith.constant 0 : index
    %113 = vector.load %arg16[%112, %c0_41] : memref<16x128xf32, #tpu.memory_space<vmem>>, vector<1x128xf32>
    %cst_42 = arith.constant 1.000000e+00 : f32
    %114 = arith.subf %cst_42, %105 : f32
    %115 = vector.broadcast %114 : f32 to vector<1x128xf32>
    %116 = arith.mulf %115, %109 : vector<1x128xf32>
    %117 = vector.broadcast %105 : f32 to vector<1x128xf32>
    %118 = arith.mulf %117, %113 : vector<1x128xf32>
    %119 = arith.addf %116, %118 : vector<1x128xf32>
    %c0_43 = arith.constant 0 : index
    %120 = arith.index_cast %c1_i32 : i32 to index
    %c0_44 = arith.constant 0 : index
    %121 = vector.load %arg15[%c0_43, %120, %c0_44] : memref<1x32x128xf32, #tpu.memory_space<vmem>>, vector<1x1x128xf32>
    %122 = vector.shape_cast %121 : vector<1x1x128xf32> to vector<1x128xf32>
    %123 = vector.shape_cast %119 : vector<1x128xf32> to vector<1x1x128xf32>
    tpu.vector_store %arg15[%c0_43, %120, %c0_44], %123 {strides = array<i32>} : memref<1x32x128xf32, #tpu.memory_space<vmem>>, vector<1x1x128xf32>,
    %c2_i32 = arith.constant 2 : i32
    %124 = arith.index_cast %c2_i32 : i32 to index
    %125 = memref.load %arg3[%124] : memref<32xf32, #tpu.memory_space<smem>>
    %126 = arith.index_cast %c2_i32 : i32 to index
    %127 = memref.load %arg1[%126] : memref<32xi32, #tpu.memory_space<smem>>
    %128 = arith.index_cast %127 : i32 to index
    %c0_45 = arith.constant 0 : index
    %129 = vector.load %arg16[%128, %c0_45] : memref<16x128xf32, #tpu.memory_space<vmem>>, vector<1x128xf32>
    %130 = arith.index_cast %c2_i32 : i32 to index
    %131 = memref.load %arg2[%130] : memref<32xi32, #tpu.memory_space<smem>>
    %132 = arith.index_cast %131 : i32 to index
    %c0_46 = arith.constant 0 : index
    %133 = vector.load %arg16[%132, %c0_46] : memref<16x128xf32, #tpu.memory_space<vmem>>, vector<1x128xf32>
    %cst_47 = arith.constant 1.000000e+00 : f32
    %134 = arith.subf %cst_47, %125 : f32
    %135 = vector.broadcast %134 : f32 to vector<1x128xf32>
    %136 = arith.mulf %135, %129 : vector<1x128xf32>
    %137 = vector.broadcast %125 : f32 to vector<1x128xf32>
    %138 = arith.mulf %137, %133 : vector<1x128xf32>
    %139 = arith.addf %136, %138 : vector<1x128xf32>
    %c0_48 = arith.constant 0 : index
    %140 = arith.index_cast %c2_i32 : i32 to index
    %c0_49 = arith.constant 0 : index
    %141 = vector.load %arg15[%c0_48, %140, %c0_49] : memref<1x32x128xf32, #tpu.memory_space<vmem>>, vector<1x1x128xf32>
    %142 = vector.shape_cast %141 : vector<1x1x128xf32> to vector<1x128xf32>
    %143 = vector.shape_cast %139 : vector<1x128xf32> to vector<1x1x128xf32>
    tpu.vector_store %arg15[%c0_48, %140, %c0_49], %143 {strides = array<i32>} : memref<1x32x128xf32, #tpu.memory_space<vmem>>, vector<1x1x128xf32>,
    %c3_i32 = arith.constant 3 : i32
    %144 = arith.index_cast %c3_i32 : i32 to index
    %145 = memref.load %arg3[%144] : memref<32xf32, #tpu.memory_space<smem>>
    %146 = arith.index_cast %c3_i32 : i32 to index
    %147 = memref.load %arg1[%146] : memref<32xi32, #tpu.memory_space<smem>>
    %148 = arith.index_cast %147 : i32 to index
    %c0_50 = arith.constant 0 : index
    %149 = vector.load %arg16[%148, %c0_50] : memref<16x128xf32, #tpu.memory_space<vmem>>, vector<1x128xf32>
    %150 = arith.index_cast %c3_i32 : i32 to index
    %151 = memref.load %arg2[%150] : memref<32xi32, #tpu.memory_space<smem>>
    %152 = arith.index_cast %151 : i32 to index
    %c0_51 = arith.constant 0 : index
    %153 = vector.load %arg16[%152, %c0_51] : memref<16x128xf32, #tpu.memory_space<vmem>>, vector<1x128xf32>
    %cst_52 = arith.constant 1.000000e+00 : f32
    %154 = arith.subf %cst_52, %145 : f32
    %155 = vector.broadcast %154 : f32 to vector<1x128xf32>
    %156 = arith.mulf %155, %149 : vector<1x128xf32>
    %157 = vector.broadcast %145 : f32 to vector<1x128xf32>
    %158 = arith.mulf %157, %153 : vector<1x128xf32>
    %159 = arith.addf %156, %158 : vector<1x128xf32>
    %c0_53 = arith.constant 0 : index
    %160 = arith.index_cast %c3_i32 : i32 to index
    %c0_54 = arith.constant 0 : index
    %161 = vector.load %arg15[%c0_53, %160, %c0_54] : memref<1x32x128xf32, #tpu.memory_space<vmem>>, vector<1x1x128xf32>
    %162 = vector.shape_cast %161 : vector<1x1x128xf32> to vector<1x128xf32>
    %163 = vector.shape_cast %159 : vector<1x128xf32> to vector<1x1x128xf32>
    tpu.vector_store %arg15[%c0_53, %160, %c0_54], %163 {strides = array<i32>} : memref<1x32x128xf32, #tpu.memory_space<vmem>>, vector<1x1x128xf32>,
    %c4_i32 = arith.constant 4 : i32
    %164 = arith.index_cast %c4_i32 : i32 to index
    %165 = memref.load %arg3[%164] : memref<32xf32, #tpu.memory_space<smem>>
    %166 = arith.index_cast %c4_i32 : i32 to index
    %167 = memref.load %arg1[%166] : memref<32xi32, #tpu.memory_space<smem>>
    %168 = arith.index_cast %167 : i32 to index
    %c0_55 = arith.constant 0 : index
    %169 = vector.load %arg16[%168, %c0_55] : memref<16x128xf32, #tpu.memory_space<vmem>>, vector<1x128xf32>
    %170 = arith.index_cast %c4_i32 : i32 to index
    %171 = memref.load %arg2[%170] : memref<32xi32, #tpu.memory_space<smem>>
    %172 = arith.index_cast %171 : i32 to index
    %c0_56 = arith.constant 0 : index
    %173 = vector.load %arg16[%172, %c0_56] : memref<16x128xf32, #tpu.memory_space<vmem>>, vector<1x128xf32>
    %cst_57 = arith.constant 1.000000e+00 : f32
    %174 = arith.subf %cst_57, %165 : f32
    %175 = vector.broadcast %174 : f32 to vector<1x128xf32>
    %176 = arith.mulf %175, %169 : vector<1x128xf32>
    %177 = vector.broadcast %165 : f32 to vector<1x128xf32>
    %178 = arith.mulf %177, %173 : vector<1x128xf32>
    %179 = arith.addf %176, %178 : vector<1x128xf32>
    %c0_58 = arith.constant 0 : index
    %180 = arith.index_cast %c4_i32 : i32 to index
    %c0_59 = arith.constant 0 : index
    %181 = vector.load %arg15[%c0_58, %180, %c0_59] : memref<1x32x128xf32, #tpu.memory_space<vmem>>, vector<1x1x128xf32>
    %182 = vector.shape_cast %181 : vector<1x1x128xf32> to vector<1x128xf32>
    %183 = vector.shape_cast %179 : vector<1x128xf32> to vector<1x1x128xf32>
    tpu.vector_store %arg15[%c0_58, %180, %c0_59], %183 {strides = array<i32>} : memref<1x32x128xf32, #tpu.memory_space<vmem>>, vector<1x1x128xf32>,
    %c5_i32 = arith.constant 5 : i32
    %184 = arith.index_cast %c5_i32 : i32 to index
    %185 = memref.load %arg3[%184] : memref<32xf32, #tpu.memory_space<smem>>
    %186 = arith.index_cast %c5_i32 : i32 to index
    %187 = memref.load %arg1[%186] : memref<32xi32, #tpu.memory_space<smem>>
    %188 = arith.index_cast %187 : i32 to index
    %c0_60 = arith.constant 0 : index
    %189 = vector.load %arg16[%188, %c0_60] : memref<16x128xf32, #tpu.memory_space<vmem>>, vector<1x128xf32>
    %190 = arith.index_cast %c5_i32 : i32 to index
    %191 = memref.load %arg2[%190] : memref<32xi32, #tpu.memory_space<smem>>
    %192 = arith.index_cast %191 : i32 to index
    %c0_61 = arith.constant 0 : index
    %193 = vector.load %arg16[%192, %c0_61] : memref<16x128xf32, #tpu.memory_space<vmem>>, vector<1x128xf32>
    %cst_62 = arith.constant 1.000000e+00 : f32
    %194 = arith.subf %cst_62, %185 : f32
    %195 = vector.broadcast %194 : f32 to vector<1x128xf32>
    %196 = arith.mulf %195, %189 : vector<1x128xf32>
    %197 = vector.broadcast %185 : f32 to vector<1x128xf32>
    %198 = arith.mulf %197, %193 : vector<1x128xf32>
    %199 = arith.addf %196, %198 : vector<1x128xf32>
    %c0_63 = arith.constant 0 : index
    %200 = arith.index_cast %c5_i32 : i32 to index
    %c0_64 = arith.constant 0 : index
    %201 = vector.load %arg15[%c0_63, %200, %c0_64] : memref<1x32x128xf32, #tpu.memory_space<vmem>>, vector<1x1x128xf32>
    %202 = vector.shape_cast %201 : vector<1x1x128xf32> to vector<1x128xf32>
    %203 = vector.shape_cast %199 : vector<1x128xf32> to vector<1x1x128xf32>
    tpu.vector_store %arg15[%c0_63, %200, %c0_64], %203 {strides = array<i32>} : memref<1x32x128xf32, #tpu.memory_space<vmem>>, vector<1x1x128xf32>,
    %c6_i32 = arith.constant 6 : i32
    %204 = arith.index_cast %c6_i32 : i32 to index
    %205 = memref.load %arg3[%204] : memref<32xf32, #tpu.memory_space<smem>>
    %206 = arith.index_cast %c6_i32 : i32 to index
    %207 = memref.load %arg1[%206] : memref<32xi32, #tpu.memory_space<smem>>
    %208 = arith.index_cast %207 : i32 to index
    %c0_65 = arith.constant 0 : index
    %209 = vector.load %arg16[%208, %c0_65] : memref<16x128xf32, #tpu.memory_space<vmem>>, vector<1x128xf32>
    %210 = arith.index_cast %c6_i32 : i32 to index
    %211 = memref.load %arg2[%210] : memref<32xi32, #tpu.memory_space<smem>>
    %212 = arith.index_cast %211 : i32 to index
    %c0_66 = arith.constant 0 : index
    %213 = vector.load %arg16[%212, %c0_66] : memref<16x128xf32, #tpu.memory_space<vmem>>, vector<1x128xf32>
    %cst_67 = arith.constant 1.000000e+00 : f32
    %214 = arith.subf %cst_67, %205 : f32
    %215 = vector.broadcast %214 : f32 to vector<1x128xf32>
    %216 = arith.mulf %215, %209 : vector<1x128xf32>
    %217 = vector.broadcast %205 : f32 to vector<1x128xf32>
    %218 = arith.mulf %217, %213 : vector<1x128xf32>
    %219 = arith.addf %216, %218 : vector<1x128xf32>
    %c0_68 = arith.constant 0 : index
    %220 = arith.index_cast %c6_i32 : i32 to index
    %c0_69 = arith.constant 0 : index
    %221 = vector.load %arg15[%c0_68, %220, %c0_69] : memref<1x32x128xf32, #tpu.memory_space<vmem>>, vector<1x1x128xf32>
    %222 = vector.shape_cast %221 : vector<1x1x128xf32> to vector<1x128xf32>
    %223 = vector.shape_cast %219 : vector<1x128xf32> to vector<1x1x128xf32>
    tpu.vector_store %arg15[%c0_68, %220, %c0_69], %223 {strides = array<i32>} : memref<1x32x128xf32, #tpu.memory_space<vmem>>, vector<1x1x128xf32>,
    %c7_i32 = arith.constant 7 : i32
    %224 = arith.index_cast %c7_i32 : i32 to index
    %225 = memref.load %arg3[%224] : memref<32xf32, #tpu.memory_space<smem>>
    %226 = arith.index_cast %c7_i32 : i32 to index
    %227 = memref.load %arg1[%226] : memref<32xi32, #tpu.memory_space<smem>>
    %228 = arith.index_cast %227 : i32 to index
    %c0_70 = arith.constant 0 : index
    %229 = vector.load %arg16[%228, %c0_70] : memref<16x128xf32, #tpu.memory_space<vmem>>, vector<1x128xf32>
    %230 = arith.index_cast %c7_i32 : i32 to index
    %231 = memref.load %arg2[%230] : memref<32xi32, #tpu.memory_space<smem>>
    %232 = arith.index_cast %231 : i32 to index
    %c0_71 = arith.constant 0 : index
    %233 = vector.load %arg16[%232, %c0_71] : memref<16x128xf32, #tpu.memory_space<vmem>>, vector<1x128xf32>
    %cst_72 = arith.constant 1.000000e+00 : f32
    %234 = arith.subf %cst_72, %225 : f32
    %235 = vector.broadcast %234 : f32 to vector<1x128xf32>
    %236 = arith.mulf %235, %229 : vector<1x128xf32>
    %237 = vector.broadcast %225 : f32 to vector<1x128xf32>
    %238 = arith.mulf %237, %233 : vector<1x128xf32>
    %239 = arith.addf %236, %238 : vector<1x128xf32>
    %c0_73 = arith.constant 0 : index
    %240 = arith.index_cast %c7_i32 : i32 to index
    %c0_74 = arith.constant 0 : index
    %241 = vector.load %arg15[%c0_73, %240, %c0_74] : memref<1x32x128xf32, #tpu.memory_space<vmem>>, vector<1x1x128xf32>
    %242 = vector.shape_cast %241 : vector<1x1x128xf32> to vector<1x128xf32>
    %243 = vector.shape_cast %239 : vector<1x128xf32> to vector<1x1x128xf32>
    tpu.vector_store %arg15[%c0_73, %240, %c0_74], %243 {strides = array<i32>} : memref<1x32x128xf32, #tpu.memory_space<vmem>>, vector<1x1x128xf32>,
    %c8_i32 = arith.constant 8 : i32
    %244 = arith.index_cast %c8_i32 : i32 to index
    %245 = memref.load %arg3[%244] : memref<32xf32, #tpu.memory_space<smem>>
    %246 = arith.index_cast %c8_i32 : i32 to index
    %247 = memref.load %arg1[%246] : memref<32xi32, #tpu.memory_space<smem>>
    %248 = arith.index_cast %247 : i32 to index
    %c0_75 = arith.constant 0 : index
    %249 = vector.load %arg16[%248, %c0_75] : memref<16x128xf32, #tpu.memory_space<vmem>>, vector<1x128xf32>
    %250 = arith.index_cast %c8_i32 : i32 to index
    %251 = memref.load %arg2[%250] : memref<32xi32, #tpu.memory_space<smem>>
    %252 = arith.index_cast %251 : i32 to index
    %c0_76 = arith.constant 0 : index
    %253 = vector.load %arg16[%252, %c0_76] : memref<16x128xf32, #tpu.memory_space<vmem>>, vector<1x128xf32>
    %cst_77 = arith.constant 1.000000e+00 : f32
    %254 = arith.subf %cst_77, %245 : f32
    %255 = vector.broadcast %254 : f32 to vector<1x128xf32>
    %256 = arith.mulf %255, %249 : vector<1x128xf32>
    %257 = vector.broadcast %245 : f32 to vector<1x128xf32>
    %258 = arith.mulf %257, %253 : vector<1x128xf32>
    %259 = arith.addf %256, %258 : vector<1x128xf32>
    %c0_78 = arith.constant 0 : index
    %260 = arith.index_cast %c8_i32 : i32 to index
    %c0_79 = arith.constant 0 : index
    %261 = vector.load %arg15[%c0_78, %260, %c0_79] : memref<1x32x128xf32, #tpu.memory_space<vmem>>, vector<1x1x128xf32>
    %262 = vector.shape_cast %261 : vector<1x1x128xf32> to vector<1x128xf32>
    %263 = vector.shape_cast %259 : vector<1x128xf32> to vector<1x1x128xf32>
    tpu.vector_store %arg15[%c0_78, %260, %c0_79], %263 {strides = array<i32>} : memref<1x32x128xf32, #tpu.memory_space<vmem>>, vector<1x1x128xf32>,
    %c9_i32 = arith.constant 9 : i32
    %264 = arith.index_cast %c9_i32 : i32 to index
    %265 = memref.load %arg3[%264] : memref<32xf32, #tpu.memory_space<smem>>
    %266 = arith.index_cast %c9_i32 : i32 to index
    %267 = memref.load %arg1[%266] : memref<32xi32, #tpu.memory_space<smem>>
    %268 = arith.index_cast %267 : i32 to index
    %c0_80 = arith.constant 0 : index
    %269 = vector.load %arg16[%268, %c0_80] : memref<16x128xf32, #tpu.memory_space<vmem>>, vector<1x128xf32>
    %270 = arith.index_cast %c9_i32 : i32 to index
    %271 = memref.load %arg2[%270] : memref<32xi32, #tpu.memory_space<smem>>
    %272 = arith.index_cast %271 : i32 to index
    %c0_81 = arith.constant 0 : index
    %273 = vector.load %arg16[%272, %c0_81] : memref<16x128xf32, #tpu.memory_space<vmem>>, vector<1x128xf32>
    %cst_82 = arith.constant 1.000000e+00 : f32
    %274 = arith.subf %cst_82, %265 : f32
    %275 = vector.broadcast %274 : f32 to vector<1x128xf32>
    %276 = arith.mulf %275, %269 : vector<1x128xf32>
    %277 = vector.broadcast %265 : f32 to vector<1x128xf32>
    %278 = arith.mulf %277, %273 : vector<1x128xf32>
    %279 = arith.addf %276, %278 : vector<1x128xf32>
    %c0_83 = arith.constant 0 : index
    %280 = arith.index_cast %c9_i32 : i32 to index
    %c0_84 = arith.constant 0 : index
    %281 = vector.load %arg15[%c0_83, %280, %c0_84] : memref<1x32x128xf32, #tpu.memory_space<vmem>>, vector<1x1x128xf32>
    %282 = vector.shape_cast %281 : vector<1x1x128xf32> to vector<1x128xf32>
    %283 = vector.shape_cast %279 : vector<1x128xf32> to vector<1x1x128xf32>
    tpu.vector_store %arg15[%c0_83, %280, %c0_84], %283 {strides = array<i32>} : memref<1x32x128xf32, #tpu.memory_space<vmem>>, vector<1x1x128xf32>,
    %c10_i32 = arith.constant 10 : i32
    %284 = arith.index_cast %c10_i32 : i32 to index
    %285 = memref.load %arg3[%284] : memref<32xf32, #tpu.memory_space<smem>>
    %286 = arith.index_cast %c10_i32 : i32 to index
    %287 = memref.load %arg1[%286] : memref<32xi32, #tpu.memory_space<smem>>
    %288 = arith.index_cast %287 : i32 to index
    %c0_85 = arith.constant 0 : index
    %289 = vector.load %arg16[%288, %c0_85] : memref<16x128xf32, #tpu.memory_space<vmem>>, vector<1x128xf32>
    %290 = arith.index_cast %c10_i32 : i32 to index
    %291 = memref.load %arg2[%290] : memref<32xi32, #tpu.memory_space<smem>>
    %292 = arith.index_cast %291 : i32 to index
    %c0_86 = arith.constant 0 : index
    %293 = vector.load %arg16[%292, %c0_86] : memref<16x128xf32, #tpu.memory_space<vmem>>, vector<1x128xf32>
    %cst_87 = arith.constant 1.000000e+00 : f32
    %294 = arith.subf %cst_87, %285 : f32
    %295 = vector.broadcast %294 : f32 to vector<1x128xf32>
    %296 = arith.mulf %295, %289 : vector<1x128xf32>
    %297 = vector.broadcast %285 : f32 to vector<1x128xf32>
    %298 = arith.mulf %297, %293 : vector<1x128xf32>
    %299 = arith.addf %296, %298 : vector<1x128xf32>
    %c0_88 = arith.constant 0 : index
    %300 = arith.index_cast %c10_i32 : i32 to index
    %c0_89 = arith.constant 0 : index
    %301 = vector.load %arg15[%c0_88, %300, %c0_89] : memref<1x32x128xf32, #tpu.memory_space<vmem>>, vector<1x1x128xf32>
    %302 = vector.shape_cast %301 : vector<1x1x128xf32> to vector<1x128xf32>
    %303 = vector.shape_cast %299 : vector<1x128xf32> to vector<1x1x128xf32>
    tpu.vector_store %arg15[%c0_88, %300, %c0_89], %303 {strides = array<i32>} : memref<1x32x128xf32, #tpu.memory_space<vmem>>, vector<1x1x128xf32>,
    %c11_i32 = arith.constant 11 : i32
    %304 = arith.index_cast %c11_i32 : i32 to index
    %305 = memref.load %arg3[%304] : memref<32xf32, #tpu.memory_space<smem>>
    %306 = arith.index_cast %c11_i32 : i32 to index
    %307 = memref.load %arg1[%306] : memref<32xi32, #tpu.memory_space<smem>>
    %308 = arith.index_cast %307 : i32 to index
    %c0_90 = arith.constant 0 : index
    %309 = vector.load %arg16[%308, %c0_90] : memref<16x128xf32, #tpu.memory_space<vmem>>, vector<1x128xf32>
    %310 = arith.index_cast %c11_i32 : i32 to index
    %311 = memref.load %arg2[%310] : memref<32xi32, #tpu.memory_space<smem>>
    %312 = arith.index_cast %311 : i32 to index
    %c0_91 = arith.constant 0 : index
    %313 = vector.load %arg16[%312, %c0_91] : memref<16x128xf32, #tpu.memory_space<vmem>>, vector<1x128xf32>
    %cst_92 = arith.constant 1.000000e+00 : f32
    %314 = arith.subf %cst_92, %305 : f32
    %315 = vector.broadcast %314 : f32 to vector<1x128xf32>
    %316 = arith.mulf %315, %309 : vector<1x128xf32>
    %317 = vector.broadcast %305 : f32 to vector<1x128xf32>
    %318 = arith.mulf %317, %313 : vector<1x128xf32>
    %319 = arith.addf %316, %318 : vector<1x128xf32>
    %c0_93 = arith.constant 0 : index
    %320 = arith.index_cast %c11_i32 : i32 to index
    %c0_94 = arith.constant 0 : index
    %321 = vector.load %arg15[%c0_93, %320, %c0_94] : memref<1x32x128xf32, #tpu.memory_space<vmem>>, vector<1x1x128xf32>
    %322 = vector.shape_cast %321 : vector<1x1x128xf32> to vector<1x128xf32>
    %323 = vector.shape_cast %319 : vector<1x128xf32> to vector<1x1x128xf32>
    tpu.vector_store %arg15[%c0_93, %320, %c0_94], %323 {strides = array<i32>} : memref<1x32x128xf32, #tpu.memory_space<vmem>>, vector<1x1x128xf32>,
    %c12_i32 = arith.constant 12 : i32
    %324 = arith.index_cast %c12_i32 : i32 to index
    %325 = memref.load %arg3[%324] : memref<32xf32, #tpu.memory_space<smem>>
    %326 = arith.index_cast %c12_i32 : i32 to index
    %327 = memref.load %arg1[%326] : memref<32xi32, #tpu.memory_space<smem>>
    %328 = arith.index_cast %327 : i32 to index
    %c0_95 = arith.constant 0 : index
    %329 = vector.load %arg16[%328, %c0_95] : memref<16x128xf32, #tpu.memory_space<vmem>>, vector<1x128xf32>
    %330 = arith.index_cast %c12_i32 : i32 to index
    %331 = memref.load %arg2[%330] : memref<32xi32, #tpu.memory_space<smem>>
    %332 = arith.index_cast %331 : i32 to index
    %c0_96 = arith.constant 0 : index
    %333 = vector.load %arg16[%332, %c0_96] : memref<16x128xf32, #tpu.memory_space<vmem>>, vector<1x128xf32>
    %cst_97 = arith.constant 1.000000e+00 : f32
    %334 = arith.subf %cst_97, %325 : f32
    %335 = vector.broadcast %334 : f32 to vector<1x128xf32>
    %336 = arith.mulf %335, %329 : vector<1x128xf32>
    %337 = vector.broadcast %325 : f32 to vector<1x128xf32>
    %338 = arith.mulf %337, %333 : vector<1x128xf32>
    %339 = arith.addf %336, %338 : vector<1x128xf32>
    %c0_98 = arith.constant 0 : index
    %340 = arith.index_cast %c12_i32 : i32 to index
    %c0_99 = arith.constant 0 : index
    %341 = vector.load %arg15[%c0_98, %340, %c0_99] : memref<1x32x128xf32, #tpu.memory_space<vmem>>, vector<1x1x128xf32>
    %342 = vector.shape_cast %341 : vector<1x1x128xf32> to vector<1x128xf32>
    %343 = vector.shape_cast %339 : vector<1x128xf32> to vector<1x1x128xf32>
    tpu.vector_store %arg15[%c0_98, %340, %c0_99], %343 {strides = array<i32>} : memref<1x32x128xf32, #tpu.memory_space<vmem>>, vector<1x1x128xf32>,
    %c13_i32 = arith.constant 13 : i32
    %344 = arith.index_cast %c13_i32 : i32 to index
    %345 = memref.load %arg3[%344] : memref<32xf32, #tpu.memory_space<smem>>
    %346 = arith.index_cast %c13_i32 : i32 to index
    %347 = memref.load %arg1[%346] : memref<32xi32, #tpu.memory_space<smem>>
    %348 = arith.index_cast %347 : i32 to index
    %c0_100 = arith.constant 0 : index
    %349 = vector.load %arg16[%348, %c0_100] : memref<16x128xf32, #tpu.memory_space<vmem>>, vector<1x128xf32>
    %350 = arith.index_cast %c13_i32 : i32 to index
    %351 = memref.load %arg2[%350] : memref<32xi32, #tpu.memory_space<smem>>
    %352 = arith.index_cast %351 : i32 to index
    %c0_101 = arith.constant 0 : index
    %353 = vector.load %arg16[%352, %c0_101] : memref<16x128xf32, #tpu.memory_space<vmem>>, vector<1x128xf32>
    %cst_102 = arith.constant 1.000000e+00 : f32
    %354 = arith.subf %cst_102, %345 : f32
    %355 = vector.broadcast %354 : f32 to vector<1x128xf32>
    %356 = arith.mulf %355, %349 : vector<1x128xf32>
    %357 = vector.broadcast %345 : f32 to vector<1x128xf32>
    %358 = arith.mulf %357, %353 : vector<1x128xf32>
    %359 = arith.addf %356, %358 : vector<1x128xf32>
    %c0_103 = arith.constant 0 : index
    %360 = arith.index_cast %c13_i32 : i32 to index
    %c0_104 = arith.constant 0 : index
    %361 = vector.load %arg15[%c0_103, %360, %c0_104] : memref<1x32x128xf32, #tpu.memory_space<vmem>>, vector<1x1x128xf32>
    %362 = vector.shape_cast %361 : vector<1x1x128xf32> to vector<1x128xf32>
    %363 = vector.shape_cast %359 : vector<1x128xf32> to vector<1x1x128xf32>
    tpu.vector_store %arg15[%c0_103, %360, %c0_104], %363 {strides = array<i32>} : memref<1x32x128xf32, #tpu.memory_space<vmem>>, vector<1x1x128xf32>,
    %c14_i32 = arith.constant 14 : i32
    %364 = arith.index_cast %c14_i32 : i32 to index
    %365 = memref.load %arg3[%364] : memref<32xf32, #tpu.memory_space<smem>>
    %366 = arith.index_cast %c14_i32 : i32 to index
    %367 = memref.load %arg1[%366] : memref<32xi32, #tpu.memory_space<smem>>
    %368 = arith.index_cast %367 : i32 to index
    %c0_105 = arith.constant 0 : index
    %369 = vector.load %arg16[%368, %c0_105] : memref<16x128xf32, #tpu.memory_space<vmem>>, vector<1x128xf32>
    %370 = arith.index_cast %c14_i32 : i32 to index
    %371 = memref.load %arg2[%370] : memref<32xi32, #tpu.memory_space<smem>>
    %372 = arith.index_cast %371 : i32 to index
    %c0_106 = arith.constant 0 : index
    %373 = vector.load %arg16[%372, %c0_106] : memref<16x128xf32, #tpu.memory_space<vmem>>, vector<1x128xf32>
    %cst_107 = arith.constant 1.000000e+00 : f32
    %374 = arith.subf %cst_107, %365 : f32
    %375 = vector.broadcast %374 : f32 to vector<1x128xf32>
    %376 = arith.mulf %375, %369 : vector<1x128xf32>
    %377 = vector.broadcast %365 : f32 to vector<1x128xf32>
    %378 = arith.mulf %377, %373 : vector<1x128xf32>
    %379 = arith.addf %376, %378 : vector<1x128xf32>
    %c0_108 = arith.constant 0 : index
    %380 = arith.index_cast %c14_i32 : i32 to index
    %c0_109 = arith.constant 0 : index
    %381 = vector.load %arg15[%c0_108, %380, %c0_109] : memref<1x32x128xf32, #tpu.memory_space<vmem>>, vector<1x1x128xf32>
    %382 = vector.shape_cast %381 : vector<1x1x128xf32> to vector<1x128xf32>
    %383 = vector.shape_cast %379 : vector<1x128xf32> to vector<1x1x128xf32>
    tpu.vector_store %arg15[%c0_108, %380, %c0_109], %383 {strides = array<i32>} : memref<1x32x128xf32, #tpu.memory_space<vmem>>, vector<1x1x128xf32>,
    %c15_i32 = arith.constant 15 : i32
    %384 = arith.index_cast %c15_i32 : i32 to index
    %385 = memref.load %arg3[%384] : memref<32xf32, #tpu.memory_space<smem>>
    %386 = arith.index_cast %c15_i32 : i32 to index
    %387 = memref.load %arg1[%386] : memref<32xi32, #tpu.memory_space<smem>>
    %388 = arith.index_cast %387 : i32 to index
    %c0_110 = arith.constant 0 : index
    %389 = vector.load %arg16[%388, %c0_110] : memref<16x128xf32, #tpu.memory_space<vmem>>, vector<1x128xf32>
    %390 = arith.index_cast %c15_i32 : i32 to index
    %391 = memref.load %arg2[%390] : memref<32xi32, #tpu.memory_space<smem>>
    %392 = arith.index_cast %391 : i32 to index
    %c0_111 = arith.constant 0 : index
    %393 = vector.load %arg16[%392, %c0_111] : memref<16x128xf32, #tpu.memory_space<vmem>>, vector<1x128xf32>
    %cst_112 = arith.constant 1.000000e+00 : f32
    %394 = arith.subf %cst_112, %385 : f32
    %395 = vector.broadcast %394 : f32 to vector<1x128xf32>
    %396 = arith.mulf %395, %389 : vector<1x128xf32>
    %397 = vector.broadcast %385 : f32 to vector<1x128xf32>
    %398 = arith.mulf %397, %393 : vector<1x128xf32>
    %399 = arith.addf %396, %398 : vector<1x128xf32>
    %c0_113 = arith.constant 0 : index
    %400 = arith.index_cast %c15_i32 : i32 to index
    %c0_114 = arith.constant 0 : index
    %401 = vector.load %arg15[%c0_113, %400, %c0_114] : memref<1x32x128xf32, #tpu.memory_space<vmem>>, vector<1x1x128xf32>
    %402 = vector.shape_cast %401 : vector<1x1x128xf32> to vector<1x128xf32>
    %403 = vector.shape_cast %399 : vector<1x128xf32> to vector<1x1x128xf32>
    tpu.vector_store %arg15[%c0_113, %400, %c0_114], %403 {strides = array<i32>} : memref<1x32x128xf32, #tpu.memory_space<vmem>>, vector<1x1x128xf32>,
    %c16_i32 = arith.constant 16 : i32
    %404 = arith.index_cast %c16_i32 : i32 to index
    %405 = memref.load %arg3[%404] : memref<32xf32, #tpu.memory_space<smem>>
    %406 = arith.index_cast %c16_i32 : i32 to index
    %407 = memref.load %arg1[%406] : memref<32xi32, #tpu.memory_space<smem>>
    %408 = arith.index_cast %407 : i32 to index
    %c0_115 = arith.constant 0 : index
    %409 = vector.load %arg16[%408, %c0_115] : memref<16x128xf32, #tpu.memory_space<vmem>>, vector<1x128xf32>
    %410 = arith.index_cast %c16_i32 : i32 to index
    %411 = memref.load %arg2[%410] : memref<32xi32, #tpu.memory_space<smem>>
    %412 = arith.index_cast %411 : i32 to index
    %c0_116 = arith.constant 0 : index
    %413 = vector.load %arg16[%412, %c0_116] : memref<16x128xf32, #tpu.memory_space<vmem>>, vector<1x128xf32>
    %cst_117 = arith.constant 1.000000e+00 : f32
    %414 = arith.subf %cst_117, %405 : f32
    %415 = vector.broadcast %414 : f32 to vector<1x128xf32>
    %416 = arith.mulf %415, %409 : vector<1x128xf32>
    %417 = vector.broadcast %405 : f32 to vector<1x128xf32>
    %418 = arith.mulf %417, %413 : vector<1x128xf32>
    %419 = arith.addf %416, %418 : vector<1x128xf32>
    %c0_118 = arith.constant 0 : index
    %420 = arith.index_cast %c16_i32 : i32 to index
    %c0_119 = arith.constant 0 : index
    %421 = vector.load %arg15[%c0_118, %420, %c0_119] : memref<1x32x128xf32, #tpu.memory_space<vmem>>, vector<1x1x128xf32>
    %422 = vector.shape_cast %421 : vector<1x1x128xf32> to vector<1x128xf32>
    %423 = vector.shape_cast %419 : vector<1x128xf32> to vector<1x1x128xf32>
    tpu.vector_store %arg15[%c0_118, %420, %c0_119], %423 {strides = array<i32>} : memref<1x32x128xf32, #tpu.memory_space<vmem>>, vector<1x1x128xf32>,
    %c17_i32 = arith.constant 17 : i32
    %424 = arith.index_cast %c17_i32 : i32 to index
    %425 = memref.load %arg3[%424] : memref<32xf32, #tpu.memory_space<smem>>
    %426 = arith.index_cast %c17_i32 : i32 to index
    %427 = memref.load %arg1[%426] : memref<32xi32, #tpu.memory_space<smem>>
    %428 = arith.index_cast %427 : i32 to index
    %c0_120 = arith.constant 0 : index
    %429 = vector.load %arg16[%428, %c0_120] : memref<16x128xf32, #tpu.memory_space<vmem>>, vector<1x128xf32>
    %430 = arith.index_cast %c17_i32 : i32 to index
    %431 = memref.load %arg2[%430] : memref<32xi32, #tpu.memory_space<smem>>
    %432 = arith.index_cast %431 : i32 to index
    %c0_121 = arith.constant 0 : index
    %433 = vector.load %arg16[%432, %c0_121] : memref<16x128xf32, #tpu.memory_space<vmem>>, vector<1x128xf32>
    %cst_122 = arith.constant 1.000000e+00 : f32
    %434 = arith.subf %cst_122, %425 : f32
    %435 = vector.broadcast %434 : f32 to vector<1x128xf32>
    %436 = arith.mulf %435, %429 : vector<1x128xf32>
    %437 = vector.broadcast %425 : f32 to vector<1x128xf32>
    %438 = arith.mulf %437, %433 : vector<1x128xf32>
    %439 = arith.addf %436, %438 : vector<1x128xf32>
    %c0_123 = arith.constant 0 : index
    %440 = arith.index_cast %c17_i32 : i32 to index
    %c0_124 = arith.constant 0 : index
    %441 = vector.load %arg15[%c0_123, %440, %c0_124] : memref<1x32x128xf32, #tpu.memory_space<vmem>>, vector<1x1x128xf32>
    %442 = vector.shape_cast %441 : vector<1x1x128xf32> to vector<1x128xf32>
    %443 = vector.shape_cast %439 : vector<1x128xf32> to vector<1x1x128xf32>
    tpu.vector_store %arg15[%c0_123, %440, %c0_124], %443 {strides = array<i32>} : memref<1x32x128xf32, #tpu.memory_space<vmem>>, vector<1x1x128xf32>,
    %c18_i32 = arith.constant 18 : i32
    %444 = arith.index_cast %c18_i32 : i32 to index
    %445 = memref.load %arg3[%444] : memref<32xf32, #tpu.memory_space<smem>>
    %446 = arith.index_cast %c18_i32 : i32 to index
    %447 = memref.load %arg1[%446] : memref<32xi32, #tpu.memory_space<smem>>
    %448 = arith.index_cast %447 : i32 to index
    %c0_125 = arith.constant 0 : index
    %449 = vector.load %arg16[%448, %c0_125] : memref<16x128xf32, #tpu.memory_space<vmem>>, vector<1x128xf32>
    %450 = arith.index_cast %c18_i32 : i32 to index
    %451 = memref.load %arg2[%450] : memref<32xi32, #tpu.memory_space<smem>>
    %452 = arith.index_cast %451 : i32 to index
    %c0_126 = arith.constant 0 : index
    %453 = vector.load %arg16[%452, %c0_126] : memref<16x128xf32, #tpu.memory_space<vmem>>, vector<1x128xf32>
    %cst_127 = arith.constant 1.000000e+00 : f32
    %454 = arith.subf %cst_127, %445 : f32
    %455 = vector.broadcast %454 : f32 to vector<1x128xf32>
    %456 = arith.mulf %455, %449 : vector<1x128xf32>
    %457 = vector.broadcast %445 : f32 to vector<1x128xf32>
    %458 = arith.mulf %457, %453 : vector<1x128xf32>
    %459 = arith.addf %456, %458 : vector<1x128xf32>
    %c0_128 = arith.constant 0 : index
    %460 = arith.index_cast %c18_i32 : i32 to index
    %c0_129 = arith.constant 0 : index
    %461 = vector.load %arg15[%c0_128, %460, %c0_129] : memref<1x32x128xf32, #tpu.memory_space<vmem>>, vector<1x1x128xf32>
    %462 = vector.shape_cast %461 : vector<1x1x128xf32> to vector<1x128xf32>
    %463 = vector.shape_cast %459 : vector<1x128xf32> to vector<1x1x128xf32>
    tpu.vector_store %arg15[%c0_128, %460, %c0_129], %463 {strides = array<i32>} : memref<1x32x128xf32, #tpu.memory_space<vmem>>, vector<1x1x128xf32>,
    %c19_i32 = arith.constant 19 : i32
    %464 = arith.index_cast %c19_i32 : i32 to index
    %465 = memref.load %arg3[%464] : memref<32xf32, #tpu.memory_space<smem>>
    %466 = arith.index_cast %c19_i32 : i32 to index
    %467 = memref.load %arg1[%466] : memref<32xi32, #tpu.memory_space<smem>>
    %468 = arith.index_cast %467 : i32 to index
    %c0_130 = arith.constant 0 : index
    %469 = vector.load %arg16[%468, %c0_130] : memref<16x128xf32, #tpu.memory_space<vmem>>, vector<1x128xf32>
    %470 = arith.index_cast %c19_i32 : i32 to index
    %471 = memref.load %arg2[%470] : memref<32xi32, #tpu.memory_space<smem>>
    %472 = arith.index_cast %471 : i32 to index
    %c0_131 = arith.constant 0 : index
    %473 = vector.load %arg16[%472, %c0_131] : memref<16x128xf32, #tpu.memory_space<vmem>>, vector<1x128xf32>
    %cst_132 = arith.constant 1.000000e+00 : f32
    %474 = arith.subf %cst_132, %465 : f32
    %475 = vector.broadcast %474 : f32 to vector<1x128xf32>
    %476 = arith.mulf %475, %469 : vector<1x128xf32>
    %477 = vector.broadcast %465 : f32 to vector<1x128xf32>
    %478 = arith.mulf %477, %473 : vector<1x128xf32>
    %479 = arith.addf %476, %478 : vector<1x128xf32>
    %c0_133 = arith.constant 0 : index
    %480 = arith.index_cast %c19_i32 : i32 to index
    %c0_134 = arith.constant 0 : index
    %481 = vector.load %arg15[%c0_133, %480, %c0_134] : memref<1x32x128xf32, #tpu.memory_space<vmem>>, vector<1x1x128xf32>
    %482 = vector.shape_cast %481 : vector<1x1x128xf32> to vector<1x128xf32>
    %483 = vector.shape_cast %479 : vector<1x128xf32> to vector<1x1x128xf32>
    tpu.vector_store %arg15[%c0_133, %480, %c0_134], %483 {strides = array<i32>} : memref<1x32x128xf32, #tpu.memory_space<vmem>>, vector<1x1x128xf32>,
    %c20_i32 = arith.constant 20 : i32
    %484 = arith.index_cast %c20_i32 : i32 to index
    %485 = memref.load %arg3[%484] : memref<32xf32, #tpu.memory_space<smem>>
    %486 = arith.index_cast %c20_i32 : i32 to index
    %487 = memref.load %arg1[%486] : memref<32xi32, #tpu.memory_space<smem>>
    %488 = arith.index_cast %487 : i32 to index
    %c0_135 = arith.constant 0 : index
    %489 = vector.load %arg16[%488, %c0_135] : memref<16x128xf32, #tpu.memory_space<vmem>>, vector<1x128xf32>
    %490 = arith.index_cast %c20_i32 : i32 to index
    %491 = memref.load %arg2[%490] : memref<32xi32, #tpu.memory_space<smem>>
    %492 = arith.index_cast %491 : i32 to index
    %c0_136 = arith.constant 0 : index
    %493 = vector.load %arg16[%492, %c0_136] : memref<16x128xf32, #tpu.memory_space<vmem>>, vector<1x128xf32>
    %cst_137 = arith.constant 1.000000e+00 : f32
    %494 = arith.subf %cst_137, %485 : f32
    %495 = vector.broadcast %494 : f32 to vector<1x128xf32>
    %496 = arith.mulf %495, %489 : vector<1x128xf32>
    %497 = vector.broadcast %485 : f32 to vector<1x128xf32>
    %498 = arith.mulf %497, %493 : vector<1x128xf32>
    %499 = arith.addf %496, %498 : vector<1x128xf32>
    %c0_138 = arith.constant 0 : index
    %500 = arith.index_cast %c20_i32 : i32 to index
    %c0_139 = arith.constant 0 : index
    %501 = vector.load %arg15[%c0_138, %500, %c0_139] : memref<1x32x128xf32, #tpu.memory_space<vmem>>, vector<1x1x128xf32>
    %502 = vector.shape_cast %501 : vector<1x1x128xf32> to vector<1x128xf32>
    %503 = vector.shape_cast %499 : vector<1x128xf32> to vector<1x1x128xf32>
    tpu.vector_store %arg15[%c0_138, %500, %c0_139], %503 {strides = array<i32>} : memref<1x32x128xf32, #tpu.memory_space<vmem>>, vector<1x1x128xf32>,
    %c21_i32 = arith.constant 21 : i32
    %504 = arith.index_cast %c21_i32 : i32 to index
    %505 = memref.load %arg3[%504] : memref<32xf32, #tpu.memory_space<smem>>
    %506 = arith.index_cast %c21_i32 : i32 to index
    %507 = memref.load %arg1[%506] : memref<32xi32, #tpu.memory_space<smem>>
    %508 = arith.index_cast %507 : i32 to index
    %c0_140 = arith.constant 0 : index
    %509 = vector.load %arg16[%508, %c0_140] : memref<16x128xf32, #tpu.memory_space<vmem>>, vector<1x128xf32>
    %510 = arith.index_cast %c21_i32 : i32 to index
    %511 = memref.load %arg2[%510] : memref<32xi32, #tpu.memory_space<smem>>
    %512 = arith.index_cast %511 : i32 to index
    %c0_141 = arith.constant 0 : index
    %513 = vector.load %arg16[%512, %c0_141] : memref<16x128xf32, #tpu.memory_space<vmem>>, vector<1x128xf32>
    %cst_142 = arith.constant 1.000000e+00 : f32
    %514 = arith.subf %cst_142, %505 : f32
    %515 = vector.broadcast %514 : f32 to vector<1x128xf32>
    %516 = arith.mulf %515, %509 : vector<1x128xf32>
    %517 = vector.broadcast %505 : f32 to vector<1x128xf32>
    %518 = arith.mulf %517, %513 : vector<1x128xf32>
    %519 = arith.addf %516, %518 : vector<1x128xf32>
    %c0_143 = arith.constant 0 : index
    %520 = arith.index_cast %c21_i32 : i32 to index
    %c0_144 = arith.constant 0 : index
    %521 = vector.load %arg15[%c0_143, %520, %c0_144] : memref<1x32x128xf32, #tpu.memory_space<vmem>>, vector<1x1x128xf32>
    %522 = vector.shape_cast %521 : vector<1x1x128xf32> to vector<1x128xf32>
    %523 = vector.shape_cast %519 : vector<1x128xf32> to vector<1x1x128xf32>
    tpu.vector_store %arg15[%c0_143, %520, %c0_144], %523 {strides = array<i32>} : memref<1x32x128xf32, #tpu.memory_space<vmem>>, vector<1x1x128xf32>,
    %c22_i32 = arith.constant 22 : i32
    %524 = arith.index_cast %c22_i32 : i32 to index
    %525 = memref.load %arg3[%524] : memref<32xf32, #tpu.memory_space<smem>>
    %526 = arith.index_cast %c22_i32 : i32 to index
    %527 = memref.load %arg1[%526] : memref<32xi32, #tpu.memory_space<smem>>
    %528 = arith.index_cast %527 : i32 to index
    %c0_145 = arith.constant 0 : index
    %529 = vector.load %arg16[%528, %c0_145] : memref<16x128xf32, #tpu.memory_space<vmem>>, vector<1x128xf32>
    %530 = arith.index_cast %c22_i32 : i32 to index
    %531 = memref.load %arg2[%530] : memref<32xi32, #tpu.memory_space<smem>>
    %532 = arith.index_cast %531 : i32 to index
    %c0_146 = arith.constant 0 : index
    %533 = vector.load %arg16[%532, %c0_146] : memref<16x128xf32, #tpu.memory_space<vmem>>, vector<1x128xf32>
    %cst_147 = arith.constant 1.000000e+00 : f32
    %534 = arith.subf %cst_147, %525 : f32
    %535 = vector.broadcast %534 : f32 to vector<1x128xf32>
    %536 = arith.mulf %535, %529 : vector<1x128xf32>
    %537 = vector.broadcast %525 : f32 to vector<1x128xf32>
    %538 = arith.mulf %537, %533 : vector<1x128xf32>
    %539 = arith.addf %536, %538 : vector<1x128xf32>
    %c0_148 = arith.constant 0 : index
    %540 = arith.index_cast %c22_i32 : i32 to index
    %c0_149 = arith.constant 0 : index
    %541 = vector.load %arg15[%c0_148, %540, %c0_149] : memref<1x32x128xf32, #tpu.memory_space<vmem>>, vector<1x1x128xf32>
    %542 = vector.shape_cast %541 : vector<1x1x128xf32> to vector<1x128xf32>
    %543 = vector.shape_cast %539 : vector<1x128xf32> to vector<1x1x128xf32>
    tpu.vector_store %arg15[%c0_148, %540, %c0_149], %543 {strides = array<i32>} : memref<1x32x128xf32, #tpu.memory_space<vmem>>, vector<1x1x128xf32>,
    %c23_i32 = arith.constant 23 : i32
    %544 = arith.index_cast %c23_i32 : i32 to index
    %545 = memref.load %arg3[%544] : memref<32xf32, #tpu.memory_space<smem>>
    %546 = arith.index_cast %c23_i32 : i32 to index
    %547 = memref.load %arg1[%546] : memref<32xi32, #tpu.memory_space<smem>>
    %548 = arith.index_cast %547 : i32 to index
    %c0_150 = arith.constant 0 : index
    %549 = vector.load %arg16[%548, %c0_150] : memref<16x128xf32, #tpu.memory_space<vmem>>, vector<1x128xf32>
    %550 = arith.index_cast %c23_i32 : i32 to index
    %551 = memref.load %arg2[%550] : memref<32xi32, #tpu.memory_space<smem>>
    %552 = arith.index_cast %551 : i32 to index
    %c0_151 = arith.constant 0 : index
    %553 = vector.load %arg16[%552, %c0_151] : memref<16x128xf32, #tpu.memory_space<vmem>>, vector<1x128xf32>
    %cst_152 = arith.constant 1.000000e+00 : f32
    %554 = arith.subf %cst_152, %545 : f32
    %555 = vector.broadcast %554 : f32 to vector<1x128xf32>
    %556 = arith.mulf %555, %549 : vector<1x128xf32>
    %557 = vector.broadcast %545 : f32 to vector<1x128xf32>
    %558 = arith.mulf %557, %553 : vector<1x128xf32>
    %559 = arith.addf %556, %558 : vector<1x128xf32>
    %c0_153 = arith.constant 0 : index
    %560 = arith.index_cast %c23_i32 : i32 to index
    %c0_154 = arith.constant 0 : index
    %561 = vector.load %arg15[%c0_153, %560, %c0_154] : memref<1x32x128xf32, #tpu.memory_space<vmem>>, vector<1x1x128xf32>
    %562 = vector.shape_cast %561 : vector<1x1x128xf32> to vector<1x128xf32>
    %563 = vector.shape_cast %559 : vector<1x128xf32> to vector<1x1x128xf32>
    tpu.vector_store %arg15[%c0_153, %560, %c0_154], %563 {strides = array<i32>} : memref<1x32x128xf32, #tpu.memory_space<vmem>>, vector<1x1x128xf32>,
    %c24_i32 = arith.constant 24 : i32
    %564 = arith.index_cast %c24_i32 : i32 to index
    %565 = memref.load %arg3[%564] : memref<32xf32, #tpu.memory_space<smem>>
    %566 = arith.index_cast %c24_i32 : i32 to index
    %567 = memref.load %arg1[%566] : memref<32xi32, #tpu.memory_space<smem>>
    %568 = arith.index_cast %567 : i32 to index
    %c0_155 = arith.constant 0 : index
    %569 = vector.load %arg16[%568, %c0_155] : memref<16x128xf32, #tpu.memory_space<vmem>>, vector<1x128xf32>
    %570 = arith.index_cast %c24_i32 : i32 to index
    %571 = memref.load %arg2[%570] : memref<32xi32, #tpu.memory_space<smem>>
    %572 = arith.index_cast %571 : i32 to index
    %c0_156 = arith.constant 0 : index
    %573 = vector.load %arg16[%572, %c0_156] : memref<16x128xf32, #tpu.memory_space<vmem>>, vector<1x128xf32>
    %cst_157 = arith.constant 1.000000e+00 : f32
    %574 = arith.subf %cst_157, %565 : f32
    %575 = vector.broadcast %574 : f32 to vector<1x128xf32>
    %576 = arith.mulf %575, %569 : vector<1x128xf32>
    %577 = vector.broadcast %565 : f32 to vector<1x128xf32>
    %578 = arith.mulf %577, %573 : vector<1x128xf32>
    %579 = arith.addf %576, %578 : vector<1x128xf32>
    %c0_158 = arith.constant 0 : index
    %580 = arith.index_cast %c24_i32 : i32 to index
    %c0_159 = arith.constant 0 : index
    %581 = vector.load %arg15[%c0_158, %580, %c0_159] : memref<1x32x128xf32, #tpu.memory_space<vmem>>, vector<1x1x128xf32>
    %582 = vector.shape_cast %581 : vector<1x1x128xf32> to vector<1x128xf32>
    %583 = vector.shape_cast %579 : vector<1x128xf32> to vector<1x1x128xf32>
    tpu.vector_store %arg15[%c0_158, %580, %c0_159], %583 {strides = array<i32>} : memref<1x32x128xf32, #tpu.memory_space<vmem>>, vector<1x1x128xf32>,
    %c25_i32 = arith.constant 25 : i32
    %584 = arith.index_cast %c25_i32 : i32 to index
    %585 = memref.load %arg3[%584] : memref<32xf32, #tpu.memory_space<smem>>
    %586 = arith.index_cast %c25_i32 : i32 to index
    %587 = memref.load %arg1[%586] : memref<32xi32, #tpu.memory_space<smem>>
    %588 = arith.index_cast %587 : i32 to index
    %c0_160 = arith.constant 0 : index
    %589 = vector.load %arg16[%588, %c0_160] : memref<16x128xf32, #tpu.memory_space<vmem>>, vector<1x128xf32>
    %590 = arith.index_cast %c25_i32 : i32 to index
    %591 = memref.load %arg2[%590] : memref<32xi32, #tpu.memory_space<smem>>
    %592 = arith.index_cast %591 : i32 to index
    %c0_161 = arith.constant 0 : index
    %593 = vector.load %arg16[%592, %c0_161] : memref<16x128xf32, #tpu.memory_space<vmem>>, vector<1x128xf32>
    %cst_162 = arith.constant 1.000000e+00 : f32
    %594 = arith.subf %cst_162, %585 : f32
    %595 = vector.broadcast %594 : f32 to vector<1x128xf32>
    %596 = arith.mulf %595, %589 : vector<1x128xf32>
    %597 = vector.broadcast %585 : f32 to vector<1x128xf32>
    %598 = arith.mulf %597, %593 : vector<1x128xf32>
    %599 = arith.addf %596, %598 : vector<1x128xf32>
    %c0_163 = arith.constant 0 : index
    %600 = arith.index_cast %c25_i32 : i32 to index
    %c0_164 = arith.constant 0 : index
    %601 = vector.load %arg15[%c0_163, %600, %c0_164] : memref<1x32x128xf32, #tpu.memory_space<vmem>>, vector<1x1x128xf32>
    %602 = vector.shape_cast %601 : vector<1x1x128xf32> to vector<1x128xf32>
    %603 = vector.shape_cast %599 : vector<1x128xf32> to vector<1x1x128xf32>
    tpu.vector_store %arg15[%c0_163, %600, %c0_164], %603 {strides = array<i32>} : memref<1x32x128xf32, #tpu.memory_space<vmem>>, vector<1x1x128xf32>,
    %c26_i32 = arith.constant 26 : i32
    %604 = arith.index_cast %c26_i32 : i32 to index
    %605 = memref.load %arg3[%604] : memref<32xf32, #tpu.memory_space<smem>>
    %606 = arith.index_cast %c26_i32 : i32 to index
    %607 = memref.load %arg1[%606] : memref<32xi32, #tpu.memory_space<smem>>
    %608 = arith.index_cast %607 : i32 to index
    %c0_165 = arith.constant 0 : index
    %609 = vector.load %arg16[%608, %c0_165] : memref<16x128xf32, #tpu.memory_space<vmem>>, vector<1x128xf32>
    %610 = arith.index_cast %c26_i32 : i32 to index
    %611 = memref.load %arg2[%610] : memref<32xi32, #tpu.memory_space<smem>>
    %612 = arith.index_cast %611 : i32 to index
    %c0_166 = arith.constant 0 : index
    %613 = vector.load %arg16[%612, %c0_166] : memref<16x128xf32, #tpu.memory_space<vmem>>, vector<1x128xf32>
    %cst_167 = arith.constant 1.000000e+00 : f32
    %614 = arith.subf %cst_167, %605 : f32
    %615 = vector.broadcast %614 : f32 to vector<1x128xf32>
    %616 = arith.mulf %615, %609 : vector<1x128xf32>
    %617 = vector.broadcast %605 : f32 to vector<1x128xf32>
    %618 = arith.mulf %617, %613 : vector<1x128xf32>
    %619 = arith.addf %616, %618 : vector<1x128xf32>
    %c0_168 = arith.constant 0 : index
    %620 = arith.index_cast %c26_i32 : i32 to index
    %c0_169 = arith.constant 0 : index
    %621 = vector.load %arg15[%c0_168, %620, %c0_169] : memref<1x32x128xf32, #tpu.memory_space<vmem>>, vector<1x1x128xf32>
    %622 = vector.shape_cast %621 : vector<1x1x128xf32> to vector<1x128xf32>
    %623 = vector.shape_cast %619 : vector<1x128xf32> to vector<1x1x128xf32>
    tpu.vector_store %arg15[%c0_168, %620, %c0_169], %623 {strides = array<i32>} : memref<1x32x128xf32, #tpu.memory_space<vmem>>, vector<1x1x128xf32>,
    %c27_i32 = arith.constant 27 : i32
    %624 = arith.index_cast %c27_i32 : i32 to index
    %625 = memref.load %arg3[%624] : memref<32xf32, #tpu.memory_space<smem>>
    %626 = arith.index_cast %c27_i32 : i32 to index
    %627 = memref.load %arg1[%626] : memref<32xi32, #tpu.memory_space<smem>>
    %628 = arith.index_cast %627 : i32 to index
    %c0_170 = arith.constant 0 : index
    %629 = vector.load %arg16[%628, %c0_170] : memref<16x128xf32, #tpu.memory_space<vmem>>, vector<1x128xf32>
    %630 = arith.index_cast %c27_i32 : i32 to index
    %631 = memref.load %arg2[%630] : memref<32xi32, #tpu.memory_space<smem>>
    %632 = arith.index_cast %631 : i32 to index
    %c0_171 = arith.constant 0 : index
    %633 = vector.load %arg16[%632, %c0_171] : memref<16x128xf32, #tpu.memory_space<vmem>>, vector<1x128xf32>
    %cst_172 = arith.constant 1.000000e+00 : f32
    %634 = arith.subf %cst_172, %625 : f32
    %635 = vector.broadcast %634 : f32 to vector<1x128xf32>
    %636 = arith.mulf %635, %629 : vector<1x128xf32>
    %637 = vector.broadcast %625 : f32 to vector<1x128xf32>
    %638 = arith.mulf %637, %633 : vector<1x128xf32>
    %639 = arith.addf %636, %638 : vector<1x128xf32>
    %c0_173 = arith.constant 0 : index
    %640 = arith.index_cast %c27_i32 : i32 to index
    %c0_174 = arith.constant 0 : index
    %641 = vector.load %arg15[%c0_173, %640, %c0_174] : memref<1x32x128xf32, #tpu.memory_space<vmem>>, vector<1x1x128xf32>
    %642 = vector.shape_cast %641 : vector<1x1x128xf32> to vector<1x128xf32>
    %643 = vector.shape_cast %639 : vector<1x128xf32> to vector<1x1x128xf32>
    tpu.vector_store %arg15[%c0_173, %640, %c0_174], %643 {strides = array<i32>} : memref<1x32x128xf32, #tpu.memory_space<vmem>>, vector<1x1x128xf32>,
    %c28_i32 = arith.constant 28 : i32
    %644 = arith.index_cast %c28_i32 : i32 to index
    %645 = memref.load %arg3[%644] : memref<32xf32, #tpu.memory_space<smem>>
    %646 = arith.index_cast %c28_i32 : i32 to index
    %647 = memref.load %arg1[%646] : memref<32xi32, #tpu.memory_space<smem>>
    %648 = arith.index_cast %647 : i32 to index
    %c0_175 = arith.constant 0 : index
    %649 = vector.load %arg16[%648, %c0_175] : memref<16x128xf32, #tpu.memory_space<vmem>>, vector<1x128xf32>
    %650 = arith.index_cast %c28_i32 : i32 to index
    %651 = memref.load %arg2[%650] : memref<32xi32, #tpu.memory_space<smem>>
    %652 = arith.index_cast %651 : i32 to index
    %c0_176 = arith.constant 0 : index
    %653 = vector.load %arg16[%652, %c0_176] : memref<16x128xf32, #tpu.memory_space<vmem>>, vector<1x128xf32>
    %cst_177 = arith.constant 1.000000e+00 : f32
    %654 = arith.subf %cst_177, %645 : f32
    %655 = vector.broadcast %654 : f32 to vector<1x128xf32>
    %656 = arith.mulf %655, %649 : vector<1x128xf32>
    %657 = vector.broadcast %645 : f32 to vector<1x128xf32>
    %658 = arith.mulf %657, %653 : vector<1x128xf32>
    %659 = arith.addf %656, %658 : vector<1x128xf32>
    %c0_178 = arith.constant 0 : index
    %660 = arith.index_cast %c28_i32 : i32 to index
    %c0_179 = arith.constant 0 : index
    %661 = vector.load %arg15[%c0_178, %660, %c0_179] : memref<1x32x128xf32, #tpu.memory_space<vmem>>, vector<1x1x128xf32>
    %662 = vector.shape_cast %661 : vector<1x1x128xf32> to vector<1x128xf32>
    %663 = vector.shape_cast %659 : vector<1x128xf32> to vector<1x1x128xf32>
    tpu.vector_store %arg15[%c0_178, %660, %c0_179], %663 {strides = array<i32>} : memref<1x32x128xf32, #tpu.memory_space<vmem>>, vector<1x1x128xf32>,
    %c29_i32 = arith.constant 29 : i32
    %664 = arith.index_cast %c29_i32 : i32 to index
    %665 = memref.load %arg3[%664] : memref<32xf32, #tpu.memory_space<smem>>
    %666 = arith.index_cast %c29_i32 : i32 to index
    %667 = memref.load %arg1[%666] : memref<32xi32, #tpu.memory_space<smem>>
    %668 = arith.index_cast %667 : i32 to index
    %c0_180 = arith.constant 0 : index
    %669 = vector.load %arg16[%668, %c0_180] : memref<16x128xf32, #tpu.memory_space<vmem>>, vector<1x128xf32>
    %670 = arith.index_cast %c29_i32 : i32 to index
    %671 = memref.load %arg2[%670] : memref<32xi32, #tpu.memory_space<smem>>
    %672 = arith.index_cast %671 : i32 to index
    %c0_181 = arith.constant 0 : index
    %673 = vector.load %arg16[%672, %c0_181] : memref<16x128xf32, #tpu.memory_space<vmem>>, vector<1x128xf32>
    %cst_182 = arith.constant 1.000000e+00 : f32
    %674 = arith.subf %cst_182, %665 : f32
    %675 = vector.broadcast %674 : f32 to vector<1x128xf32>
    %676 = arith.mulf %675, %669 : vector<1x128xf32>
    %677 = vector.broadcast %665 : f32 to vector<1x128xf32>
    %678 = arith.mulf %677, %673 : vector<1x128xf32>
    %679 = arith.addf %676, %678 : vector<1x128xf32>
    %c0_183 = arith.constant 0 : index
    %680 = arith.index_cast %c29_i32 : i32 to index
    %c0_184 = arith.constant 0 : index
    %681 = vector.load %arg15[%c0_183, %680, %c0_184] : memref<1x32x128xf32, #tpu.memory_space<vmem>>, vector<1x1x128xf32>
    %682 = vector.shape_cast %681 : vector<1x1x128xf32> to vector<1x128xf32>
    %683 = vector.shape_cast %679 : vector<1x128xf32> to vector<1x1x128xf32>
    tpu.vector_store %arg15[%c0_183, %680, %c0_184], %683 {strides = array<i32>} : memref<1x32x128xf32, #tpu.memory_space<vmem>>, vector<1x1x128xf32>,
    %c30_i32 = arith.constant 30 : i32
    %684 = arith.index_cast %c30_i32 : i32 to index
    %685 = memref.load %arg3[%684] : memref<32xf32, #tpu.memory_space<smem>>
    %686 = arith.index_cast %c30_i32 : i32 to index
    %687 = memref.load %arg1[%686] : memref<32xi32, #tpu.memory_space<smem>>
    %688 = arith.index_cast %687 : i32 to index
    %c0_185 = arith.constant 0 : index
    %689 = vector.load %arg16[%688, %c0_185] : memref<16x128xf32, #tpu.memory_space<vmem>>, vector<1x128xf32>
    %690 = arith.index_cast %c30_i32 : i32 to index
    %691 = memref.load %arg2[%690] : memref<32xi32, #tpu.memory_space<smem>>
    %692 = arith.index_cast %691 : i32 to index
    %c0_186 = arith.constant 0 : index
    %693 = vector.load %arg16[%692, %c0_186] : memref<16x128xf32, #tpu.memory_space<vmem>>, vector<1x128xf32>
    %cst_187 = arith.constant 1.000000e+00 : f32
    %694 = arith.subf %cst_187, %685 : f32
    %695 = vector.broadcast %694 : f32 to vector<1x128xf32>
    %696 = arith.mulf %695, %689 : vector<1x128xf32>
    %697 = vector.broadcast %685 : f32 to vector<1x128xf32>
    %698 = arith.mulf %697, %693 : vector<1x128xf32>
    %699 = arith.addf %696, %698 : vector<1x128xf32>
    %c0_188 = arith.constant 0 : index
    %700 = arith.index_cast %c30_i32 : i32 to index
    %c0_189 = arith.constant 0 : index
    %701 = vector.load %arg15[%c0_188, %700, %c0_189] : memref<1x32x128xf32, #tpu.memory_space<vmem>>, vector<1x1x128xf32>
    %702 = vector.shape_cast %701 : vector<1x1x128xf32> to vector<1x128xf32>
    %703 = vector.shape_cast %699 : vector<1x128xf32> to vector<1x1x128xf32>
    tpu.vector_store %arg15[%c0_188, %700, %c0_189], %703 {strides = array<i32>} : memref<1x32x128xf32, #tpu.memory_space<vmem>>, vector<1x1x128xf32>,
    %c31_i32 = arith.constant 31 : i32
    %704 = arith.index_cast %c31_i32 : i32 to index
    %705 = memref.load %arg3[%704] : memref<32xf32, #tpu.memory_space<smem>>
    %706 = arith.index_cast %c31_i32 : i32 to index
    %707 = memref.load %arg1[%706] : memref<32xi32, #tpu.memory_space<smem>>
    %708 = arith.index_cast %707 : i32 to index
    %c0_190 = arith.constant 0 : index
    %709 = vector.load %arg16[%708, %c0_190] : memref<16x128xf32, #tpu.memory_space<vmem>>, vector<1x128xf32>
    %710 = arith.index_cast %c31_i32 : i32 to index
    %711 = memref.load %arg2[%710] : memref<32xi32, #tpu.memory_space<smem>>
    %712 = arith.index_cast %711 : i32 to index
    %c0_191 = arith.constant 0 : index
    %713 = vector.load %arg16[%712, %c0_191] : memref<16x128xf32, #tpu.memory_space<vmem>>, vector<1x128xf32>
    %cst_192 = arith.constant 1.000000e+00 : f32
    %714 = arith.subf %cst_192, %705 : f32
    %715 = vector.broadcast %714 : f32 to vector<1x128xf32>
    %716 = arith.mulf %715, %709 : vector<1x128xf32>
    %717 = vector.broadcast %705 : f32 to vector<1x128xf32>
    %718 = arith.mulf %717, %713 : vector<1x128xf32>
    %719 = arith.addf %716, %718 : vector<1x128xf32>
    %c0_193 = arith.constant 0 : index
    %720 = arith.index_cast %c31_i32 : i32 to index
    %c0_194 = arith.constant 0 : index
    %721 = vector.load %arg15[%c0_193, %720, %c0_194] : memref<1x32x128xf32, #tpu.memory_space<vmem>>, vector<1x1x128xf32>
    %722 = vector.shape_cast %721 : vector<1x1x128xf32> to vector<1x128xf32>
    %723 = vector.shape_cast %719 : vector<1x128xf32> to vector<1x1x128xf32>
    tpu.vector_store %arg15[%c0_193, %720, %c0_194], %723 {strides = array<i32>} : memref<1x32x128xf32, #tpu.memory_space<vmem>>, vector<1x1x128xf32>,
    %c32_i32 = arith.constant 32 : i32
    return
  }
  func.func @transform_0(%arg0: i32) -> i32 {
    %c0_i32 = arith.constant 0 : i32
    %c0_i32_0 = arith.constant 0 : i32
    return %c0_i32 : i32
  }
  func.func @transform_1(%arg0: i32) -> i32 {
    %c0_i32 = arith.constant 0 : i32
    %c0_i32_0 = arith.constant 0 : i32
    return %c0_i32 : i32
  }
  func.func @transform_2(%arg0: i32) -> i32 {
    %c0_i32 = arith.constant 0 : i32
    %c0_i32_0 = arith.constant 0 : i32
    return %c0_i32 : i32
  }
  func.func @transform_3(%arg0: i32) -> (i32, i32, i32) {
    %c0_i32 = arith.constant 0 : i32
    %c0_i32_0 = arith.constant 0 : i32
    %c0_i32_1 = arith.constant 0 : i32
    return %arg0, %c0_i32, %c0_i32_0 : i32, i32, i32
  }
  func.func @transform_4(%arg0: i32) -> (i32, i32, i32) {
    %c0_i32 = arith.constant 0 : i32
    %c0_i32_0 = arith.constant 0 : i32
    %c0_i32_1 = arith.constant 0 : i32
    return %arg0, %c0_i32, %c0_i32_0 : i32, i32, i32
  }
  func.func @transform_5(%arg0: i32) -> (i32, i32, i32) {
    %c0_i32 = arith.constant 0 : i32
    %c0_i32_0 = arith.constant 0 : i32
    %c0_i32_1 = arith.constant 0 : i32
    return %arg0, %c0_i32, %c0_i32_0 : i32, i32, i32
  }
  func.func @transform_6(%arg0: i32) -> (i32, i32) {
    %c0_i32 = arith.constant 0 : i32
    %c0_i32_0 = arith.constant 0 : i32
    %c0_i32_1 = arith.constant 0 : i32
    return %c0_i32, %c0_i32_0 : i32, i32
  }
  func.func @transform_7(%arg0: i32) -> (i32, i32) {
    %c0_i32 = arith.constant 0 : i32
    %c0_i32_0 = arith.constant 0 : i32
    %c0_i32_1 = arith.constant 0 : i32
    return %c0_i32, %c0_i32_0 : i32, i32
  }
  func.func @transform_8(%arg0: i32) -> (i32, i32) {
    %c0_i32 = arith.constant 0 : i32
    %c0_i32_0 = arith.constant 0 : i32
    %c0_i32_1 = arith.constant 0 : i32
    return %c0_i32, %c0_i32_0 : i32, i32
  }
  func.func @transform_9(%arg0: i32) -> (i32, i32) {
    %c0_i32 = arith.constant 0 : i32
    %c0_i32_0 = arith.constant 0 : i32
    %c0_i32_1 = arith.constant 0 : i32
    return %c0_i32, %c0_i32_0 : i32, i32
  }
  func.func @transform_10(%arg0: i32) -> (i32, i32) {
    %c0_i32 = arith.constant 0 : i32
    %c0_i32_0 = arith.constant 0 : i32
    %c0_i32_1 = arith.constant 0 : i32
    return %c0_i32, %c0_i32_0 : i32, i32
  }
  func.func @transform_11(%arg0: i32) -> (i32, i32) {
    %c0_i32 = arith.constant 0 : i32
    %c0_i32_0 = arith.constant 0 : i32
    %c0_i32_1 = arith.constant 0 : i32
    return %c0_i32, %c0_i32_0 : i32, i32
  }
  func.func @transform_12(%arg0: i32) -> (i32, i32, i32) {
    %c0_i32 = arith.constant 0 : i32
    %c0_i32_0 = arith.constant 0 : i32
    %c0_i32_1 = arith.constant 0 : i32
    %c0_i32_2 = arith.constant 0 : i32
    return %c0_i32, %c0_i32_0, %c0_i32_1 : i32, i32, i32
  }
  func.func @transform_13(%arg0: i32) -> (i32, i32) {
    %c0_i32 = arith.constant 0 : i32
    %c0_i32_0 = arith.constant 0 : i32
    %c0_i32_1 = arith.constant 0 : i32
    return %c0_i32, %c0_i32_0 : i32, i32
  }
  func.func @transform_14(%arg0: i32) -> (i32, i32, i32) {
    %c0_i32 = arith.constant 0 : i32
    %c0_i32_0 = arith.constant 0 : i32
    %c0_i32_1 = arith.constant 0 : i32
    return %arg0, %c0_i32, %c0_i32_0 : i32, i32, i32
  }
}

</mosaic_0001>

<llo_original>
// kernel: tpu_custom_call.1
$region0: #{tpu_custom_call.1}
  #allocation0 [shape = 'u32[]', space=smem, size = 0x4, offset = 0x4, fixed_abs, tag = 'smem constant byte address 0x4 - core index']
  #allocation1 [shape = 'u32[72,128]{1,0:T(1,128)}', space=vmem, size = 0x9000, scoped, tag = 'internal scratch']
  #allocation2 [shape = 'f32[16,128]{1,0:T(8,128)}', space=vmem, size = 0x2000, scoped, tag = 'scratch operand']
  %s0 = inlined_call_operand.hbm [shape: s32[32], index: 0, kind: input, shape index: {}]
  %s1 = inlined_call_operand.hbm [shape: s32[32], index: 1, kind: input, shape index: {}]
  %s2 = inlined_call_operand.vmem [shape: f32[32], index: 2, kind: input, shape index: {}]
  %s3 = inlined_call_operand.hbm [shape: bf16[2,16,128], index: 3, kind: input, shape index: {}]
  %s4 = inlined_call_operand.hbm [shape: bf16[2,32,128], index: 4, kind: input, shape index: {}]
  %s5 = inlined_call_operand.hbm [shape: bf16[2,32,128], index: 5, kind: input, shape index: {}]
  %s6 = inlined_call_operand.hbm [shape: bf16[128,128], index: 6, kind: input, shape index: {}]
  %s7 = inlined_call_operand.vmem [shape: f32[1,128], index: 7, kind: input, shape index: {}]
  %s8 = inlined_call_operand.hbm [shape: bf16[128,128], index: 8, kind: input, shape index: {}]
  %s9 = inlined_call_operand.vmem [shape: f32[1,128], index: 9, kind: input, shape index: {}]
  %s10 = inlined_call_operand.hbm [shape: bf16[128,128], index: 10, kind: input, shape index: {}]
  %s11 = inlined_call_operand.vmem [shape: f32[1,128], index: 11, kind: input, shape index: {}]
  %s12 = inlined_call_operand.hbm [shape: bf16[4,32,128], index: 12, kind: input, shape index: {}]
  %s13 = inlined_call_operand.vmem [shape: f32[1,128], index: 13, kind: input, shape index: {}]
  %s14 = inlined_call_operand.hbm [shape: f32[2,32,128], index: 14, kind: output, shape index: {}]
  %s15 = sld [smem:[#allocation0]]
  $region129: #{tpu_custom_call.1} parent=0
    _
  %s17 = ssub.s32 1, %s15
  %s18 = scalar_select 0, %s17, %s15
  $region1: #{tpu_custom_call.1} parent=0
    #allocation3 [shape = 'u8[512]{0}', space=smem, size = 0x200, scoped, tag = 'input window, operand 0, single buffered']
    #allocation4 [shape = 's32[2]{0}', space=sflag, size = 0x8, scoped, tag = 'scoped memory for tpu_custom_call.1']
    #allocation5 [shape = 's32[2]{0}', space=sflag, size = 0x8, scoped, tag = 'scoped memory for tpu_custom_call.1']
    #allocation6 [shape = 's32[2]{0}', space=sflag, size = 0x8, scoped, tag = 'scoped memory for tpu_custom_call.1']
    #allocation7 [shape = 's32[2]{0}', space=sflag, size = 0x8, scoped, tag = 'scoped memory for tpu_custom_call.1']
    #allocation8 [shape = 'u8[512]{0}', space=smem, size = 0x200, scoped, tag = 'input window, operand 1, single buffered']
    #allocation9 [shape = 's32[1]{0}', space=sflag, size = 0x4, scoped, tag = 'scoped memory for tpu_custom_call.1']
    #allocation10 [shape = 'u8[512]{0}', space=smem, size = 0x200, scoped, tag = 'input window, operand 2, single buffered']
    #allocation11 [shape = 'u8[8192]{0}', space=vmem, size = 0x2000, scoped, tag = 'input window, operand 3']
    #allocation12 [shape = 'u8[16384]{0}', space=vmem, size = 0x4000, scoped, tag = 'input window, operand 4']
    #allocation13 [shape = 's32[2]{0}', space=sflag, size = 0x8, scoped, tag = 'scoped memory for tpu_custom_call.1']
    #allocation14 [shape = 'u8[16384]{0}', space=vmem, size = 0x4000, scoped, tag = 'input window, operand 5']
    #allocation15 [shape = 'u8[32768]{0}', space=vmem, size = 0x8000, scoped, tag = 'input window, operand 6, single buffered']
    #allocation16 [shape = 's32[1]{0}', space=sflag, size = 0x4, scoped, tag = 'scoped memory for tpu_custom_call.1']
    #allocation17 [shape = 'u8[32768]{0}', space=vmem, size = 0x8000, scoped, tag = 'input window, operand 8, single buffered']
    #allocation18 [shape = 'u8[32768]{0}', space=vmem, size = 0x8000, scoped, tag = 'input window, operand 10, single buffered']
    #allocation19 [shape = 's32[1]{0}', space=sflag, size = 0x4, scoped, tag = 'scoped memory for tpu_custom_call.1']
    #allocation20 [shape = 'u8[32768]{0}', space=vmem, size = 0x8000, scoped, tag = 'input window, operand 12, single buffered']
    #allocation21 [shape = 'u8[32768]{0}', space=vmem, size = 0x8000, scoped, tag = 'output window, operand 0']
    %19 = vsyncpa [#allocation6], 0
    %20 = vsyncpa [#allocation9], 0
    %21 = vsyncpa [#allocation7], 0
    %22 = vsyncpa [#allocation4], 0
    %s23 = scalar_lea.sflag [#allocation4], 1
    %24 = vsyncpa %s23, 0
    %25 = vsyncpa [#allocation13], 0
    %s26 = scalar_lea.sflag [#allocation13], 1
    %27 = vsyncpa %s26, 0
    %28 = vsyncpa [#allocation16], 0
    %29 = vsyncpa [#allocation19], 0
    %30 = vsyncpa [#allocation5], 0
    %s31 = scalar_lea.sflag [#allocation5], 1
    %32 = vsyncpa %s31, 0
    loop: start=0, step=1, limit=4
    $region2: #{tpu_custom_call.1} parent=1 // loop_pre_header
      _
    $region3: #{tpu_custom_call.1} parent=1 // loop_header
      %s34 = sphi 0, %s38
      %p35 = scmp.ge.s32.totalorder %s34, 4
      %s42 = sphi 0, %s42
      %s44 = sphi 0, %s42
      %s45 = sphi 0, %s44
      %s59 = sphi 0, %s45
      %s63 = sphi 0, %s63
      %s65 = sphi 0, %s63
      %s66 = sphi 0, %s65
      %s80 = sphi 0, %s66
      %s84 = sphi 0, %s84
      %s86 = sphi 0, %s84
      %s87 = sphi 0, %s86
      %s101 = sphi 0, %s87
      %s107 = sphi 0, %s109
      %s110 = sphi 0, %s107
      %s111 = sphi 0, %s110
      %s127 = sphi 0, %s111
      %s133 = sphi 0, %s135
      %s136 = sphi 0, %s133
      %s137 = sphi 0, %s136
      %s153 = sphi 0, %s137
      %s159 = sphi 0, %s161
      %s162 = sphi 0, %s159
      %s163 = sphi 0, %s162
      %s179 = sphi 0, %s163
      %s183 = sphi 0, %s183
      %s185 = sphi 0, %s183
      %s186 = sphi 0, %s185
      %s200 = sphi 0, %s186
      %s204 = sphi 0, %s204
      %s206 = sphi 0, %s204
      %s207 = sphi 0, %s206
      %s221 = sphi 0, %s207
      %s225 = sphi 0, %s225
      %s227 = sphi 0, %s225
      %s228 = sphi 0, %s227
      %s242 = sphi 0, %s228
      %s246 = sphi 0, %s246
      %s248 = sphi 0, %s246
      %s249 = sphi 0, %s248
      %s263 = sphi 0, %s249
      %s267 = sphi 0, %s267
      %s269 = sphi 0, %s267
      %s270 = sphi 0, %s269
      %s284 = sphi 0, %s270
      %s288 = sphi 0, %s288
      %s290 = sphi 0, %s288
      %s291 = sphi 0, %s290
      %s305 = sphi 0, %s291
      %s309 = sphi 0, %s309
      %s311 = sphi 0, %s309
      %s312 = sphi 0, %s311
      %s326 = sphi 0, %s312
      %s330 = sphi 0, %s330
      %s332 = sphi 0, %s330
      %s333 = sphi 0, %s332
      %s347 = sphi 0, %s333
      %s353 = sphi 0, %s355
      %s356 = sphi 0, %s353
      %s357 = sphi 0, %s356
      %s373 = sphi 0, %s357
    $region4: #{tpu_custom_call.1} parent=1 // loop_header_branch
      %37 = sbr.rel (%p35) target = $region8
    $region5: #{tpu_custom_call.1} parent=1 // loop_body
      %s39 = ssub.s32 %s34, 1
      %s40 = ssub.s32 %s34, 2
      %s41 = sadd.s32 %s34, 1
      %s43 = sadd.s32 %s42, 1
      %p46 = scmp.eq.s32.totalorder %s34, 1
      %p47 = scmp.ne.s32.totalorder %s42, %s44
      %p48 = scmp.eq.s32.totalorder %s34, 0
      %p49 = por %p47, %p48
      %p50 = scmp.ne.s32.totalorder %s42, %s44
      %p51 = scmp.eq.s32.totalorder %s39, 1
      %p52 = por %p50, %p51
      %p53 = scmp.ne.s32.totalorder %s44, %s45
      %p54 = scmp.eq.s32.totalorder %s39, 0
      %p55 = por %p53, %p54
      %p56 = scmp.ne.s32.totalorder %s44, %s45
      %p57 = scmp.eq.s32.totalorder %s40, 1
      %p58 = por %p56, %p57
      %p60 = scmp.ne.s32.totalorder %s45, %s59
      %p61 = scmp.eq.s32.totalorder %s40, 0
      %p62 = por %p60, %p61
      %s64 = sadd.s32 %s63, 1
      %p67 = scmp.eq.s32.totalorder %s34, 1
      %p68 = scmp.ne.s32.totalorder %s63, %s65
      %p69 = scmp.eq.s32.totalorder %s34, 0
      %p70 = por %p68, %p69
      %p71 = scmp.ne.s32.totalorder %s63, %s65
      %p72 = scmp.eq.s32.totalorder %s39, 1
      %p73 = por %p71, %p72
      %p74 = scmp.ne.s32.totalorder %s65, %s66
      %p75 = scmp.eq.s32.totalorder %s39, 0
      %p76 = por %p74, %p75
      %p77 = scmp.ne.s32.totalorder %s65, %s66
      %p78 = scmp.eq.s32.totalorder %s40, 1
      %p79 = por %p77, %p78
      %p81 = scmp.ne.s32.totalorder %s66, %s80
      %p82 = scmp.eq.s32.totalorder %s40, 0
      %p83 = por %p81, %p82
      %s85 = sadd.s32 %s84, 1
      %p88 = scmp.eq.s32.totalorder %s34, 1
      %p89 = scmp.ne.s32.totalorder %s84, %s86
      %p90 = scmp.eq.s32.totalorder %s34, 0
      %p91 = por %p89, %p90
      %p92 = scmp.ne.s32.totalorder %s84, %s86
      %p93 = scmp.eq.s32.totalorder %s39, 1
      %p94 = por %p92, %p93
      %p95 = scmp.ne.s32.totalorder %s86, %s87
      %p96 = scmp.eq.s32.totalorder %s39, 0
      %p97 = por %p95, %p96
      %p98 = scmp.ne.s32.totalorder %s86, %s87
      %p99 = scmp.eq.s32.totalorder %s40, 1
      %p100 = por %p98, %p99
      %p102 = scmp.ne.s32.totalorder %s87, %s101
      %p103 = scmp.eq.s32.totalorder %s40, 0
      %p104 = por %p102, %p103
      %s105 = ssub.s32 %s34, %s41
      %p106 = scmp.eq.s32.totalorder %s105, 0
      %s108 = sadd.s32 %s107, 1
      %s109 = scalar_select %p106, %s107, %s108
      %p112 = pneg %p106
      %p113 = scmp.eq.s32.totalorder %s34, 1
      %p114 = por %p112, %p113
      %p115 = scmp.ne.s32.totalorder %s107, %s110
      %p116 = scmp.eq.s32.totalorder %s34, 0
      %p117 = por %p115, %p116
      %p118 = scmp.ne.s32.totalorder %s107, %s110
      %p119 = scmp.eq.s32.totalorder %s39, 1
      %p120 = por %p118, %p119
      %p121 = scmp.ne.s32.totalorder %s110, %s111
      %p122 = scmp.eq.s32.totalorder %s39, 0
      %p123 = por %p121, %p122
      %p124 = scmp.ne.s32.totalorder %s110, %s111
      %p125 = scmp.eq.s32.totalorder %s40, 1
      %p126 = por %p124, %p125
      %p128 = scmp.ne.s32.totalorder %s111, %s127
      %p129 = scmp.eq.s32.totalorder %s40, 0
      %p130 = por %p128, %p129
      %s131 = ssub.s32 %s34, %s41
      %p132 = scmp.eq.s32.totalorder %s131, 0
      %s134 = sadd.s32 %s133, 1
      %s135 = scalar_select %p132, %s133, %s134
      %p138 = pneg %p132
      %p139 = scmp.eq.s32.totalorder %s34, 1
      %p140 = por %p138, %p139
      %p141 = scmp.ne.s32.totalorder %s133, %s136
      %p142 = scmp.eq.s32.totalorder %s34, 0
      %p143 = por %p141, %p142
      %p144 = scmp.ne.s32.totalorder %s133, %s136
      %p145 = scmp.eq.s32.totalorder %s39, 1
      %p146 = por %p144, %p145
      %p147 = scmp.ne.s32.totalorder %s136, %s137
      %p148 = scmp.eq.s32.totalorder %s39, 0
      %p149 = por %p147, %p148
      %p150 = scmp.ne.s32.totalorder %s136, %s137
      %p151 = scmp.eq.s32.totalorder %s40, 1
      %p152 = por %p150, %p151
      %p154 = scmp.ne.s32.totalorder %s137, %s153
      %p155 = scmp.eq.s32.totalorder %s40, 0
      %p156 = por %p154, %p155
      %s157 = ssub.s32 %s34, %s41
      %p158 = scmp.eq.s32.totalorder %s157, 0
      %s160 = sadd.s32 %s159, 1
      %s161 = scalar_select %p158, %s159, %s160
      %p164 = pneg %p158
      %p165 = scmp.eq.s32.totalorder %s34, 1
      %p166 = por %p164, %p165
      %p167 = scmp.ne.s32.totalorder %s159, %s162
      %p168 = scmp.eq.s32.totalorder %s34, 0
      %p169 = por %p167, %p168
      %p170 = scmp.ne.s32.totalorder %s159, %s162
      %p171 = scmp.eq.s32.totalorder %s39, 1
      %p172 = por %p170, %p171
      %p173 = scmp.ne.s32.totalorder %s162, %s163
      %p174 = scmp.eq.s32.totalorder %s39, 0
      %p175 = por %p173, %p174
      %p176 = scmp.ne.s32.totalorder %s162, %s163
      %p177 = scmp.eq.s32.totalorder %s40, 1
      %p178 = por %p176, %p177
      %p180 = scmp.ne.s32.totalorder %s163, %s179
      %p181 = scmp.eq.s32.totalorder %s40, 0
      %p182 = por %p180, %p181
      %s184 = sadd.s32 %s183, 1
      %p187 = scmp.eq.s32.totalorder %s34, 1
      %p188 = scmp.ne.s32.totalorder %s183, %s185
      %p189 = scmp.eq.s32.totalorder %s34, 0
      %p190 = por %p188, %p189
      %p191 = scmp.ne.s32.totalorder %s183, %s185
      %p192 = scmp.eq.s32.totalorder %s39, 1
      %p193 = por %p191, %p192
      %p194 = scmp.ne.s32.totalorder %s185, %s186
      %p195 = scmp.eq.s32.totalorder %s39, 0
      %p196 = por %p194, %p195
      %p197 = scmp.ne.s32.totalorder %s185, %s186
      %p198 = scmp.eq.s32.totalorder %s40, 1
      %p199 = por %p197, %p198
      %p201 = scmp.ne.s32.totalorder %s186, %s200
      %p202 = scmp.eq.s32.totalorder %s40, 0
      %p203 = por %p201, %p202
      %s205 = sadd.s32 %s204, 1
      %p208 = scmp.eq.s32.totalorder %s34, 1
      %p209 = scmp.ne.s32.totalorder %s204, %s206
      %p210 = scmp.eq.s32.totalorder %s34, 0
      %p211 = por %p209, %p210
      %p212 = scmp.ne.s32.totalorder %s204, %s206
      %p213 = scmp.eq.s32.totalorder %s39, 1
      %p214 = por %p212, %p213
      %p215 = scmp.ne.s32.totalorder %s206, %s207
      %p216 = scmp.eq.s32.totalorder %s39, 0
      %p217 = por %p215, %p216
      %p218 = scmp.ne.s32.totalorder %s206, %s207
      %p219 = scmp.eq.s32.totalorder %s40, 1
      %p220 = por %p218, %p219
      %p222 = scmp.ne.s32.totalorder %s207, %s221
      %p223 = scmp.eq.s32.totalorder %s40, 0
      %p224 = por %p222, %p223
      %s226 = sadd.s32 %s225, 1
      %p229 = scmp.eq.s32.totalorder %s34, 1
      %p230 = scmp.ne.s32.totalorder %s225, %s227
      %p231 = scmp.eq.s32.totalorder %s34, 0
      %p232 = por %p230, %p231
      %p233 = scmp.ne.s32.totalorder %s225, %s227
      %p234 = scmp.eq.s32.totalorder %s39, 1
      %p235 = por %p233, %p234
      %p236 = scmp.ne.s32.totalorder %s227, %s228
      %p237 = scmp.eq.s32.totalorder %s39, 0
      %p238 = por %p236, %p237
      %p239 = scmp.ne.s32.totalorder %s227, %s228
      %p240 = scmp.eq.s32.totalorder %s40, 1
      %p241 = por %p239, %p240
      %p243 = scmp.ne.s32.totalorder %s228, %s242
      %p244 = scmp.eq.s32.totalorder %s40, 0
      %p245 = por %p243, %p244
      %s247 = sadd.s32 %s246, 1
      %p250 = scmp.eq.s32.totalorder %s34, 1
      %p251 = scmp.ne.s32.totalorder %s246, %s248
      %p252 = scmp.eq.s32.totalorder %s34, 0
      %p253 = por %p251, %p252
      %p254 = scmp.ne.s32.totalorder %s246, %s248
      %p255 = scmp.eq.s32.totalorder %s39, 1
      %p256 = por %p254, %p255
      %p257 = scmp.ne.s32.totalorder %s248, %s249
      %p258 = scmp.eq.s32.totalorder %s39, 0
      %p259 = por %p257, %p258
      %p260 = scmp.ne.s32.totalorder %s248, %s249
      %p261 = scmp.eq.s32.totalorder %s40, 1
      %p262 = por %p260, %p261
      %p264 = scmp.ne.s32.totalorder %s249, %s263
      %p265 = scmp.eq.s32.totalorder %s40, 0
      %p266 = por %p264, %p265
      %s268 = sadd.s32 %s267, 1
      %p271 = scmp.eq.s32.totalorder %s34, 1
      %p272 = scmp.ne.s32.totalorder %s267, %s269
      %p273 = scmp.eq.s32.totalorder %s34, 0
      %p274 = por %p272, %p273
      %p275 = scmp.ne.s32.totalorder %s267, %s269
      %p276 = scmp.eq.s32.totalorder %s39, 1
      %p277 = por %p275, %p276
      %p278 = scmp.ne.s32.totalorder %s269, %s270
      %p279 = scmp.eq.s32.totalorder %s39, 0
      %p280 = por %p278, %p279
      %p281 = scmp.ne.s32.totalorder %s269, %s270
      %p282 = scmp.eq.s32.totalorder %s40, 1
      %p283 = por %p281, %p282
      %p285 = scmp.ne.s32.totalorder %s270, %s284
      %p286 = scmp.eq.s32.totalorder %s40, 0
      %p287 = por %p285, %p286
      %s289 = sadd.s32 %s288, 1
      %p292 = scmp.eq.s32.totalorder %s34, 1
      %p293 = scmp.ne.s32.totalorder %s288, %s290
      %p294 = scmp.eq.s32.totalorder %s34, 0
      %p295 = por %p293, %p294
      %p296 = scmp.ne.s32.totalorder %s288, %s290
      %p297 = scmp.eq.s32.totalorder %s39, 1
      %p298 = por %p296, %p297
      %p299 = scmp.ne.s32.totalorder %s290, %s291
      %p300 = scmp.eq.s32.totalorder %s39, 0
      %p301 = por %p299, %p300
      %p302 = scmp.ne.s32.totalorder %s290, %s291
      %p303 = scmp.eq.s32.totalorder %s40, 1
      %p304 = por %p302, %p303
      %p306 = scmp.ne.s32.totalorder %s291, %s305
      %p307 = scmp.eq.s32.totalorder %s40, 0
      %p308 = por %p306, %p307
      %s310 = sadd.s32 %s309, 1
      %p313 = scmp.eq.s32.totalorder %s34, 1
      %p314 = scmp.ne.s32.totalorder %s309, %s311
      %p315 = scmp.eq.s32.totalorder %s34, 0
      %p316 = por %p314, %p315
      %p317 = scmp.ne.s32.totalorder %s309, %s311
      %p318 = scmp.eq.s32.totalorder %s39, 1
      %p319 = por %p317, %p318
      %p320 = scmp.ne.s32.totalorder %s311, %s312
      %p321 = scmp.eq.s32.totalorder %s39, 0
      %p322 = por %p320, %p321
      %p323 = scmp.ne.s32.totalorder %s311, %s312
      %p324 = scmp.eq.s32.totalorder %s40, 1
      %p325 = por %p323, %p324
      %p327 = scmp.ne.s32.totalorder %s312, %s326
      %p328 = scmp.eq.s32.totalorder %s40, 0
      %p329 = por %p327, %p328
      %s331 = sadd.s32 %s330, 1
      %p334 = scmp.eq.s32.totalorder %s34, 1
      %p335 = scmp.ne.s32.totalorder %s330, %s332
      %p336 = scmp.eq.s32.totalorder %s34, 0
      %p337 = por %p335, %p336
      %p338 = scmp.ne.s32.totalorder %s330, %s332
      %p339 = scmp.eq.s32.totalorder %s39, 1
      %p340 = por %p338, %p339
      %p341 = scmp.ne.s32.totalorder %s332, %s333
      %p342 = scmp.eq.s32.totalorder %s39, 0
      %p343 = por %p341, %p342
      %p344 = scmp.ne.s32.totalorder %s332, %s333
      %p345 = scmp.eq.s32.totalorder %s40, 1
      %p346 = por %p344, %p345
      %p348 = scmp.ne.s32.totalorder %s333, %s347
      %p349 = scmp.eq.s32.totalorder %s40, 0
      %p350 = por %p348, %p349
      %s351 = ssub.s32 %s34, %s41
      %p352 = scmp.eq.s32.totalorder %s351, 0
      %s354 = sadd.s32 %s353, 1
      %s355 = scalar_select %p352, %s353, %s354
      %p358 = pneg %p352
      %p359 = scmp.eq.s32.totalorder %s34, 1
      %p360 = por %p358, %p359
      %p361 = scmp.ne.s32.totalorder %s353, %s356
      %p362 = scmp.eq.s32.totalorder %s34, 0
      %p363 = por %p361, %p362
      %p364 = scmp.ne.s32.totalorder %s353, %s356
      %p365 = scmp.eq.s32.totalorder %s39, 1
      %p366 = por %p364, %p365
      %p367 = scmp.ne.s32.totalorder %s356, %s357
      %p368 = scmp.eq.s32.totalorder %s39, 0
      %p369 = por %p367, %p368
      %p370 = scmp.ne.s32.totalorder %s356, %s357
      %p371 = scmp.eq.s32.totalorder %s40, 1
      %p372 = por %p370, %p371
      %p374 = scmp.ne.s32.totalorder %s357, %s373
      %p375 = scmp.eq.s32.totalorder %s40, 0
      %p376 = por %p374, %p375
      %p377 = scmp.le.s32.totalorder 1, %s34
      %p378 = scmp.lt.s32.totalorder %s34, 3
      %p379 = pnand %p377, %p378
      %p380 = pneg %p379
      // Predicated region
      $region9: #{tpu_custom_call.1} parent=5 // pred_check
        _
      $region10: #{tpu_custom_call.1} parent=5 // pred_check_branch
        %382 = sbr.rel (%p379) target = $region12
      $region11: #{tpu_custom_call.1} parent=5 // pred_region
        %s383 = ssub.s32 %s34, 1
        // Predicated region
        $region13: #{tpu_custom_call.1} parent=11 // pred_check
          %p384 = pneg %p55
        $region14: #{tpu_custom_call.1} parent=11 // pred_check_branch
          %386 = sbr.rel (%p384) target = $region16
        $region15: #{tpu_custom_call.1} parent=11 // pred_region
          %388 = vsyncadd [#allocation6], 0
          %s390 = sshll.u32 %s0, 4
          %s391 = int_to_ptr.hbm [resolvable:$true] %s390
          %393 = dma.hbm_to_smem %s391, 16, [#allocation3], [#allocation6]
        $region16: #{tpu_custom_call.1} parent=11 // pred_fallthru
          _
        // Predicated region
        $region17: #{tpu_custom_call.1} parent=11 // pred_check
          %p394 = pneg %p76
        $region18: #{tpu_custom_call.1} parent=11 // pred_check_branch
          %396 = sbr.rel (%p394) target = $region20
        $region19: #{tpu_custom_call.1} parent=11 // pred_region
          %398 = vsyncadd [#allocation9], 0
          %s400 = sshll.u32 %s1, 4
          %s401 = int_to_ptr.hbm [resolvable:$true] %s400
          %403 = dma.hbm_to_smem %s401, 16, [#allocation8], [#allocation9]
        $region20: #{tpu_custom_call.1} parent=11 // pred_fallthru
          _
        // Predicated region
        $region21: #{tpu_custom_call.1} parent=11 // pred_check
          %p404 = pneg %p97
        $region22: #{tpu_custom_call.1} parent=11 // pred_check_branch
          %406 = sbr.rel (%p404) target = $region24
        $region23: #{tpu_custom_call.1} parent=11 // pred_region
          %408 = vsyncadd [#allocation7], 0
          %s410 = sshll.u32 %s2, 4
          %s411 = int_to_ptr.vmem [resolvable:$true] %s410
          %413 = dma.vmem_to_smem %s411, 16, [#allocation10], [#allocation7]
        $region24: #{tpu_custom_call.1} parent=11 // pred_fallthru
          _
        // Predicated region
        $region25: #{tpu_custom_call.1} parent=11 // pred_check
          %p414 = pneg %p196
        $region26: #{tpu_custom_call.1} parent=11 // pred_check_branch
          %416 = sbr.rel (%p414) target = $region28
        $region27: #{tpu_custom_call.1} parent=11 // pred_region
          %418 = vsyncadd [#allocation16], 0
          %s419 = sshll.u32 %s6, 4
          %s420 = int_to_ptr.hbm [resolvable:$true] %s419
          %s421 = sshll.u32 [#allocation15], 4
          %s422 = int_to_ptr.vmem [resolvable:$true] %s421
          %427 = dma.hbm_to_vmem [thread:$0]  %s420, 1024, %s422, [#allocation16], 64, 64, 4
        $region28: #{tpu_custom_call.1} parent=11 // pred_fallthru
          _
        // Predicated region
        $region29: #{tpu_custom_call.1} parent=11 // pred_check
          %p428 = pneg %p217
        $region30: #{tpu_custom_call.1} parent=11 // pred_check_branch
          %430 = sbr.rel (%p428) target = $region32
        $region31: #{tpu_custom_call.1} parent=11 // pred_region
          _
        $region32: #{tpu_custom_call.1} parent=11 // pred_fallthru
          _
        // Predicated region
        $region33: #{tpu_custom_call.1} parent=11 // pred_check
          %p431 = pneg %p238
        $region34: #{tpu_custom_call.1} parent=11 // pred_check_branch
          %433 = sbr.rel (%p431) target = $region36
        $region35: #{tpu_custom_call.1} parent=11 // pred_region
          %435 = vsyncadd [#allocation16], 0
          %s436 = sshll.u32 %s8, 4
          %s437 = int_to_ptr.hbm [resolvable:$true] %s436
          %s438 = sshll.u32 [#allocation17], 4
          %s439 = int_to_ptr.vmem [resolvable:$true] %s438
          %444 = dma.hbm_to_vmem [thread:$0]  %s437, 1024, %s439, [#allocation16], 64, 64, 4
        $region36: #{tpu_custom_call.1} parent=11 // pred_fallthru
          _
        // Predicated region
        $region37: #{tpu_custom_call.1} parent=11 // pred_check
          %p445 = pneg %p259
        $region38: #{tpu_custom_call.1} parent=11 // pred_check_branch
          %447 = sbr.rel (%p445) target = $region40
        $region39: #{tpu_custom_call.1} parent=11 // pred_region
          _
        $region40: #{tpu_custom_call.1} parent=11 // pred_fallthru
          _
        // Predicated region
        $region41: #{tpu_custom_call.1} parent=11 // pred_check
          %p448 = pneg %p280
        $region42: #{tpu_custom_call.1} parent=11 // pred_check_branch
          %450 = sbr.rel (%p448) target = $region44
        $region43: #{tpu_custom_call.1} parent=11 // pred_region
          %452 = vsyncadd [#allocation19], 0
          %s453 = sshll.u32 %s10, 4
          %s454 = int_to_ptr.hbm [resolvable:$true] %s453
          %s455 = sshll.u32 [#allocation18], 4
          %s456 = int_to_ptr.vmem [resolvable:$true] %s455
          %461 = dma.hbm_to_vmem [thread:$0]  %s454, 1024, %s456, [#allocation19], 64, 64, 4
        $region44: #{tpu_custom_call.1} parent=11 // pred_fallthru
          _
        // Predicated region
        $region45: #{tpu_custom_call.1} parent=11 // pred_check
          %p462 = pneg %p301
        $region46: #{tpu_custom_call.1} parent=11 // pred_check_branch
          %464 = sbr.rel (%p462) target = $region48
        $region47: #{tpu_custom_call.1} parent=11 // pred_region
          _
        $region48: #{tpu_custom_call.1} parent=11 // pred_fallthru
          _
        // Predicated region
        $region49: #{tpu_custom_call.1} parent=11 // pred_check
          %p465 = pneg %p322
        $region50: #{tpu_custom_call.1} parent=11 // pred_check_branch
          %467 = sbr.rel (%p465) target = $region52
        $region51: #{tpu_custom_call.1} parent=11 // pred_region
          %469 = vsyncadd [#allocation19], 0
          %s470 = sshll.u32 %s12, 4
          %s471 = int_to_ptr.hbm [resolvable:$true] %s470
          %s472 = sshll.u32 [#allocation20], 4
          %s473 = int_to_ptr.vmem [resolvable:$true] %s472
          %478 = dma.hbm_to_vmem [thread:$0]  %s471, 1024, %s473, [#allocation19], 64, 64, 4
        $region52: #{tpu_custom_call.1} parent=11 // pred_fallthru
          _
        // Predicated region
        $region53: #{tpu_custom_call.1} parent=11 // pred_check
          %p479 = pneg %p343
        $region54: #{tpu_custom_call.1} parent=11 // pred_check_branch
          %481 = sbr.rel (%p479) target = $region56
        $region55: #{tpu_custom_call.1} parent=11 // pred_region
          _
        $region56: #{tpu_custom_call.1} parent=11 // pred_fallthru
          _
      $region12: #{tpu_custom_call.1} parent=5 // pred_fallthru
        _
      %p482 = scmp.lt.s32.totalorder %s34, 2
      // Predicated region
      $region57: #{tpu_custom_call.1} parent=5 // pred_check
        %p483 = pneg %p482
      $region58: #{tpu_custom_call.1} parent=5 // pred_check_branch
        %485 = sbr.rel (%p483) target = $region60
      $region59: #{tpu_custom_call.1} parent=5 // pred_region
        // Predicated region
        $region61: #{tpu_custom_call.1} parent=59 // pred_check
          %p486 = pneg %p117
        $region62: #{tpu_custom_call.1} parent=59 // pred_check_branch
          %488 = sbr.rel (%p486) target = $region64
        $region63: #{tpu_custom_call.1} parent=59 // pred_region
          %s489 = sand.u32 %s107, 1
          %s490 = scalar_lea.sflag [#allocation4], %s489
          %s491 = sand.u32 %s107, 1
          %s492 = smul.addr %s491, 8
          %s493 = scalar_lea.vmem [#allocation11], %s492
          %495 = vsyncadd %s490, 0
          %s496 = smul.addr %s34, 2
          %s497 = smul.addr %s496, 4
          %s498 = scalar_lea.hbm %s3, %s497
          %s499 = sshll.u32 %s498, 4
          %s500 = int_to_ptr.hbm [resolvable:$true] %s499
          %s501 = sshll.u32 %s493, 4
          %s502 = int_to_ptr.vmem [resolvable:$true] %s501
          %507 = dma.hbm_to_vmem [thread:$0]  %s500, 128, %s502, %s490, 64, 64, 4
        $region64: #{tpu_custom_call.1} parent=59 // pred_fallthru
          _
        // Predicated region
        $region65: #{tpu_custom_call.1} parent=59 // pred_check
          %p508 = pneg %p143
        $region66: #{tpu_custom_call.1} parent=59 // pred_check_branch
          %510 = sbr.rel (%p508) target = $region68
        $region67: #{tpu_custom_call.1} parent=59 // pred_region
          %s511 = sand.u32 %s34, 1
          %s512 = scalar_lea.sflag [#allocation13], %s511
          %s513 = sand.u32 %s133, 1
          %s514 = smul.addr %s513, 16
          %s515 = scalar_lea.vmem [#allocation12], %s514
          %517 = vsyncadd %s512, 0
          %s518 = smul.addr %s34, 4
          %s519 = smul.addr %s518, 4
          %s520 = scalar_lea.hbm %s4, %s519
          %s521 = sshll.u32 %s520, 4
          %s522 = int_to_ptr.hbm [resolvable:$true] %s521
          %s523 = sshll.u32 %s515, 4
          %s524 = int_to_ptr.vmem [resolvable:$true] %s523
          %529 = dma.hbm_to_vmem [thread:$0]  %s522, 256, %s524, %s512, 64, 64, 4
        $region68: #{tpu_custom_call.1} parent=59 // pred_fallthru
          _
        // Predicated region
        $region69: #{tpu_custom_call.1} parent=59 // pred_check
          %p530 = pneg %p169
        $region70: #{tpu_custom_call.1} parent=59 // pred_check_branch
          %532 = sbr.rel (%p530) target = $region72
        $region71: #{tpu_custom_call.1} parent=59 // pred_region
          %s533 = sand.u32 %s34, 1
          %s534 = scalar_lea.sflag [#allocation13], %s533
          %s535 = sand.u32 %s159, 1
          %s536 = smul.addr %s535, 16
          %s537 = scalar_lea.vmem [#allocation14], %s536
          %539 = vsyncadd %s534, 0
          %s540 = smul.addr %s34, 4
          %s541 = smul.addr %s540, 4
          %s542 = scalar_lea.hbm %s5, %s541
          %s543 = sshll.u32 %s542, 4
          %s544 = int_to_ptr.hbm [resolvable:$true] %s543
          %s545 = sshll.u32 %s537, 4
          %s546 = int_to_ptr.vmem [resolvable:$true] %s545
          %551 = dma.hbm_to_vmem [thread:$0]  %s544, 256, %s546, %s534, 64, 64, 4
        $region72: #{tpu_custom_call.1} parent=59 // pred_fallthru
          _
      $region60: #{tpu_custom_call.1} parent=5 // pred_fallthru
        _
      %p552 = scmp.le.s32.totalorder 1, %s34
      %p553 = scmp.lt.s32.totalorder %s34, 3
      %p554 = pnand %p552, %p553
      %p555 = pneg %p554
      // Predicated region
      $region73: #{tpu_custom_call.1} parent=5 // pred_check
        _
      $region74: #{tpu_custom_call.1} parent=5 // pred_check_branch
        %557 = sbr.rel (%p554) target = $region76
      $region75: #{tpu_custom_call.1} parent=5 // pred_region
        %s558 = ssub.s32 %s34, 1
        // Predicated region
        $region77: #{tpu_custom_call.1} parent=75 // pred_check
          %p559 = pneg %p55
        $region78: #{tpu_custom_call.1} parent=75 // pred_check_branch
          %561 = sbr.rel (%p559) target = $region80
        $region79: #{tpu_custom_call.1} parent=75 // pred_region
          %563 = dma.done [#allocation6], 16
        $region80: #{tpu_custom_call.1} parent=75 // pred_fallthru
          _
        // Predicated region
        $region81: #{tpu_custom_call.1} parent=75 // pred_check
          %p564 = pneg %p76
        $region82: #{tpu_custom_call.1} parent=75 // pred_check_branch
          %566 = sbr.rel (%p564) target = $region84
        $region83: #{tpu_custom_call.1} parent=75 // pred_region
          %568 = dma.done [#allocation9], 16
        $region84: #{tpu_custom_call.1} parent=75 // pred_fallthru
          _
        // Predicated region
        $region85: #{tpu_custom_call.1} parent=75 // pred_check
          %p569 = pneg %p97
        $region86: #{tpu_custom_call.1} parent=75 // pred_check_branch
          %571 = sbr.rel (%p569) target = $region88
        $region87: #{tpu_custom_call.1} parent=75 // pred_region
          %573 = dma.done [#allocation7], 16
        $region88: #{tpu_custom_call.1} parent=75 // pred_fallthru
          _
        %s574 = sand.u32 %s110, 1
        %s575 = scalar_lea.sflag [#allocation4], %s574
        %s576 = sand.u32 %s110, 1
        %s577 = smul.addr %s576, 8
        %s578 = scalar_lea.vmem [#allocation11], %s577
        // Predicated region
        $region89: #{tpu_custom_call.1} parent=75 // pred_check
          %p579 = pneg %p123
        $region90: #{tpu_custom_call.1} parent=75 // pred_check_branch
          %581 = sbr.rel (%p579) target = $region92
        $region91: #{tpu_custom_call.1} parent=75 // pred_region
          %583 = dma.done %s575, 128
        $region92: #{tpu_custom_call.1} parent=75 // pred_fallthru
          _
        %s584 = sand.u32 %s39, 1
        %s585 = scalar_lea.sflag [#allocation13], %s584
        %s586 = sand.u32 %s136, 1
        %s587 = smul.addr %s586, 16
        %s588 = scalar_lea.vmem [#allocation12], %s587
        // Predicated region
        $region93: #{tpu_custom_call.1} parent=75 // pred_check
          %p589 = pneg %p149
        $region94: #{tpu_custom_call.1} parent=75 // pred_check_branch
          %591 = sbr.rel (%p589) target = $region96
        $region95: #{tpu_custom_call.1} parent=75 // pred_region
          %593 = dma.done %s585, 256
        $region96: #{tpu_custom_call.1} parent=75 // pred_fallthru
          _
        %s594 = sand.u32 %s39, 1
        %s595 = scalar_lea.sflag [#allocation13], %s594
        %s596 = sand.u32 %s162, 1
        %s597 = smul.addr %s596, 16
        %s598 = scalar_lea.vmem [#allocation14], %s597
        // Predicated region
        $region97: #{tpu_custom_call.1} parent=75 // pred_check
          %p599 = pneg %p175
        $region98: #{tpu_custom_call.1} parent=75 // pred_check_branch
          %601 = sbr.rel (%p599) target = $region100
        $region99: #{tpu_custom_call.1} parent=75 // pred_region
          %603 = dma.done %s595, 256
        $region100: #{tpu_custom_call.1} parent=75 // pred_fallthru
          _
        // Predicated region
        $region101: #{tpu_custom_call.1} parent=75 // pred_check
          %p604 = pneg %p196
        $region102: #{tpu_custom_call.1} parent=75 // pred_check_branch
          %606 = sbr.rel (%p604) target = $region104
        $region103: #{tpu_custom_call.1} parent=75 // pred_region
          %608 = dma.done [#allocation16], 1024
        $region104: #{tpu_custom_call.1} parent=75 // pred_fallthru
          _
        // Predicated region
        $region105: #{tpu_custom_call.1} parent=75 // pred_check
          %p609 = pneg %p238
        $region106: #{tpu_custom_call.1} parent=75 // pred_check_branch
          %611 = sbr.rel (%p609) target = $region108
        $region107: #{tpu_custom_call.1} parent=75 // pred_region
          %613 = dma.done [#allocation16], 1024
        $region108: #{tpu_custom_call.1} parent=75 // pred_fallthru
          _
        // Predicated region
        $region109: #{tpu_custom_call.1} parent=75 // pred_check
          %p614 = pneg %p280
        $region110: #{tpu_custom_call.1} parent=75 // pred_check_branch
          %616 = sbr.rel (%p614) target = $region112
        $region111: #{tpu_custom_call.1} parent=75 // pred_region
          %618 = dma.done [#allocation19], 1024
        $region112: #{tpu_custom_call.1} parent=75 // pred_fallthru
          _
        // Predicated region
        $region113: #{tpu_custom_call.1} parent=75 // pred_check
          %p619 = pneg %p322
        $region114: #{tpu_custom_call.1} parent=75 // pred_check_branch
          %621 = sbr.rel (%p619) target = $region116
        $region115: #{tpu_custom_call.1} parent=75 // pred_region
          %623 = dma.done [#allocation19], 1024
        $region116: #{tpu_custom_call.1} parent=75 // pred_fallthru
          _
        %624 = sfence
        %p625 = pneg %p55
        %p626 = pneg %p52
        %p627 = pneg %p76
        %p628 = pneg %p73
        %p629 = pneg %p97
        %p630 = pneg %p94
        %s631 = sand.u32 %s110, 1
        %s632 = scalar_lea.sflag [#allocation4], %s631
        %s633 = sand.u32 %s110, 1
        %s634 = smul.addr %s633, 8
        %s635 = scalar_lea.vmem [#allocation11], %s634
        %p636 = pneg %p123
        %p637 = pneg %p120
        %s638 = sand.u32 %s39, 1
        %s639 = scalar_lea.sflag [#allocation13], %s638
        %s640 = sand.u32 %s136, 1
        %s641 = smul.addr %s640, 16
        %s642 = scalar_lea.vmem [#allocation12], %s641
        %p643 = pneg %p149
        %p644 = pneg %p146
        %s645 = sand.u32 %s39, 1
        %s646 = scalar_lea.sflag [#allocation13], %s645
        %s647 = sand.u32 %s162, 1
        %s648 = smul.addr %s647, 16
        %s649 = scalar_lea.vmem [#allocation14], %s648
        %p650 = pneg %p175
        %p651 = pneg %p172
        %p652 = pneg %p196
        %p653 = pneg %p193
        %p654 = pneg %p217
        %p655 = pneg %p214
        %p656 = pneg %p238
        %p657 = pneg %p235
        %p658 = pneg %p259
        %p659 = pneg %p256
        %p660 = pneg %p280
        %p661 = pneg %p277
        %p662 = pneg %p301
        %p663 = pneg %p298
        %p664 = pneg %p322
        %p665 = pneg %p319
        %p666 = pneg %p343
        %p667 = pneg %p340
        %p668 = pneg %p369
        %p669 = pneg %p366
        %s670 = sand.u32 %s356, 1
        %s671 = scalar_lea.sflag [#allocation5], %s670
        %s672 = sand.u32 %s356, 1
        %s673 = smul.addr %s672, 32
        %s674 = scalar_lea.vmem [#allocation21], %s673
        %v676 = vld [vmem:[%s578] sm:$0xf]
        %v677 = vld [vmem:[%s578 + $0x4] sm:$0xf]
        %v678 = vld [vmem:[#allocation15] sm:$0xf]
        %v679 = vld [vmem:[#allocation15 + $0x4] sm:$0xf]
        %v680 = vld [vmem:[#allocation15 + $0x8] sm:$0xf]
        %v681 = vld [vmem:[#allocation15 + $0xc] sm:$0xf]
        %v682 = vld [vmem:[#allocation15 + $0x10] sm:$0xf]
        %v683 = vld [vmem:[#allocation15 + $0x14] sm:$0xf]
        %v684 = vld [vmem:[#allocation15 + $0x18] sm:$0xf]
        %v685 = vld [vmem:[#allocation15 + $0x1c] sm:$0xf]
        %v686 = vld [vmem:[#allocation15 + $0x20] sm:$0xf]
        %v687 = vld [vmem:[#allocation15 + $0x24] sm:$0xf]
        %v688 = vld [vmem:[#allocation15 + $0x28] sm:$0xf]
        %v689 = vld [vmem:[#allocation15 + $0x2c] sm:$0xf]
        %v690 = vld [vmem:[#allocation15 + $0x30] sm:$0xf]
        %v691 = vld [vmem:[#allocation15 + $0x34] sm:$0xf]
        %v692 = vld [vmem:[#allocation15 + $0x38] sm:$0xf]
        %v693 = vld [vmem:[#allocation15 + $0x3c] sm:$0xf]
        %v694 = vld [vmem:[%s7] sm:$0x1]
        %v696 = vperm.slane %v694, 0
        %v700 = vunpack.c.l.b16 %v676
        %v701 = vunpack.c.l.b16 %v677
        %v702 = vpack.c.b16 %v701, %v700
        %v720 = vunpack.c.l.b16 %v678
        %v721 = vunpack.c.l.b16 %v679
        %v722 = vunpack.c.l.b16 %v680
        %v723 = vunpack.c.l.b16 %v681
        %v724 = vunpack.c.l.b16 %v682
        %v725 = vunpack.c.l.b16 %v683
        %v726 = vunpack.c.l.b16 %v684
        %v727 = vunpack.c.l.b16 %v685
        %v728 = vunpack.c.l.b16 %v686
        %v729 = vunpack.c.l.b16 %v687
        %v730 = vunpack.c.l.b16 %v688
        %v731 = vunpack.c.l.b16 %v689
        %v732 = vunpack.c.l.b16 %v690
        %v733 = vunpack.c.l.b16 %v691
        %v734 = vunpack.c.l.b16 %v692
        %v735 = vunpack.c.l.b16 %v693
        %v736 = vpack.c.b16 %v721, %v720
        %v737 = vpack.c.b16 %v723, %v722
        %v738 = vpack.c.b16 %v725, %v724
        %v739 = vpack.c.b16 %v727, %v726
        %v740 = vpack.c.b16 %v729, %v728
        %v741 = vpack.c.b16 %v731, %v730
        %v742 = vpack.c.b16 %v733, %v732
        %v743 = vpack.c.b16 %v735, %v734
        %752 = vmatpush.bf16.msra.mxu0 %v743
        %753 = vmatpush.bf16.msra.mxu0 %v742
        %754 = vmatpush.bf16.msra.mxu0 %v741
        %755 = vmatpush.bf16.msra.mxu0 %v740
        %756 = vmatpush.bf16.msra.mxu0 %v739
        %757 = vmatpush.bf16.msra.mxu0 %v738
        %758 = vmatpush.bf16.msra.mxu0 %v737
        %759 = vmatpush.bf16.msra.mxu0 %v736
        %760 = vmatmul.bf16.gmra.mxu0 %v702
        %v761 = vpop.f32.mrf.mxu0
        %v762 = vadd.f32 %v696, %v761
        %v763 = vpop.f32.mrf.mxu0
        %v764 = vadd.f32 %v696, %v763
        %765 = vdwg.mxu0
        %v766 = vld [vmem:[%s588] sm:$0xf]
        %v767 = vld [vmem:[%s588 + $0x4] sm:$0xf]
        %v768 = vld [vmem:[%s588 + $0x8] sm:$0xf]
        %v769 = vld [vmem:[%s588 + $0xc] sm:$0xf]
        %v770 = vld [vmem:[#allocation17] sm:$0xf]
        %v771 = vld [vmem:[#allocation17 + $0x4] sm:$0xf]
        %v772 = vld [vmem:[#allocation17 + $0x8] sm:$0xf]
        %v773 = vld [vmem:[#allocation17 + $0xc] sm:$0xf]
        %v774 = vld [vmem:[#allocation17 + $0x10] sm:$0xf]
        %v775 = vld [vmem:[#allocation17 + $0x14] sm:$0xf]
        %v776 = vld [vmem:[#allocation17 + $0x18] sm:$0xf]
        %v777 = vld [vmem:[#allocation17 + $0x1c] sm:$0xf]
        %v778 = vld [vmem:[#allocation17 + $0x20] sm:$0xf]
        %v779 = vld [vmem:[#allocation17 + $0x24] sm:$0xf]
        %v780 = vld [vmem:[#allocation17 + $0x28] sm:$0xf]
        %v781 = vld [vmem:[#allocation17 + $0x2c] sm:$0xf]
        %v782 = vld [vmem:[#allocation17 + $0x30] sm:$0xf]
        %v783 = vld [vmem:[#allocation17 + $0x34] sm:$0xf]
        %v784 = vld [vmem:[#allocation17 + $0x38] sm:$0xf]
        %v785 = vld [vmem:[#allocation17 + $0x3c] sm:$0xf]
        %v786 = vld [vmem:[%s9] sm:$0x1]
        %v788 = vperm.slane %v786, 0
        %v794 = vunpack.c.l.b16 %v766
        %v795 = vunpack.c.l.b16 %v767
        %v796 = vunpack.c.l.b16 %v768
        %v797 = vunpack.c.l.b16 %v769
        %v798 = vpack.c.b16 %v795, %v794
        %v799 = vpack.c.b16 %v797, %v796
        %v818 = vunpack.c.l.b16 %v770
        %v819 = vunpack.c.l.b16 %v771
        %v820 = vunpack.c.l.b16 %v772
        %v821 = vunpack.c.l.b16 %v773
        %v822 = vunpack.c.l.b16 %v774
        %v823 = vunpack.c.l.b16 %v775
        %v824 = vunpack.c.l.b16 %v776
        %v825 = vunpack.c.l.b16 %v777
        %v826 = vunpack.c.l.b16 %v778
        %v827 = vunpack.c.l.b16 %v779
        %v828 = vunpack.c.l.b16 %v780
        %v829 = vunpack.c.l.b16 %v781
        %v830 = vunpack.c.l.b16 %v782
        %v831 = vunpack.c.l.b16 %v783
        %v832 = vunpack.c.l.b16 %v784
        %v833 = vunpack.c.l.b16 %v785
        %v834 = vpack.c.b16 %v819, %v818
        %v835 = vpack.c.b16 %v821, %v820
        %v836 = vpack.c.b16 %v823, %v822
        %v837 = vpack.c.b16 %v825, %v824
        %v838 = vpack.c.b16 %v827, %v826
        %v839 = vpack.c.b16 %v829, %v828
        %v840 = vpack.c.b16 %v831, %v830
        %v841 = vpack.c.b16 %v833, %v832
        %850 = vmatpush.bf16.msra.mxu0 %v841
        %851 = vmatpush.bf16.msra.mxu0 %v840
        %852 = vmatpush.bf16.msra.mxu0 %v839
        %853 = vmatpush.bf16.msra.mxu0 %v838
        %854 = vmatpush.bf16.msra.mxu0 %v837
        %855 = vmatpush.bf16.msra.mxu0 %v836
        %856 = vmatpush.bf16.msra.mxu0 %v835
        %857 = vmatpush.bf16.msra.mxu0 %v834
        %858 = vmatmul.bf16.gmra.mxu0 %v798
        %v859 = vpop.f32.mrf.mxu0
        %v860 = vadd.f32 %v788, %v859
        %v861 = vpop.f32.mrf.mxu0
        %v862 = vadd.f32 %v788, %v861
        %863 = vmatmul.bf16.gmra.mxu0 %v799
        %v864 = vpop.f32.mrf.mxu0
        %v865 = vadd.f32 %v788, %v864
        %v866 = vpop.f32.mrf.mxu0
        %v867 = vadd.f32 %v788, %v866
        %868 = vdwg.mxu0
        %v869 = vld [vmem:[%s598] sm:$0xf]
        %v870 = vld [vmem:[%s598 + $0x4] sm:$0xf]
        %v871 = vld [vmem:[%s598 + $0x8] sm:$0xf]
        %v872 = vld [vmem:[%s598 + $0xc] sm:$0xf]
        %v873 = vld [vmem:[#allocation18] sm:$0xf]
        %v874 = vld [vmem:[#allocation18 + $0x4] sm:$0xf]
        %v875 = vld [vmem:[#allocation18 + $0x8] sm:$0xf]
        %v876 = vld [vmem:[#allocation18 + $0xc] sm:$0xf]
        %v877 = vld [vmem:[#allocation18 + $0x10] sm:$0xf]
        %v878 = vld [vmem:[#allocation18 + $0x14] sm:$0xf]
        %v879 = vld [vmem:[#allocation18 + $0x18] sm:$0xf]
        %v880 = vld [vmem:[#allocation18 + $0x1c] sm:$0xf]
        %v881 = vld [vmem:[#allocation18 + $0x20] sm:$0xf]
        %v882 = vld [vmem:[#allocation18 + $0x24] sm:$0xf]
        %v883 = vld [vmem:[#allocation18 + $0x28] sm:$0xf]
        %v884 = vld [vmem:[#allocation18 + $0x2c] sm:$0xf]
        %v885 = vld [vmem:[#allocation18 + $0x30] sm:$0xf]
        %v886 = vld [vmem:[#allocation18 + $0x34] sm:$0xf]
        %v887 = vld [vmem:[#allocation18 + $0x38] sm:$0xf]
        %v888 = vld [vmem:[#allocation18 + $0x3c] sm:$0xf]
        %v889 = vld [vmem:[%s11] sm:$0x1]
        %v891 = vperm.slane %v889, 0
        %v897 = vunpack.c.l.b16 %v869
        %v898 = vunpack.c.l.b16 %v870
        %v899 = vunpack.c.l.b16 %v871
        %v900 = vunpack.c.l.b16 %v872
        %v901 = vpack.c.b16 %v898, %v897
        %v902 = vpack.c.b16 %v900, %v899
        %v921 = vunpack.c.l.b16 %v873
        %v922 = vunpack.c.l.b16 %v874
        %v923 = vunpack.c.l.b16 %v875
        %v924 = vunpack.c.l.b16 %v876
        %v925 = vunpack.c.l.b16 %v877
        %v926 = vunpack.c.l.b16 %v878
        %v927 = vunpack.c.l.b16 %v879
        %v928 = vunpack.c.l.b16 %v880
        %v929 = vunpack.c.l.b16 %v881
        %v930 = vunpack.c.l.b16 %v882
        %v931 = vunpack.c.l.b16 %v883
        %v932 = vunpack.c.l.b16 %v884
        %v933 = vunpack.c.l.b16 %v885
        %v934 = vunpack.c.l.b16 %v886
        %v935 = vunpack.c.l.b16 %v887
        %v936 = vunpack.c.l.b16 %v888
        %v937 = vpack.c.b16 %v922, %v921
        %v938 = vpack.c.b16 %v924, %v923
        %v939 = vpack.c.b16 %v926, %v925
        %v940 = vpack.c.b16 %v928, %v927
        %v941 = vpack.c.b16 %v930, %v929
        %v942 = vpack.c.b16 %v932, %v931
        %v943 = vpack.c.b16 %v934, %v933
        %v944 = vpack.c.b16 %v936, %v935
        %953 = vmatpush.bf16.msra.mxu0 %v944
        %954 = vmatpush.bf16.msra.mxu0 %v943
        %955 = vmatpush.bf16.msra.mxu0 %v942
        %956 = vmatpush.bf16.msra.mxu0 %v941
        %957 = vmatpush.bf16.msra.mxu0 %v940
        %958 = vmatpush.bf16.msra.mxu0 %v939
        %959 = vmatpush.bf16.msra.mxu0 %v938
        %960 = vmatpush.bf16.msra.mxu0 %v937
        %961 = vmatmul.bf16.gmra.mxu0 %v901
        %v962 = vpop.f32.mrf.mxu0
        %v963 = vadd.f32 %v891, %v962
        %v964 = vpop.f32.mrf.mxu0
        %v965 = vadd.f32 %v891, %v964
        %966 = vmatmul.bf16.gmra.mxu0 %v902
        %v967 = vpop.f32.mrf.mxu0
        %v968 = vadd.f32 %v891, %v967
        %v969 = vpop.f32.mrf.mxu0
        %v970 = vadd.f32 %v891, %v969
        %971 = vdwg.mxu0
        %v972 = vpack.c.bf16 %v762, %v762
        %v973 = vpack.c.bf16 %v764, %v764
        %976 = vrot.lane.b32.xlu0 %v972, 96
        %v977 = vpop.permute.xlu0 %976
        %978 = vrot.lane.b32.xlu0 %v973, 96
        %v979 = vpop.permute.xlu0 %978
        %980 = vrot.lane.b32.xlu0 %v972, 64
        %v981 = vpop.permute.xlu0 %980
        %982 = vrot.lane.b32.xlu0 %v973, 64
        %v983 = vpop.permute.xlu0 %982
        %984 = vrot.lane.b32.xlu0 %v972, 32
        %v985 = vpop.permute.xlu0 %984
        %986 = vrot.lane.b32.xlu0 %v973, 32
        %v987 = vpop.permute.xlu0 %986
        %v988 = vpack.c.bf16 %v860, %v860
        %v989 = vpack.c.bf16 %v862, %v862
        %v990 = vpack.c.bf16 %v865, %v865
        %v991 = vpack.c.bf16 %v867, %v867
        %996 = vrot.lane.b32.xlu0 %v988, 96
        %v997 = vpop.permute.xlu0 %996
        %998 = vrot.lane.b32.xlu0 %v989, 96
        %v999 = vpop.permute.xlu0 %998
        %1000 = vrot.lane.b32.xlu0 %v990, 96
        %v1001 = vpop.permute.xlu0 %1000
        %1002 = vrot.lane.b32.xlu0 %v991, 96
        %v1003 = vpop.permute.xlu0 %1002
        %1004 = vrot.lane.b32.xlu0 %v988, 64
        %v1005 = vpop.permute.xlu0 %1004
        %1006 = vrot.lane.b32.xlu0 %v989, 64
        %v1007 = vpop.permute.xlu0 %1006
        %1008 = vrot.lane.b32.xlu0 %v990, 64
        %v1009 = vpop.permute.xlu0 %1008
        %1010 = vrot.lane.b32.xlu0 %v991, 64
        %v1011 = vpop.permute.xlu0 %1010
        %1012 = vrot.lane.b32.xlu0 %v988, 32
        %v1013 = vpop.permute.xlu0 %1012
        %1014 = vrot.lane.b32.xlu0 %v989, 32
        %v1015 = vpop.permute.xlu0 %1014
        %1016 = vrot.lane.b32.xlu0 %v990, 32
        %v1017 = vpop.permute.xlu0 %1016
        %1018 = vrot.lane.b32.xlu0 %v991, 32
        %v1019 = vpop.permute.xlu0 %1018
        %v1020 = vpack.c.bf16 %v963, %v963
        %v1021 = vpack.c.bf16 %v965, %v965
        %v1022 = vpack.c.bf16 %v968, %v968
        %v1023 = vpack.c.bf16 %v970, %v970
        %1028 = vrot.lane.b32.xlu0 %v1020, 96
        %v1029 = vpop.permute.xlu0 %1028
        %1030 = vrot.lane.b32.xlu0 %v1021, 96
        %v1031 = vpop.permute.xlu0 %1030
        %1032 = vrot.lane.b32.xlu0 %v1022, 96
        %v1033 = vpop.permute.xlu0 %1032
        %1034 = vrot.lane.b32.xlu0 %v1023, 96
        %v1035 = vpop.permute.xlu0 %1034
        %1036 = vrot.lane.b32.xlu0 %v1020, 64
        %v1037 = vpop.permute.xlu0 %1036
        %1038 = vrot.lane.b32.xlu0 %v1021, 64
        %v1039 = vpop.permute.xlu0 %1038
        %1040 = vrot.lane.b32.xlu0 %v1022, 64
        %v1041 = vpop.permute.xlu0 %1040
        %1042 = vrot.lane.b32.xlu0 %v1023, 64
        %v1043 = vpop.permute.xlu0 %1042
        %1044 = vrot.lane.b32.xlu0 %v1020, 32
        %v1045 = vpop.permute.xlu0 %1044
        %1046 = vrot.lane.b32.xlu0 %v1021, 32
        %v1047 = vpop.permute.xlu0 %1046
        %1048 = vrot.lane.b32.xlu0 %v1022, 32
        %v1049 = vpop.permute.xlu0 %1048
        %1050 = vrot.lane.b32.xlu0 %v1023, 32
        %v1051 = vpop.permute.xlu0 %1050
        %v1052 = vunpack.c.l.b16 %v972
        %v1053 = vunpack.c.l.b16 %v973
        %v1054 = vpack.c.b16 %v1053, %v1052
        %v1055 = vunpack.c.l.b16 %v988
        %v1056 = vunpack.c.l.b16 %v989
        %v1057 = vunpack.c.l.b16 %v990
        %v1058 = vunpack.c.l.b16 %v991
        %v1059 = vpack.c.b16 %v1056, %v1055
        %v1060 = vpack.c.b16 %v1058, %v1057
        %vm1061 = vcmask 261120
        %v1063 = vsel %vm1061, %v1054, 0
        %v1066 = vsel %vm1061, %v1059, 0
        %v1069 = vsel %vm1061, %v1060, 0
        %1071 = vmatpush.bf16.xpose.msra.mxu0 0
        %1072 = vmatpush.bf16.xpose.msra.mxu0 0
        %1073 = vmatpush.bf16.xpose.msra.mxu0 0
        %1074 = vmatpush.bf16.xpose.msra.mxu0 0
        %1075 = vmatpush.bf16.xpose.msra.mxu0 0
        %1076 = vmatpush.bf16.xpose.msra.mxu0 0
        %1077 = vmatpush.bf16.xpose.msra.mxu0 %v1069
        %1078 = vmatpush.bf16.xpose.msra.mxu0 %v1066
        %1079 = vmatmul.bf16.gmra.mxu0 %v1063
        %v1080 = vpop.f32.mrf.mxu0
        %v1081 = vadd.f32 0.0, %v1080
        %v1082 = vpop.f32.mrf.mxu0
        %v1083 = vadd.f32 0.0, %v1082
        %1084 = vdwg.mxu0
        %v1085 = vunpack.c.l.b16 %v977
        %v1086 = vunpack.c.l.b16 %v979
        %v1087 = vpack.c.b16 %v1086, %v1085
        %v1088 = vunpack.c.l.b16 %v997
        %v1089 = vunpack.c.l.b16 %v999
        %v1090 = vunpack.c.l.b16 %v1001
        %v1091 = vunpack.c.l.b16 %v1003
        %v1092 = vpack.c.b16 %v1089, %v1088
        %v1093 = vpack.c.b16 %v1091, %v1090
        %v1095 = vsel %vm1061, %v1087, 0
        %v1098 = vsel %vm1061, %v1092, 0
        %v1101 = vsel %vm1061, %v1093, 0
        %1103 = vmatpush.bf16.xpose.msra.mxu0 0
        %1104 = vmatpush.bf16.xpose.msra.mxu0 0
        %1105 = vmatpush.bf16.xpose.msra.mxu0 0
        %1106 = vmatpush.bf16.xpose.msra.mxu0 0
        %1107 = vmatpush.bf16.xpose.msra.mxu0 0
        %1108 = vmatpush.bf16.xpose.msra.mxu0 0
        %1109 = vmatpush.bf16.xpose.msra.mxu0 %v1101
        %1110 = vmatpush.bf16.xpose.msra.mxu0 %v1098
        %1111 = vmatmul.bf16.gmra.mxu0 %v1095
        %v1112 = vpop.f32.mrf.mxu0
        %v1113 = vadd.f32 0.0, %v1112
        %v1114 = vpop.f32.mrf.mxu0
        %v1115 = vadd.f32 0.0, %v1114
        %1116 = vdwg.mxu0
        %v1117 = vunpack.c.l.b16 %v981
        %v1118 = vunpack.c.l.b16 %v983
        %v1119 = vpack.c.b16 %v1118, %v1117
        %v1120 = vunpack.c.l.b16 %v1005
        %v1121 = vunpack.c.l.b16 %v1007
        %v1122 = vunpack.c.l.b16 %v1009
        %v1123 = vunpack.c.l.b16 %v1011
        %v1124 = vpack.c.b16 %v1121, %v1120
        %v1125 = vpack.c.b16 %v1123, %v1122
        %v1127 = vsel %vm1061, %v1119, 0
        %v1130 = vsel %vm1061, %v1124, 0
        %v1133 = vsel %vm1061, %v1125, 0
        %1135 = vmatpush.bf16.xpose.msra.mxu0 0
        %1136 = vmatpush.bf16.xpose.msra.mxu0 0
        %1137 = vmatpush.bf16.xpose.msra.mxu0 0
        %1138 = vmatpush.bf16.xpose.msra.mxu0 0
        %1139 = vmatpush.bf16.xpose.msra.mxu0 0
        %1140 = vmatpush.bf16.xpose.msra.mxu0 0
        %1141 = vmatpush.bf16.xpose.msra.mxu0 %v1133
        %1142 = vmatpush.bf16.xpose.msra.mxu0 %v1130
        %1143 = vmatmul.bf16.gmra.mxu0 %v1127
        %v1144 = vpop.f32.mrf.mxu0
        %v1145 = vadd.f32 0.0, %v1144
        %v1146 = vpop.f32.mrf.mxu0
        %v1147 = vadd.f32 0.0, %v1146
        %1148 = vdwg.mxu0
        %v1149 = vunpack.c.l.b16 %v985
        %v1150 = vunpack.c.l.b16 %v987
        %v1151 = vpack.c.b16 %v1150, %v1149
        %v1152 = vunpack.c.l.b16 %v1013
        %v1153 = vunpack.c.l.b16 %v1015
        %v1154 = vunpack.c.l.b16 %v1017
        %v1155 = vunpack.c.l.b16 %v1019
        %v1156 = vpack.c.b16 %v1153, %v1152
        %v1157 = vpack.c.b16 %v1155, %v1154
        %v1159 = vsel %vm1061, %v1151, 0
        %v1162 = vsel %vm1061, %v1156, 0
        %v1165 = vsel %vm1061, %v1157, 0
        %1167 = vmatpush.bf16.xpose.msra.mxu0 0
        %1168 = vmatpush.bf16.xpose.msra.mxu0 0
        %1169 = vmatpush.bf16.xpose.msra.mxu0 0
        %1170 = vmatpush.bf16.xpose.msra.mxu0 0
        %1171 = vmatpush.bf16.xpose.msra.mxu0 0
        %1172 = vmatpush.bf16.xpose.msra.mxu0 0
        %1173 = vmatpush.bf16.xpose.msra.mxu0 %v1165
        %1174 = vmatpush.bf16.xpose.msra.mxu0 %v1162
        %1175 = vmatmul.bf16.gmra.mxu0 %v1159
        %v1176 = vpop.f32.mrf.mxu0
        %v1177 = vadd.f32 0.0, %v1176
        %v1178 = vpop.f32.mrf.mxu0
        %v1179 = vadd.f32 0.0, %v1178
        %1180 = vdwg.mxu0
        %v1181 = vmul.f32 %v1081, 0.17677669
        %v1182 = vmul.f32 %v1083, 0.17677669
        %v1183 = vmul.f32 %v1113, 0.17677669
        %v1184 = vmul.f32 %v1115, 0.17677669
        %v1185 = vmul.f32 %v1145, 0.17677669
        %v1186 = vmul.f32 %v1147, 0.17677669
        %v1187 = vmul.f32 %v1177, 0.17677669
        %v1188 = vmul.f32 %v1179, 0.17677669
        %v1189 = vsel %vm1061, %v1181, -inf
        %1190 = vmax.xlane.f32.xlu0 %v1189
        %v1191 = vpop.xlane.xlu0 %1190
        %v1192 = vsel %vm1061, %v1182, -inf
        %1193 = vmax.xlane.f32.xlu0 %v1192
        %v1194 = vpop.xlane.xlu0 %1193
        %v1195 = vsel %vm1061, %v1183, -inf
        %1196 = vmax.xlane.f32.xlu0 %v1195
        %v1197 = vpop.xlane.xlu0 %1196
        %v1198 = vsel %vm1061, %v1184, -inf
        %1199 = vmax.xlane.f32.xlu0 %v1198
        %v1200 = vpop.xlane.xlu0 %1199
        %v1201 = vsel %vm1061, %v1185, -inf
        %1202 = vmax.xlane.f32.xlu0 %v1201
        %v1203 = vpop.xlane.xlu0 %1202
        %v1204 = vsel %vm1061, %v1186, -inf
        %1205 = vmax.xlane.f32.xlu0 %v1204
        %v1206 = vpop.xlane.xlu0 %1205
        %v1207 = vsel %vm1061, %v1187, -inf
        %1208 = vmax.xlane.f32.xlu0 %v1207
        %v1209 = vpop.xlane.xlu0 %1208
        %v1210 = vsel %vm1061, %v1188, -inf
        %1211 = vmax.xlane.f32.xlu0 %v1210
        %v1212 = vpop.xlane.xlu0 %1211
        %v1213 = vsub.f32 %v1181, %v1191
        %v1214 = vsub.f32 %v1182, %v1194
        %v1215 = vsub.f32 %v1183, %v1197
        %v1216 = vsub.f32 %v1184, %v1200
        %v1217 = vsub.f32 %v1185, %v1203
        %v1218 = vsub.f32 %v1186, %v1206
        %v1219 = vsub.f32 %v1187, %v1209
        %v1220 = vsub.f32 %v1188, %v1212
        %v1221 = vmul.f32 %v1213, 1.442695
        %v1222 = vpow.pop %v1221
        %v1223 = vmul.f32 %v1214, 1.442695
        %v1224 = vpow.pop %v1223
        %v1225 = vmul.f32 %v1215, 1.442695
        %v1226 = vpow.pop %v1225
        %v1227 = vmul.f32 %v1216, 1.442695
        %v1228 = vpow.pop %v1227
        %v1229 = vmul.f32 %v1217, 1.442695
        %v1230 = vpow.pop %v1229
        %v1231 = vmul.f32 %v1218, 1.442695
        %v1232 = vpow.pop %v1231
        %v1233 = vmul.f32 %v1219, 1.442695
        %v1234 = vpow.pop %v1233
        %v1235 = vmul.f32 %v1220, 1.442695
        %v1236 = vpow.pop %v1235
        %v1237 = vsel %vm1061, %v1222, 0.0
        %1238 = vadd.xlane.f32.xlu0 %v1237
        %v1239 = vpop.xlane.xlu0 %1238
        %v1240 = vsel %vm1061, %v1224, 0.0
        %1241 = vadd.xlane.f32.xlu0 %v1240
        %v1242 = vpop.xlane.xlu0 %1241
        %v1243 = vsel %vm1061, %v1226, 0.0
        %1244 = vadd.xlane.f32.xlu0 %v1243
        %v1245 = vpop.xlane.xlu0 %1244
        %v1246 = vsel %vm1061, %v1228, 0.0
        %1247 = vadd.xlane.f32.xlu0 %v1246
        %v1248 = vpop.xlane.xlu0 %1247
        %v1249 = vsel %vm1061, %v1230, 0.0
        %1250 = vadd.xlane.f32.xlu0 %v1249
        %v1251 = vpop.xlane.xlu0 %1250
        %v1252 = vsel %vm1061, %v1232, 0.0
        %1253 = vadd.xlane.f32.xlu0 %v1252
        %v1254 = vpop.xlane.xlu0 %1253
        %v1255 = vsel %vm1061, %v1234, 0.0
        %1256 = vadd.xlane.f32.xlu0 %v1255
        %v1257 = vpop.xlane.xlu0 %1256
        %v1258 = vsel %vm1061, %v1236, 0.0
        %1259 = vadd.xlane.f32.xlu0 %v1258
        %v1260 = vpop.xlane.xlu0 %1259
        %v1261 = vrcp.pop %v1239
        %v1262 = vrcp.pop %v1242
        %v1263 = vrcp.pop %v1245
        %v1264 = vrcp.pop %v1248
        %v1265 = vrcp.pop %v1251
        %v1266 = vrcp.pop %v1254
        %v1267 = vrcp.pop %v1257
        %v1268 = vrcp.pop %v1260
        %v1269 = vmul.f32 %v1222, %v1261
        %v1270 = vmul.f32 %v1224, %v1262
        %v1271 = vmul.f32 %v1226, %v1263
        %v1272 = vmul.f32 %v1228, %v1264
        %v1273 = vmul.f32 %v1230, %v1265
        %v1274 = vmul.f32 %v1232, %v1266
        %v1275 = vmul.f32 %v1234, %v1267
        %v1276 = vmul.f32 %v1236, %v1268
        %v1277 = vpack.c.bf16 %v1269, %v1269
        %v1278 = vpack.c.bf16 %v1270, %v1270
        %v1279 = vpack.c.bf16 %v1271, %v1271
        %v1280 = vpack.c.bf16 %v1272, %v1272
        %v1281 = vpack.c.bf16 %v1273, %v1273
        %v1282 = vpack.c.bf16 %v1274, %v1274
        %v1283 = vpack.c.bf16 %v1275, %v1275
        %v1284 = vpack.c.bf16 %v1276, %v1276
        %v1287 = vunpack.c.l.b16 %v1277
        %v1288 = vunpack.c.l.b16 %v1278
        %v1289 = vpack.c.b16 %v1288, %v1287
        %v1290 = vunpack.c.l.b16 %v1020
        %v1291 = vunpack.c.l.b16 %v1021
        %v1292 = vunpack.c.l.b16 %v1022
        %v1293 = vunpack.c.l.b16 %v1023
        %v1294 = vpack.c.b16 %v1291, %v1290
        %v1295 = vpack.c.b16 %v1293, %v1292
        %v1299 = vsel %vm1061, %v1289, 0
        %1301 = vmatpush.bf16.msra.mxu0 0
        %1302 = vmatpush.bf16.msra.mxu0 0
        %1303 = vmatpush.bf16.msra.mxu0 0
        %1304 = vmatpush.bf16.msra.mxu0 0
        %1305 = vmatpush.bf16.msra.mxu0 0
        %1306 = vmatpush.bf16.msra.mxu0 0
        %1307 = vmatpush.bf16.msra.mxu0 %v1295
        %1308 = vmatpush.bf16.msra.mxu0 %v1294
        %1309 = vmatmul.bf16.gmra.mxu0 %v1299
        %v1310 = vpop.f32.mrf.mxu0
        %v1311 = vadd.f32 0.0, %v1310
        %v1312 = vpop.f32.mrf.mxu0
        %v1313 = vadd.f32 0.0, %v1312
        %1314 = vdwg.mxu0
        %v1317 = vunpack.c.l.b16 %v1279
        %v1318 = vunpack.c.l.b16 %v1280
        %v1319 = vpack.c.b16 %v1318, %v1317
        %v1320 = vunpack.c.l.b16 %v1029
        %v1321 = vunpack.c.l.b16 %v1031
        %v1322 = vunpack.c.l.b16 %v1033
        %v1323 = vunpack.c.l.b16 %v1035
        %v1324 = vpack.c.b16 %v1321, %v1320
        %v1325 = vpack.c.b16 %v1323, %v1322
        %v1329 = vsel %vm1061, %v1319, 0
        %1331 = vmatpush.bf16.msra.mxu0 0
        %1332 = vmatpush.bf16.msra.mxu0 0
        %1333 = vmatpush.bf16.msra.mxu0 0
        %1334 = vmatpush.bf16.msra.mxu0 0
        %1335 = vmatpush.bf16.msra.mxu0 0
        %1336 = vmatpush.bf16.msra.mxu0 0
        %1337 = vmatpush.bf16.msra.mxu0 %v1325
        %1338 = vmatpush.bf16.msra.mxu0 %v1324
        %1339 = vmatmul.bf16.gmra.mxu0 %v1329
        %v1340 = vpop.f32.mrf.mxu0
        %v1341 = vadd.f32 0.0, %v1340
        %v1342 = vpop.f32.mrf.mxu0
        %v1343 = vadd.f32 0.0, %v1342
        %1344 = vdwg.mxu0
        %v1347 = vunpack.c.l.b16 %v1281
        %v1348 = vunpack.c.l.b16 %v1282
        %v1349 = vpack.c.b16 %v1348, %v1347
        %v1350 = vunpack.c.l.b16 %v1037
        %v1351 = vunpack.c.l.b16 %v1039
        %v1352 = vunpack.c.l.b16 %v1041
        %v1353 = vunpack.c.l.b16 %v1043
        %v1354 = vpack.c.b16 %v1351, %v1350
        %v1355 = vpack.c.b16 %v1353, %v1352
        %v1359 = vsel %vm1061, %v1349, 0
        %1361 = vmatpush.bf16.msra.mxu0 0
        %1362 = vmatpush.bf16.msra.mxu0 0
        %1363 = vmatpush.bf16.msra.mxu0 0
        %1364 = vmatpush.bf16.msra.mxu0 0
        %1365 = vmatpush.bf16.msra.mxu0 0
        %1366 = vmatpush.bf16.msra.mxu0 0
        %1367 = vmatpush.bf16.msra.mxu0 %v1355
        %1368 = vmatpush.bf16.msra.mxu0 %v1354
        %1369 = vmatmul.bf16.gmra.mxu0 %v1359
        %v1370 = vpop.f32.mrf.mxu0
        %v1371 = vadd.f32 0.0, %v1370
        %v1372 = vpop.f32.mrf.mxu0
        %v1373 = vadd.f32 0.0, %v1372
        %1374 = vdwg.mxu0
        %v1377 = vunpack.c.l.b16 %v1283
        %v1378 = vunpack.c.l.b16 %v1284
        %v1379 = vpack.c.b16 %v1378, %v1377
        %v1380 = vunpack.c.l.b16 %v1045
        %v1381 = vunpack.c.l.b16 %v1047
        %v1382 = vunpack.c.l.b16 %v1049
        %v1383 = vunpack.c.l.b16 %v1051
        %v1384 = vpack.c.b16 %v1381, %v1380
        %v1385 = vpack.c.b16 %v1383, %v1382
        %v1389 = vsel %vm1061, %v1379, 0
        %1391 = vmatpush.bf16.msra.mxu0 0
        %1392 = vmatpush.bf16.msra.mxu0 0
        %1393 = vmatpush.bf16.msra.mxu0 0
        %1394 = vmatpush.bf16.msra.mxu0 0
        %1395 = vmatpush.bf16.msra.mxu0 0
        %1396 = vmatpush.bf16.msra.mxu0 0
        %1397 = vmatpush.bf16.msra.mxu0 %v1385
        %1398 = vmatpush.bf16.msra.mxu0 %v1384
        %1399 = vmatmul.bf16.gmra.mxu0 %v1389
        %v1400 = vpop.f32.mrf.mxu0
        %v1401 = vadd.f32 0.0, %v1400
        %v1402 = vpop.f32.mrf.mxu0
        %v1403 = vadd.f32 0.0, %v1402
        %1404 = vdwg.mxu0
        %v1405 = vpack.c.bf16 %v1311, %v1311
        %v1406 = vpack.c.bf16 %v1313, %v1313
        %v1407 = vpack.c.bf16 %v1341, %v1341
        %v1408 = vpack.c.bf16 %v1343, %v1343
        %v1409 = vpack.c.bf16 %v1371, %v1371
        %v1410 = vpack.c.bf16 %v1373, %v1373
        %v1411 = vpack.c.bf16 %v1401, %v1401
        %v1412 = vpack.c.bf16 %v1403, %v1403
        %v1413 = vld [vmem:[#allocation20] sm:$0xf]
        %v1414 = vld [vmem:[#allocation20 + $0x4] sm:$0xf]
        %v1415 = vld [vmem:[#allocation20 + $0x8] sm:$0xf]
        %v1416 = vld [vmem:[#allocation20 + $0xc] sm:$0xf]
        %v1417 = vld [vmem:[#allocation20 + $0x10] sm:$0xf]
        %v1418 = vld [vmem:[#allocation20 + $0x14] sm:$0xf]
        %v1419 = vld [vmem:[#allocation20 + $0x18] sm:$0xf]
        %v1420 = vld [vmem:[#allocation20 + $0x1c] sm:$0xf]
        %v1421 = vld [vmem:[#allocation20 + $0x20] sm:$0xf]
        %v1422 = vld [vmem:[#allocation20 + $0x24] sm:$0xf]
        %v1423 = vld [vmem:[#allocation20 + $0x28] sm:$0xf]
        %v1424 = vld [vmem:[#allocation20 + $0x2c] sm:$0xf]
        %v1425 = vld [vmem:[#allocation20 + $0x30] sm:$0xf]
        %v1426 = vld [vmem:[#allocation20 + $0x34] sm:$0xf]
        %v1427 = vld [vmem:[#allocation20 + $0x38] sm:$0xf]
        %v1428 = vld [vmem:[#allocation20 + $0x3c] sm:$0xf]
        %v1431 = vunpack.c.l.b16 %v1405
        %v1432 = vunpack.c.l.b16 %v1406
        %v1433 = vpack.c.b16 %v1432, %v1431
        %v1438 = vunpack.c.l.b16 %v1413
        %v1439 = vunpack.c.l.b16 %v1414
        %v1440 = vunpack.c.l.b16 %v1415
        %v1441 = vunpack.c.l.b16 %v1416
        %v1442 = vpack.c.b16 %v1439, %v1438
        %v1443 = vpack.c.b16 %v1441, %v1440
        %v1447 = vsel %vm1061, %v1433, 0
        %1449 = vmatpush.bf16.msra.mxu0 0
        %1450 = vmatpush.bf16.msra.mxu0 0
        %1451 = vmatpush.bf16.msra.mxu0 0
        %1452 = vmatpush.bf16.msra.mxu0 0
        %1453 = vmatpush.bf16.msra.mxu0 0
        %1454 = vmatpush.bf16.msra.mxu0 0
        %1455 = vmatpush.bf16.msra.mxu0 %v1443
        %1456 = vmatpush.bf16.msra.mxu0 %v1442
        %1457 = vmatmul.bf16.gmra.mxu0 %v1447
        %v1458 = vpop.f32.mrf.mxu0
        %v1459 = vadd.f32 0.0, %v1458
        %v1460 = vpop.f32.mrf.mxu0
        %v1461 = vadd.f32 0.0, %v1460
        %1462 = vdwg.mxu0
        %v1465 = vunpack.c.l.b16 %v1407
        %v1466 = vunpack.c.l.b16 %v1408
        %v1467 = vpack.c.b16 %v1466, %v1465
        %v1472 = vunpack.c.l.b16 %v1417
        %v1473 = vunpack.c.l.b16 %v1418
        %v1474 = vunpack.c.l.b16 %v1419
        %v1475 = vunpack.c.l.b16 %v1420
        %v1476 = vpack.c.b16 %v1473, %v1472
        %v1477 = vpack.c.b16 %v1475, %v1474
        %v1481 = vsel %vm1061, %v1467, 0
        %1483 = vmatpush.bf16.msra.mxu0 0
        %1484 = vmatpush.bf16.msra.mxu0 0
        %1485 = vmatpush.bf16.msra.mxu0 0
        %1486 = vmatpush.bf16.msra.mxu0 0
        %1487 = vmatpush.bf16.msra.mxu0 0
        %1488 = vmatpush.bf16.msra.mxu0 0
        %1489 = vmatpush.bf16.msra.mxu0 %v1477
        %1490 = vmatpush.bf16.msra.mxu0 %v1476
        %1491 = vmatmul.bf16.gmra.mxu0 %v1481
        %v1492 = vpop.f32.mrf.mxu0
        %v1493 = vadd.f32 0.0, %v1492
        %v1494 = vpop.f32.mrf.mxu0
        %v1495 = vadd.f32 0.0, %v1494
        %1496 = vdwg.mxu0
        %v1499 = vunpack.c.l.b16 %v1409
        %v1500 = vunpack.c.l.b16 %v1410
        %v1501 = vpack.c.b16 %v1500, %v1499
        %v1506 = vunpack.c.l.b16 %v1421
        %v1507 = vunpack.c.l.b16 %v1422
        %v1508 = vunpack.c.l.b16 %v1423
        %v1509 = vunpack.c.l.b16 %v1424
        %v1510 = vpack.c.b16 %v1507, %v1506
        %v1511 = vpack.c.b16 %v1509, %v1508
        %v1515 = vsel %vm1061, %v1501, 0
        %1517 = vmatpush.bf16.msra.mxu0 0
        %1518 = vmatpush.bf16.msra.mxu0 0
        %1519 = vmatpush.bf16.msra.mxu0 0
        %1520 = vmatpush.bf16.msra.mxu0 0
        %1521 = vmatpush.bf16.msra.mxu0 0
        %1522 = vmatpush.bf16.msra.mxu0 0
        %1523 = vmatpush.bf16.msra.mxu0 %v1511
        %1524 = vmatpush.bf16.msra.mxu0 %v1510
        %1525 = vmatmul.bf16.gmra.mxu0 %v1515
        %v1526 = vpop.f32.mrf.mxu0
        %v1527 = vadd.f32 0.0, %v1526
        %v1528 = vpop.f32.mrf.mxu0
        %v1529 = vadd.f32 0.0, %v1528
        %1530 = vdwg.mxu0
        %v1533 = vunpack.c.l.b16 %v1411
        %v1534 = vunpack.c.l.b16 %v1412
        %v1535 = vpack.c.b16 %v1534, %v1533
        %v1540 = vunpack.c.l.b16 %v1425
        %v1541 = vunpack.c.l.b16 %v1426
        %v1542 = vunpack.c.l.b16 %v1427
        %v1543 = vunpack.c.l.b16 %v1428
        %v1544 = vpack.c.b16 %v1541, %v1540
        %v1545 = vpack.c.b16 %v1543, %v1542
        %v1549 = vsel %vm1061, %v1535, 0
        %1551 = vmatpush.bf16.msra.mxu0 0
        %1552 = vmatpush.bf16.msra.mxu0 0
        %1553 = vmatpush.bf16.msra.mxu0 0
        %1554 = vmatpush.bf16.msra.mxu0 0
        %1555 = vmatpush.bf16.msra.mxu0 0
        %1556 = vmatpush.bf16.msra.mxu0 0
        %1557 = vmatpush.bf16.msra.mxu0 %v1545
        %1558 = vmatpush.bf16.msra.mxu0 %v1544
        %1559 = vmatmul.bf16.gmra.mxu0 %v1549
        %v1560 = vpop.f32.mrf.mxu0
        %v1561 = vadd.f32 0.0, %v1560
        %v1562 = vpop.f32.mrf.mxu0
        %v1563 = vadd.f32 0.0, %v1562
        %1564 = vdwg.mxu0
        %v1565 = vadd.f32 %v1459, %v1493
        %v1566 = vadd.f32 %v1461, %v1495
        %v1567 = vadd.f32 %v1565, %v1527
        %v1568 = vadd.f32 %v1566, %v1529
        %v1569 = vadd.f32 %v1567, %v1561
        %v1570 = vadd.f32 %v1568, %v1563
        %v1571 = vld [vmem:[%s13] sm:$0x1]
        %v1573 = vperm.slane %v1571, 0
        %v1575 = vadd.f32 %v1569, %v1573
        %v1576 = vadd.f32 %v1570, %v1573
        %1577 = vst [vmem:[#allocation2] sm:$0xff] %v1575
        %1578 = vst [vmem:[#allocation2 + $0x8] sm:$0xff] %v1576
        %s1579 = sld [smem:[#allocation10]]
        %s1580 = sld [smem:[#allocation3]]
        %s1581 = scalar_lea.vmem [#allocation2], %s1580
        %v1582 = vld [vmem:[%s1581] sm:$0x1]
        %s1583 = sld [smem:[#allocation8]]
        %s1584 = scalar_lea.vmem [#allocation2], %s1583
        %v1585 = vld [vmem:[%s1584] sm:$0x1]
        %s1586 = ssub.f32 1.0, %s1579
        %v1587 = vstv %s1586
        %v1588 = vmul.f32 %v1587, %v1582
        %v1589 = vstv %s1579
        %v1590 = vmul.f32 %v1589, %v1585
        %v1591 = vadd.f32 %v1588, %v1590
        %1592 = vst [vmem:[%s674] sm:$0x1] %v1591
        %s1593 = sld [smem:[#allocation10 + $0x1]]
        %s1594 = sld [smem:[#allocation3 + $0x1]]
        %s1595 = scalar_lea.vmem [#allocation2], %s1594
        %v1596 = vld [vmem:[%s1595] sm:$0x1]
        %s1597 = sld [smem:[#allocation8 + $0x1]]
        %s1598 = scalar_lea.vmem [#allocation2], %s1597
        %v1599 = vld [vmem:[%s1598] sm:$0x1]
        %s1600 = ssub.f32 1.0, %s1593
        %v1601 = vstv %s1600
        %v1602 = vmul.f32 %v1601, %v1596
        %v1603 = vstv %s1593
        %v1604 = vmul.f32 %v1603, %v1599
        %v1605 = vadd.f32 %v1602, %v1604
        %1606 = vst [vmem:[%s674 + $0x1] sm:$0x1] %v1605
        %s1607 = sld [smem:[#allocation10 + $0x2]]
        %s1608 = sld [smem:[#allocation3 + $0x2]]
        %s1609 = scalar_lea.vmem [#allocation2], %s1608
        %v1610 = vld [vmem:[%s1609] sm:$0x1]
        %s1611 = sld [smem:[#allocation8 + $0x2]]
        %s1612 = scalar_lea.vmem [#allocation2], %s1611
        %v1613 = vld [vmem:[%s1612] sm:$0x1]
        %s1614 = ssub.f32 1.0, %s1607
        %v1615 = vstv %s1614
        %v1616 = vmul.f32 %v1615, %v1610
        %v1617 = vstv %s1607
        %v1618 = vmul.f32 %v1617, %v1613
        %v1619 = vadd.f32 %v1616, %v1618
        %1620 = vst [vmem:[%s674 + $0x2] sm:$0x1] %v1619
        %s1621 = sld [smem:[#allocation10 + $0x3]]
        %s1622 = sld [smem:[#allocation3 + $0x3]]
        %s1623 = scalar_lea.vmem [#allocation2], %s1622
        %v1624 = vld [vmem:[%s1623] sm:$0x1]
        %s1625 = sld [smem:[#allocation8 + $0x3]]
        %s1626 = scalar_lea.vmem [#allocation2], %s1625
        %v1627 = vld [vmem:[%s1626] sm:$0x1]
        %s1628 = ssub.f32 1.0, %s1621
        %v1629 = vstv %s1628
        %v1630 = vmul.f32 %v1629, %v1624
        %v1631 = vstv %s1621
        %v1632 = vmul.f32 %v1631, %v1627
        %v1633 = vadd.f32 %v1630, %v1632
        %1634 = vst [vmem:[%s674 + $0x3] sm:$0x1] %v1633
        %s1635 = sld [smem:[#allocation10 + $0x4]]
        %s1636 = sld [smem:[#allocation3 + $0x4]]
        %s1637 = scalar_lea.vmem [#allocation2], %s1636
        %v1638 = vld [vmem:[%s1637] sm:$0x1]
        %s1639 = sld [smem:[#allocation8 + $0x4]]
        %s1640 = scalar_lea.vmem [#allocation2], %s1639
        %v1641 = vld [vmem:[%s1640] sm:$0x1]
        %s1642 = ssub.f32 1.0, %s1635
        %v1643 = vstv %s1642
        %v1644 = vmul.f32 %v1643, %v1638
        %v1645 = vstv %s1635
        %v1646 = vmul.f32 %v1645, %v1641
        %v1647 = vadd.f32 %v1644, %v1646
        %1648 = vst [vmem:[%s674 + $0x4] sm:$0x1] %v1647
        %s1649 = sld [smem:[#allocation10 + $0x5]]
        %s1650 = sld [smem:[#allocation3 + $0x5]]
        %s1651 = scalar_lea.vmem [#allocation2], %s1650
        %v1652 = vld [vmem:[%s1651] sm:$0x1]
        %s1653 = sld [smem:[#allocation8 + $0x5]]
        %s1654 = scalar_lea.vmem [#allocation2], %s1653
        %v1655 = vld [vmem:[%s1654] sm:$0x1]
        %s1656 = ssub.f32 1.0, %s1649
        %v1657 = vstv %s1656
        %v1658 = vmul.f32 %v1657, %v1652
        %v1659 = vstv %s1649
        %v1660 = vmul.f32 %v1659, %v1655
        %v1661 = vadd.f32 %v1658, %v1660
        %1662 = vst [vmem:[%s674 + $0x5] sm:$0x1] %v1661
        %s1663 = sld [smem:[#allocation10 + $0x6]]
        %s1664 = sld [smem:[#allocation3 + $0x6]]
        %s1665 = scalar_lea.vmem [#allocation2], %s1664
        %v1666 = vld [vmem:[%s1665] sm:$0x1]
        %s1667 = sld [smem:[#allocation8 + $0x6]]
        %s1668 = scalar_lea.vmem [#allocation2], %s1667
        %v1669 = vld [vmem:[%s1668] sm:$0x1]
        %s1670 = ssub.f32 1.0, %s1663
        %v1671 = vstv %s1670
        %v1672 = vmul.f32 %v1671, %v1666
        %v1673 = vstv %s1663
        %v1674 = vmul.f32 %v1673, %v1669
        %v1675 = vadd.f32 %v1672, %v1674
        %1676 = vst [vmem:[%s674 + $0x6] sm:$0x1] %v1675
        %s1677 = sld [smem:[#allocation10 + $0x7]]
        %s1678 = sld [smem:[#allocation3 + $0x7]]
        %s1679 = scalar_lea.vmem [#allocation2], %s1678
        %v1680 = vld [vmem:[%s1679] sm:$0x1]
        %s1681 = sld [smem:[#allocation8 + $0x7]]
        %s1682 = scalar_lea.vmem [#allocation2], %s1681
        %v1683 = vld [vmem:[%s1682] sm:$0x1]
        %s1684 = ssub.f32 1.0, %s1677
        %v1685 = vstv %s1684
        %v1686 = vmul.f32 %v1685, %v1680
        %v1687 = vstv %s1677
        %v1688 = vmul.f32 %v1687, %v1683
        %v1689 = vadd.f32 %v1686, %v1688
        %1690 = vst [vmem:[%s674 + $0x7] sm:$0x1] %v1689
        %s1691 = sld [smem:[#allocation10 + $0x8]]
        %s1692 = sld [smem:[#allocation3 + $0x8]]
        %s1693 = scalar_lea.vmem [#allocation2], %s1692
        %v1694 = vld [vmem:[%s1693] sm:$0x1]
        %s1695 = sld [smem:[#allocation8 + $0x8]]
        %s1696 = scalar_lea.vmem [#allocation2], %s1695
        %v1697 = vld [vmem:[%s1696] sm:$0x1]
        %s1698 = ssub.f32 1.0, %s1691
        %v1699 = vstv %s1698
        %v1700 = vmul.f32 %v1699, %v1694
        %v1701 = vstv %s1691
        %v1702 = vmul.f32 %v1701, %v1697
        %v1703 = vadd.f32 %v1700, %v1702
        %1704 = vst [vmem:[%s674 + $0x8] sm:$0x1] %v1703
        %s1705 = sld [smem:[#allocation10 + $0x9]]
        %s1706 = sld [smem:[#allocation3 + $0x9]]
        %s1707 = scalar_lea.vmem [#allocation2], %s1706
        %v1708 = vld [vmem:[%s1707] sm:$0x1]
        %s1709 = sld [smem:[#allocation8 + $0x9]]
        %s1710 = scalar_lea.vmem [#allocation2], %s1709
        %v1711 = vld [vmem:[%s1710] sm:$0x1]
        %s1712 = ssub.f32 1.0, %s1705
        %v1713 = vstv %s1712
        %v1714 = vmul.f32 %v1713, %v1708
        %v1715 = vstv %s1705
        %v1716 = vmul.f32 %v1715, %v1711
        %v1717 = vadd.f32 %v1714, %v1716
        %1718 = vst [vmem:[%s674 + $0x9] sm:$0x1] %v1717
        %s1719 = sld [smem:[#allocation10 + $0xa]]
        %s1720 = sld [smem:[#allocation3 + $0xa]]
        %s1721 = scalar_lea.vmem [#allocation2], %s1720
        %v1722 = vld [vmem:[%s1721] sm:$0x1]
        %s1723 = sld [smem:[#allocation8 + $0xa]]
        %s1724 = scalar_lea.vmem [#allocation2], %s1723
        %v1725 = vld [vmem:[%s1724] sm:$0x1]
        %s1726 = ssub.f32 1.0, %s1719
        %v1727 = vstv %s1726
        %v1728 = vmul.f32 %v1727, %v1722
        %v1729 = vstv %s1719
        %v1730 = vmul.f32 %v1729, %v1725
        %v1731 = vadd.f32 %v1728, %v1730
        %1732 = vst [vmem:[%s674 + $0xa] sm:$0x1] %v1731
        %s1733 = sld [smem:[#allocation10 + $0xb]]
        %s1734 = sld [smem:[#allocation3 + $0xb]]
        %s1735 = scalar_lea.vmem [#allocation2], %s1734
        %v1736 = vld [vmem:[%s1735] sm:$0x1]
        %s1737 = sld [smem:[#allocation8 + $0xb]]
        %s1738 = scalar_lea.vmem [#allocation2], %s1737
        %v1739 = vld [vmem:[%s1738] sm:$0x1]
        %s1740 = ssub.f32 1.0, %s1733
        %v1741 = vstv %s1740
        %v1742 = vmul.f32 %v1741, %v1736
        %v1743 = vstv %s1733
        %v1744 = vmul.f32 %v1743, %v1739
        %v1745 = vadd.f32 %v1742, %v1744
        %1746 = vst [vmem:[%s674 + $0xb] sm:$0x1] %v1745
        %s1747 = sld [smem:[#allocation10 + $0xc]]
        %s1748 = sld [smem:[#allocation3 + $0xc]]
        %s1749 = scalar_lea.vmem [#allocation2], %s1748
        %v1750 = vld [vmem:[%s1749] sm:$0x1]
        %s1751 = sld [smem:[#allocation8 + $0xc]]
        %s1752 = scalar_lea.vmem [#allocation2], %s1751
        %v1753 = vld [vmem:[%s1752] sm:$0x1]
        %s1754 = ssub.f32 1.0, %s1747
        %v1755 = vstv %s1754
        %v1756 = vmul.f32 %v1755, %v1750
        %v1757 = vstv %s1747
        %v1758 = vmul.f32 %v1757, %v1753
        %v1759 = vadd.f32 %v1756, %v1758
        %1760 = vst [vmem:[%s674 + $0xc] sm:$0x1] %v1759
        %s1761 = sld [smem:[#allocation10 + $0xd]]
        %s1762 = sld [smem:[#allocation3 + $0xd]]
        %s1763 = scalar_lea.vmem [#allocation2], %s1762
        %v1764 = vld [vmem:[%s1763] sm:$0x1]
        %s1765 = sld [smem:[#allocation8 + $0xd]]
        %s1766 = scalar_lea.vmem [#allocation2], %s1765
        %v1767 = vld [vmem:[%s1766] sm:$0x1]
        %s1768 = ssub.f32 1.0, %s1761
        %v1769 = vstv %s1768
        %v1770 = vmul.f32 %v1769, %v1764
        %v1771 = vstv %s1761
        %v1772 = vmul.f32 %v1771, %v1767
        %v1773 = vadd.f32 %v1770, %v1772
        %1774 = vst [vmem:[%s674 + $0xd] sm:$0x1] %v1773
        %s1775 = sld [smem:[#allocation10 + $0xe]]
        %s1776 = sld [smem:[#allocation3 + $0xe]]
        %s1777 = scalar_lea.vmem [#allocation2], %s1776
        %v1778 = vld [vmem:[%s1777] sm:$0x1]
        %s1779 = sld [smem:[#allocation8 + $0xe]]
        %s1780 = scalar_lea.vmem [#allocation2], %s1779
        %v1781 = vld [vmem:[%s1780] sm:$0x1]
        %s1782 = ssub.f32 1.0, %s1775
        %v1783 = vstv %s1782
        %v1784 = vmul.f32 %v1783, %v1778
        %v1785 = vstv %s1775
        %v1786 = vmul.f32 %v1785, %v1781
        %v1787 = vadd.f32 %v1784, %v1786
        %1788 = vst [vmem:[%s674 + $0xe] sm:$0x1] %v1787
        %s1789 = sld [smem:[#allocation10 + $0xf]]
        %s1790 = sld [smem:[#allocation3 + $0xf]]
        %s1791 = scalar_lea.vmem [#allocation2], %s1790
        %v1792 = vld [vmem:[%s1791] sm:$0x1]
        %s1793 = sld [smem:[#allocation8 + $0xf]]
        %s1794 = scalar_lea.vmem [#allocation2], %s1793
        %v1795 = vld [vmem:[%s1794] sm:$0x1]
        %s1796 = ssub.f32 1.0, %s1789
        %v1797 = vstv %s1796
        %v1798 = vmul.f32 %v1797, %v1792
        %v1799 = vstv %s1789
        %v1800 = vmul.f32 %v1799, %v1795
        %v1801 = vadd.f32 %v1798, %v1800
        %1802 = vst [vmem:[%s674 + $0xf] sm:$0x1] %v1801
        %s1803 = sld [smem:[#allocation10 + $0x10]]
        %s1804 = sld [smem:[#allocation3 + $0x10]]
        %s1805 = scalar_lea.vmem [#allocation2], %s1804
        %v1806 = vld [vmem:[%s1805] sm:$0x1]
        %s1807 = sld [smem:[#allocation8 + $0x10]]
        %s1808 = scalar_lea.vmem [#allocation2], %s1807
        %v1809 = vld [vmem:[%s1808] sm:$0x1]
        %s1810 = ssub.f32 1.0, %s1803
        %v1811 = vstv %s1810
        %v1812 = vmul.f32 %v1811, %v1806
        %v1813 = vstv %s1803
        %v1814 = vmul.f32 %v1813, %v1809
        %v1815 = vadd.f32 %v1812, %v1814
        %1816 = vst [vmem:[%s674 + $0x10] sm:$0x1] %v1815
        %s1817 = sld [smem:[#allocation10 + $0x11]]
        %s1818 = sld [smem:[#allocation3 + $0x11]]
        %s1819 = scalar_lea.vmem [#allocation2], %s1818
        %v1820 = vld [vmem:[%s1819] sm:$0x1]
        %s1821 = sld [smem:[#allocation8 + $0x11]]
        %s1822 = scalar_lea.vmem [#allocation2], %s1821
        %v1823 = vld [vmem:[%s1822] sm:$0x1]
        %s1824 = ssub.f32 1.0, %s1817
        %v1825 = vstv %s1824
        %v1826 = vmul.f32 %v1825, %v1820
        %v1827 = vstv %s1817
        %v1828 = vmul.f32 %v1827, %v1823
        %v1829 = vadd.f32 %v1826, %v1828
        %1830 = vst [vmem:[%s674 + $0x11] sm:$0x1] %v1829
        %s1831 = sld [smem:[#allocation10 + $0x12]]
        %s1832 = sld [smem:[#allocation3 + $0x12]]
        %s1833 = scalar_lea.vmem [#allocation2], %s1832
        %v1834 = vld [vmem:[%s1833] sm:$0x1]
        %s1835 = sld [smem:[#allocation8 + $0x12]]
        %s1836 = scalar_lea.vmem [#allocation2], %s1835
        %v1837 = vld [vmem:[%s1836] sm:$0x1]
        %s1838 = ssub.f32 1.0, %s1831
        %v1839 = vstv %s1838
        %v1840 = vmul.f32 %v1839, %v1834
        %v1841 = vstv %s1831
        %v1842 = vmul.f32 %v1841, %v1837
        %v1843 = vadd.f32 %v1840, %v1842
        %1844 = vst [vmem:[%s674 + $0x12] sm:$0x1] %v1843
        %s1845 = sld [smem:[#allocation10 + $0x13]]
        %s1846 = sld [smem:[#allocation3 + $0x13]]
        %s1847 = scalar_lea.vmem [#allocation2], %s1846
        %v1848 = vld [vmem:[%s1847] sm:$0x1]
        %s1849 = sld [smem:[#allocation8 + $0x13]]
        %s1850 = scalar_lea.vmem [#allocation2], %s1849
        %v1851 = vld [vmem:[%s1850] sm:$0x1]
        %s1852 = ssub.f32 1.0, %s1845
        %v1853 = vstv %s1852
        %v1854 = vmul.f32 %v1853, %v1848
        %v1855 = vstv %s1845
        %v1856 = vmul.f32 %v1855, %v1851
        %v1857 = vadd.f32 %v1854, %v1856
        %1858 = vst [vmem:[%s674 + $0x13] sm:$0x1] %v1857
        %s1859 = sld [smem:[#allocation10 + $0x14]]
        %s1860 = sld [smem:[#allocation3 + $0x14]]
        %s1861 = scalar_lea.vmem [#allocation2], %s1860
        %v1862 = vld [vmem:[%s1861] sm:$0x1]
        %s1863 = sld [smem:[#allocation8 + $0x14]]
        %s1864 = scalar_lea.vmem [#allocation2], %s1863
        %v1865 = vld [vmem:[%s1864] sm:$0x1]
        %s1866 = ssub.f32 1.0, %s1859
        %v1867 = vstv %s1866
        %v1868 = vmul.f32 %v1867, %v1862
        %v1869 = vstv %s1859
        %v1870 = vmul.f32 %v1869, %v1865
        %v1871 = vadd.f32 %v1868, %v1870
        %1872 = vst [vmem:[%s674 + $0x14] sm:$0x1] %v1871
        %s1873 = sld [smem:[#allocation10 + $0x15]]
        %s1874 = sld [smem:[#allocation3 + $0x15]]
        %s1875 = scalar_lea.vmem [#allocation2], %s1874
        %v1876 = vld [vmem:[%s1875] sm:$0x1]
        %s1877 = sld [smem:[#allocation8 + $0x15]]
        %s1878 = scalar_lea.vmem [#allocation2], %s1877
        %v1879 = vld [vmem:[%s1878] sm:$0x1]
        %s1880 = ssub.f32 1.0, %s1873
        %v1881 = vstv %s1880
        %v1882 = vmul.f32 %v1881, %v1876
        %v1883 = vstv %s1873
        %v1884 = vmul.f32 %v1883, %v1879
        %v1885 = vadd.f32 %v1882, %v1884
        %1886 = vst [vmem:[%s674 + $0x15] sm:$0x1] %v1885
        %s1887 = sld [smem:[#allocation10 + $0x16]]
        %s1888 = sld [smem:[#allocation3 + $0x16]]
        %s1889 = scalar_lea.vmem [#allocation2], %s1888
        %v1890 = vld [vmem:[%s1889] sm:$0x1]
        %s1891 = sld [smem:[#allocation8 + $0x16]]
        %s1892 = scalar_lea.vmem [#allocation2], %s1891
        %v1893 = vld [vmem:[%s1892] sm:$0x1]
        %s1894 = ssub.f32 1.0, %s1887
        %v1895 = vstv %s1894
        %v1896 = vmul.f32 %v1895, %v1890
        %v1897 = vstv %s1887
        %v1898 = vmul.f32 %v1897, %v1893
        %v1899 = vadd.f32 %v1896, %v1898
        %1900 = vst [vmem:[%s674 + $0x16] sm:$0x1] %v1899
        %s1901 = sld [smem:[#allocation10 + $0x17]]
        %s1902 = sld [smem:[#allocation3 + $0x17]]
        %s1903 = scalar_lea.vmem [#allocation2], %s1902
        %v1904 = vld [vmem:[%s1903] sm:$0x1]
        %s1905 = sld [smem:[#allocation8 + $0x17]]
        %s1906 = scalar_lea.vmem [#allocation2], %s1905
        %v1907 = vld [vmem:[%s1906] sm:$0x1]
        %s1908 = ssub.f32 1.0, %s1901
        %v1909 = vstv %s1908
        %v1910 = vmul.f32 %v1909, %v1904
        %v1911 = vstv %s1901
        %v1912 = vmul.f32 %v1911, %v1907
        %v1913 = vadd.f32 %v1910, %v1912
        %1914 = vst [vmem:[%s674 + $0x17] sm:$0x1] %v1913
        %s1915 = sld [smem:[#allocation10 + $0x18]]
        %s1916 = sld [smem:[#allocation3 + $0x18]]
        %s1917 = scalar_lea.vmem [#allocation2], %s1916
        %v1918 = vld [vmem:[%s1917] sm:$0x1]
        %s1919 = sld [smem:[#allocation8 + $0x18]]
        %s1920 = scalar_lea.vmem [#allocation2], %s1919
        %v1921 = vld [vmem:[%s1920] sm:$0x1]
        %s1922 = ssub.f32 1.0, %s1915
        %v1923 = vstv %s1922
        %v1924 = vmul.f32 %v1923, %v1918
        %v1925 = vstv %s1915
        %v1926 = vmul.f32 %v1925, %v1921
        %v1927 = vadd.f32 %v1924, %v1926
        %1928 = vst [vmem:[%s674 + $0x18] sm:$0x1] %v1927
        %s1929 = sld [smem:[#allocation10 + $0x19]]
        %s1930 = sld [smem:[#allocation3 + $0x19]]
        %s1931 = scalar_lea.vmem [#allocation2], %s1930
        %v1932 = vld [vmem:[%s1931] sm:$0x1]
        %s1933 = sld [smem:[#allocation8 + $0x19]]
        %s1934 = scalar_lea.vmem [#allocation2], %s1933
        %v1935 = vld [vmem:[%s1934] sm:$0x1]
        %s1936 = ssub.f32 1.0, %s1929
        %v1937 = vstv %s1936
        %v1938 = vmul.f32 %v1937, %v1932
        %v1939 = vstv %s1929
        %v1940 = vmul.f32 %v1939, %v1935
        %v1941 = vadd.f32 %v1938, %v1940
        %1942 = vst [vmem:[%s674 + $0x19] sm:$0x1] %v1941
        %s1943 = sld [smem:[#allocation10 + $0x1a]]
        %s1944 = sld [smem:[#allocation3 + $0x1a]]
        %s1945 = scalar_lea.vmem [#allocation2], %s1944
        %v1946 = vld [vmem:[%s1945] sm:$0x1]
        %s1947 = sld [smem:[#allocation8 + $0x1a]]
        %s1948 = scalar_lea.vmem [#allocation2], %s1947
        %v1949 = vld [vmem:[%s1948] sm:$0x1]
        %s1950 = ssub.f32 1.0, %s1943
        %v1951 = vstv %s1950
        %v1952 = vmul.f32 %v1951, %v1946
        %v1953 = vstv %s1943
        %v1954 = vmul.f32 %v1953, %v1949
        %v1955 = vadd.f32 %v1952, %v1954
        %1956 = vst [vmem:[%s674 + $0x1a] sm:$0x1] %v1955
        %s1957 = sld [smem:[#allocation10 + $0x1b]]
        %s1958 = sld [smem:[#allocation3 + $0x1b]]
        %s1959 = scalar_lea.vmem [#allocation2], %s1958
        %v1960 = vld [vmem:[%s1959] sm:$0x1]
        %s1961 = sld [smem:[#allocation8 + $0x1b]]
        %s1962 = scalar_lea.vmem [#allocation2], %s1961
        %v1963 = vld [vmem:[%s1962] sm:$0x1]
        %s1964 = ssub.f32 1.0, %s1957
        %v1965 = vstv %s1964
        %v1966 = vmul.f32 %v1965, %v1960
        %v1967 = vstv %s1957
        %v1968 = vmul.f32 %v1967, %v1963
        %v1969 = vadd.f32 %v1966, %v1968
        %1970 = vst [vmem:[%s674 + $0x1b] sm:$0x1] %v1969
        %s1971 = sld [smem:[#allocation10 + $0x1c]]
        %s1972 = sld [smem:[#allocation3 + $0x1c]]
        %s1973 = scalar_lea.vmem [#allocation2], %s1972
        %v1974 = vld [vmem:[%s1973] sm:$0x1]
        %s1975 = sld [smem:[#allocation8 + $0x1c]]
        %s1976 = scalar_lea.vmem [#allocation2], %s1975
        %v1977 = vld [vmem:[%s1976] sm:$0x1]
        %s1978 = ssub.f32 1.0, %s1971
        %v1979 = vstv %s1978
        %v1980 = vmul.f32 %v1979, %v1974
        %v1981 = vstv %s1971
        %v1982 = vmul.f32 %v1981, %v1977
        %v1983 = vadd.f32 %v1980, %v1982
        %1984 = vst [vmem:[%s674 + $0x1c] sm:$0x1] %v1983
        %s1985 = sld [smem:[#allocation10 + $0x1d]]
        %s1986 = sld [smem:[#allocation3 + $0x1d]]
        %s1987 = scalar_lea.vmem [#allocation2], %s1986
        %v1988 = vld [vmem:[%s1987] sm:$0x1]
        %s1989 = sld [smem:[#allocation8 + $0x1d]]
        %s1990 = scalar_lea.vmem [#allocation2], %s1989
        %v1991 = vld [vmem:[%s1990] sm:$0x1]
        %s1992 = ssub.f32 1.0, %s1985
        %v1993 = vstv %s1992
        %v1994 = vmul.f32 %v1993, %v1988
        %v1995 = vstv %s1985
        %v1996 = vmul.f32 %v1995, %v1991
        %v1997 = vadd.f32 %v1994, %v1996
        %1998 = vst [vmem:[%s674 + $0x1d] sm:$0x1] %v1997
        %s1999 = sld [smem:[#allocation10 + $0x1e]]
        %s2000 = sld [smem:[#allocation3 + $0x1e]]
        %s2001 = scalar_lea.vmem [#allocation2], %s2000
        %v2002 = vld [vmem:[%s2001] sm:$0x1]
        %s2003 = sld [smem:[#allocation8 + $0x1e]]
        %s2004 = scalar_lea.vmem [#allocation2], %s2003
        %v2005 = vld [vmem:[%s2004] sm:$0x1]
        %s2006 = ssub.f32 1.0, %s1999
        %v2007 = vstv %s2006
        %v2008 = vmul.f32 %v2007, %v2002
        %v2009 = vstv %s1999
        %v2010 = vmul.f32 %v2009, %v2005
        %v2011 = vadd.f32 %v2008, %v2010
        %2012 = vst [vmem:[%s674 + $0x1e] sm:$0x1] %v2011
        %s2013 = sld [smem:[#allocation10 + $0x1f]]
        %s2014 = sld [smem:[#allocation3 + $0x1f]]
        %s2015 = scalar_lea.vmem [#allocation2], %s2014
        %v2016 = vld [vmem:[%s2015] sm:$0x1]
        %s2017 = sld [smem:[#allocation8 + $0x1f]]
        %s2018 = scalar_lea.vmem [#allocation2], %s2017
        %v2019 = vld [vmem:[%s2018] sm:$0x1]
        %s2020 = ssub.f32 1.0, %s2013
        %v2021 = vstv %s2020
        %v2022 = vmul.f32 %v2021, %v2016
        %v2023 = vstv %s2013
        %v2024 = vmul.f32 %v2023, %v2019
        %v2025 = vadd.f32 %v2022, %v2024
        %2026 = vst [vmem:[%s674 + $0x1f] sm:$0x1] %v2025
        %s2027 = sand.u32 %s356, 1
        %s2028 = scalar_lea.sflag [#allocation5], %s2027
        %s2029 = sand.u32 %s356, 1
        %s2030 = smul.addr %s2029, 32
        %s2031 = scalar_lea.vmem [#allocation21], %s2030
        // Predicated region
        $region117: #{tpu_custom_call.1} parent=75 // pred_check
          %p2032 = pneg %p366
        $region118: #{tpu_custom_call.1} parent=75 // pred_check_branch
          %2034 = sbr.rel (%p2032) target = $region120
        $region119: #{tpu_custom_call.1} parent=75 // pred_region
          %2036 = vsyncadd %s2028, 0
          %s2037 = smul.addr %s39, 4
          %s2038 = smul.addr %s2037, 8
          %s2039 = scalar_lea.hbm %s14, %s2038
          %s2040 = sshll.u32 %s2031, 4
          %s2041 = int_to_ptr.vmem [resolvable:$true] %s2040
          %s2042 = sshll.u32 %s2039, 4
          %s2043 = int_to_ptr.hbm [resolvable:$true] %s2042
          %2048 = dma.vmem_to_hbm [thread:$0]  %s2041, 512, %s2043, %s2028, 128, 128, 8
        $region120: #{tpu_custom_call.1} parent=75 // pred_fallthru
          _
      $region76: #{tpu_custom_call.1} parent=5 // pred_fallthru
        _
      %p2049 = scmp.le.s32.totalorder 2, %s34
      // Predicated region
      $region121: #{tpu_custom_call.1} parent=5 // pred_check
        %p2050 = pneg %p2049
      $region122: #{tpu_custom_call.1} parent=5 // pred_check_branch
        %2052 = sbr.rel (%p2050) target = $region124
      $region123: #{tpu_custom_call.1} parent=5 // pred_region
        %s2053 = ssub.s32 %s34, 2
        // Predicated region
        $region125: #{tpu_custom_call.1} parent=123 // pred_check
          %p2054 = pneg %p372
        $region126: #{tpu_custom_call.1} parent=123 // pred_check_branch
          %2056 = sbr.rel (%p2054) target = $region128
        $region127: #{tpu_custom_call.1} parent=123 // pred_region
          %s2057 = sand.u32 %s357, 1
          %s2058 = scalar_lea.sflag [#allocation5], %s2057
          %s2059 = sand.u32 %s357, 1
          %s2060 = smul.addr %s2059, 32
          %s2061 = scalar_lea.vmem [#allocation21], %s2060
          %2063 = dma.done %s2058, 512
        $region128: #{tpu_custom_call.1} parent=123 // pred_fallthru
          _
      $region124: #{tpu_custom_call.1} parent=5 // pred_fallthru
        _
    $region6: #{tpu_custom_call.1} parent=1 // loop_footer
      %s38 = sadd.s32 1, %s34
    $region7: #{tpu_custom_call.1} parent=1 // loop_footer_branch
      %33 = sbr.rel target = $region3
    $region8: #{tpu_custom_call.1} parent=1 // loop_exit
      _
    %2064 = vsyncpa [#allocation4], 1
    %s2065 = scalar_lea.sflag [#allocation4], 1
    %2066 = vsyncpa %s2065, 1
    %2067 = vsyncpa [#allocation13], 1
    %s2068 = scalar_lea.sflag [#allocation13], 1
    %2069 = vsyncpa %s2068, 1
    %2070 = vsyncpa [#allocation16], 1
    %2071 = vsyncpa [#allocation19], 1
    %2072 = vsyncpa [#allocation5], 1
    %s2073 = scalar_lea.sflag [#allocation5], 1
    %2074 = vsyncpa %s2073, 1
    %2075 = vsyncpa [#allocation6], 1
    %s2076 = scalar_lea.sflag [#allocation6], 1
    %2077 = vsyncpa %s2076, 1
    %2078 = vsyncpa [#allocation9], 1
    %2079 = vsyncpa [#allocation7], 1
    %s2080 = scalar_lea.sflag [#allocation7], 1
    %2081 = vsyncpa %s2080, 1

</llo_original>
